<compile_context>
chip_gen: v6e
topology: v6e:2x2x1
jax: 0.10.0
libtpu: 0.0.40
codegen_flags: <defaults>
</compile_context>

<pallas_src>
import functools
import math

import numpy as np
import jax
import jax.numpy as jnp
from jax.experimental import pallas as pl
from jax.experimental.pallas import tpu as pltpu

LN_EPS = 1e-5  # FusedLayerNorm default
MiB = 1024 * 1024


def _layer_norm(h, g, b):
    mu = jnp.mean(h, axis=-1, keepdims=True)
    var = jnp.mean((h - mu) * (h - mu), axis=-1, keepdims=True)
    return (h - mu) * jax.lax.rsqrt(var + LN_EPS) * g + b


# --------------------- pass 1: ln_0 + QKV (head-major out) ---------------- #
def ln_qkv_kernel(x_ref, g_ref, b_ref, wq_ref, wk_ref, wv_ref,
                  bq_ref, bk_ref, bv_ref, q_ref, k_ref, v_ref,
                  *, q_scale, n_head):
    x = x_ref[...]                                              # (tr, C) f32
    h = _layer_norm(x, g_ref[...], b_ref[...]).astype(jnp.bfloat16)
    q = jnp.dot(h, wq_ref[...], preferred_element_type=jnp.float32) + bq_ref[...]
    k = jnp.dot(h, wk_ref[...], preferred_element_type=jnp.float32) + bk_ref[...]
    v = jnp.dot(h, wv_ref[...], preferred_element_type=jnp.float32) + bv_ref[...]
    q = q * q_scale                                             # fold 1/sqrt(dh)
    dh = q.shape[-1] // n_head
    # Write head-major (H, tr, dh) directly: kills the XLA transpose between
    # the two passes (extra HBM read+write of all of q/k/v per layer).
    for hh in range(n_head):                                    # static unroll
        sl = slice(hh * dh, (hh + 1) * dh)                      # static lane slice
        q_ref[hh] = q[:, sl].astype(q_ref.dtype)
        k_ref[hh] = k[:, sl].astype(k_ref.dtype)
        v_ref[hh] = v[:, sl].astype(v_ref.dtype)


# ------ pass 2: flash attention + out-proj + residual + ln_1 + MLP -------- #
def attn_mlp_kernel(x_ref, q_ref, k_ref, v_ref,
                    w_ap_ref, b_ap_ref, ln1_g_ref, ln1_b_ref,
                    w_fc_ref, b_fc_ref, w_mp_ref, b_mp_ref,
                    out_ref, m_sc, l_sc, acc_sc, *, exp_dtype):
    ki = pl.program_id(2)

    @pl.when(ki == 0)
    def _init():
        m_sc[...] = jnp.full(m_sc.shape, -jnp.inf, m_sc.dtype)
        l_sc[...] = jnp.zeros(l_sc.shape, l_sc.dtype)
        acc_sc[...] = jnp.zeros(acc_sc.shape, acc_sc.dtype)

    q = q_ref[...]                 # (H, tq, dh) bf16 (pre-scaled by 1/sqrt(dh))
    k = k_ref[...]                 # (H, tk, dh) bf16
    v = v_ref[...]                 # (H, tk, dh) bf16

    # batched-over-heads score matmul, f32 accumulation
    s = jnp.einsum('hqd,hkd->hqk', q, k, preferred_element_type=jnp.float32)
    m_prev = m_sc[...]
    m_new = jnp.maximum(m_prev, jnp.max(s, axis=-1, keepdims=True))
    alpha = jnp.exp(m_prev - m_new)                       # small (H, tq, 1), f32
    # Big exp tile in bf16 on chips with a bf16 EUP (v6e/v7x); f32 on v5e.
    p = jnp.exp((s - m_new).astype(exp_dtype))
    l_sc[...] = alpha * l_sc[...] + jnp.sum(p, axis=-1, keepdims=True,
                                            dtype=jnp.float32)
    acc_sc[...] = alpha * acc_sc[...] + jnp.einsum(
        'hqk,hkd->hqd', p.astype(v.dtype), v, preferred_element_type=jnp.float32)
    m_sc[...] = m_new

    @pl.when(ki == pl.num_programs(2) - 1)
    def _finalize():
        # softmax normalization (EUP approx reciprocal)
        o = acc_sc[...] * pl.reciprocal(l_sc[...], approx=True)   # (H, tq, dh) f32
        ob = o.astype(jnp.bfloat16)
        n_head = ob.shape[0]
        # Attention out-projection: per-head (tq,dh)x(dh,C) dots accumulated
        # into one (tq, C) f32 buffer -- no (H, tq, C) f32 temp, no cross-head
        # tensor sum.  TODO(synk): a single (tq,S)x(S,C) matmul (deeper MXU
        # contraction) requires an in-kernel (H,tq,dh)->(tq,S) relayout
        # (pltpu.einshape); per-head dots kept for lowering robustness.
        a = jnp.dot(ob[0], w_ap_ref[0], preferred_element_type=jnp.float32)
        for hh in range(1, n_head):
            a = a + jnp.dot(ob[hh], w_ap_ref[hh],
                            preferred_element_type=jnp.float32)
        a = a + b_ap_ref[...]
        xa = x_ref[...] + a                                        # residual 1
        # MLP branch: elementwise math in f32, bf16 only at MXU inputs
        h1 = _layer_norm(xa, ln1_g_ref[...], ln1_b_ref[...])
        m = jnp.dot(h1.astype(jnp.bfloat16), w_fc_ref[...],
                    preferred_element_type=jnp.float32) + b_fc_ref[...]
        m = m * jax.nn.sigmoid(1.702 * m)                          # quick_gelu
        m = jnp.dot(m.astype(jnp.bfloat16), w_mp_ref[...],
                    preferred_element_type=jnp.float32) + b_mp_ref[...]
        out_ref[...] = (xa + m).astype(out_ref.dtype)              # residual 2


# ------------------------------ helpers ------------------------------------ #
def _pick_tile(n, target):
    """Largest divisor of n that is <= target and sublane-aligned.

    Prefers multiples of 128 (full MXU rows), then multiples of 8; otherwise
    falls back to the full dim, which is always BlockSpec-legal.
    """
    if n <= target:
        return n
    for align in (128, 8):
        for t in range(min(target, n), align - 1, -1):
            if n % t == 0 and t % align == 0:
                return t
    return n


def _padded_bytes(shape, itemsize):
    """Approx VMEM footprint of a block: lane dim padded to 128, sublane to 8."""
    s = list(shape)
    if len(s) >= 1:
        s[-1] = -(-s[-1] // 128) * 128
    if len(s) >= 2:
        s[-2] = -(-s[-2] // 8) * 8
    n = 1
    for d in s:
        n *= int(d)
    return n * itemsize


@functools.lru_cache(maxsize=None)
def _vmem_capacity_bytes():
    try:
        return int(pltpu.get_tpu_info().vmem_capacity_bytes)
    except Exception:
        return 64 * MiB          # conservative (v7x) fallback


@functools.lru_cache(maxsize=None)
def _use_bf16_exp():
    """bf16 EUP exists on v6e / v7x; keep f32 exp on older chips."""
    try:
        kind = jax.devices()[0].device_kind.lower()
    except Exception:
        return False
    return not any(v in kind for v in ("v2", "v3", "v4", "v5"))


def prepare_layer_params(p, n_head):
    """Canonical Jukebox params -> kernel layout (bf16 weights, split QKV)."""
    S3 = p['w_attn'].shape[1]
    S = S3 // 3
    assert S % n_head == 0
    dh = S // n_head
    C = p['w_attn'].shape[0]
    bf = jnp.bfloat16
    r2 = lambda v: v.reshape(1, -1).astype(jnp.float32)
    return dict(
        ln0_g=r2(p['ln0_g']), ln0_b=r2(p['ln0_b']),
        w_q=p['w_attn'][:, 0:S].astype(bf),
        w_k=p['w_attn'][:, S:2 * S].astype(bf),
        w_v=p['w_attn'][:, 2 * S:3 * S].astype(bf),
        b_q=r2(p['b_attn'][0:S]),
        b_k=r2(p['b_attn'][S:2 * S]),
        b_v=r2(p['b_attn'][2 * S:3 * S]),
        w_aproj=p['w_aproj'].reshape(n_head, dh, C).astype(bf),
        b_aproj=r2(p['b_aproj']),
        ln1_g=r2(p['ln1_g']), ln1_b=r2(p['ln1_b']),
        w_fc=p['w_fc'].astype(bf), b_fc=r2(p['b_fc']),
        w_mproj=p['w_mproj'].astype(bf), b_mproj=r2(p['b_mproj']),
    )


def res_attn_block(x, p, n_head, *, row_tile=512, q_tile=256, kv_tile=512):
    """One ResAttnBlock forward: x + attn(ln0(x)) + mlp(ln1(x + attn))."""
    B, L, C = x.shape
    S = p['w_q'].shape[1]
    M = p['w_fc'].shape[1]
    H = n_head
    dh = S // H
    q_scale = 1.0 / math.sqrt(dh)

    cap = _vmem_capacity_bytes()
    budget = int(0.85 * cap)

    # ---------------- pass 1: ln_0 + QKV (token-row tiled) ---------------- #
    def pass1_vmem(tr_):
        resident = 2 * 3 * _padded_bytes((C, S), 2) \
            + 16 * _padded_bytes((1, max(C, S)), 4)
        streamed = 2 * (_padded_bytes((tr_, C), 4)
                        + 3 * _padded_bytes((H, tr_, dh), 2))
        temps = (_padded_bytes((tr_, C), 2) + _padded_bytes((tr_, C), 4)
                 + 3 * _padded_bytes((tr_, S), 4))
        return int(1.3 * (resident + streamed + temps))

    tr = _pick_tile(L, row_tile)
    for _ in range(8):
        if pass1_vmem(tr) <= budget or tr <= 8:
            break
        nt = _pick_tile(L, max(8, tr // 2))
        if nt >= tr:
            break
        tr = nt

    cp1 = dict(dimension_semantics=("parallel", "parallel"))
    if pass1_vmem(tr) > 16 * MiB:
        cp1["vmem_limit_bytes"] = int(min(max(pass1_vmem(tr), 32 * MiB),
                                          0.9 * cap))

    def _const(shape):
        nd = len(shape)
        return pl.BlockSpec(shape, lambda b, i, _nd=nd: (0,) * _nd)
    # TODO(synk): single-buffer the constant weight blocks
    # (pipeline_mode=pl.Buffered(1)) to halve resident-weight VMEM once the
    # API behaviour is validated on all target chips.

    hm_spec = pl.BlockSpec((None, H, tr, dh), lambda b, i: (b, 0, i, 0))
    qkv_struct = jax.ShapeDtypeStruct((B, H, L, dh), jnp.bfloat16)
    q4, k4, v4 = pl.pallas_call(
        functools.partial(ln_qkv_kernel, q_scale=q_scale, n_head=H),
        grid=(B, L // tr),
        in_specs=[
            pl.BlockSpec((None, tr, C), lambda b, i: (b, i, 0)),        # x rows
            _const((1, C)), _const((1, C)),                             # ln_0 g,b
            _const((C, S)), _const((C, S)), _const((C, S)),             # w_q/k/v
            _const((1, S)), _const((1, S)), _const((1, S)),             # b_q/k/v
        ],
        out_specs=[hm_spec] * 3,
        out_shape=[qkv_struct] * 3,
        compiler_params=pltpu.CompilerParams(**cp1),
        cost_estimate=pl.CostEstimate(
            flops=int(6 * B * L * C * S), transcendentals=int(B * L),
            bytes_accessed=int(4 * B * L * C + 6 * C * S + 6 * B * L * S)),
    )(x, p['ln0_g'], p['ln0_b'], p['w_q'], p['w_k'], p['w_v'],
      p['b_q'], p['b_k'], p['b_v'])

    # ----------- pass 2: flash attention + out-proj + ln_1 + MLP ---------- #
    def pass2_vmem(tq_, tk_):
        resident = 2 * (_padded_bytes((H, dh, C), 2) + _padded_bytes((C, M), 2)
                        + _padded_bytes((M, C), 2)) \
            + 12 * _padded_bytes((1, max(C, M)), 4)
        streamed = 2 * (2 * _padded_bytes((tq_, C), 4)
                        + _padded_bytes((H, tq_, dh), 2)
                        + 2 * _padded_bytes((H, tk_, dh), 2))
        scratch = _padded_bytes((H, tq_, dh), 4) \
            + 2 * _padded_bytes((H, tq_, 1), 4)
        temps = (2 * _padded_bytes((H, tq_, tk_), 4)
                 + 3 * _padded_bytes((tq_, C), 4)
                 + 2 * _padded_bytes((tq_, M), 4))
        return int(1.3 * (resident + streamed + scratch + temps))

    tq = _pick_tile(L, q_tile)
    tk = _pick_tile(L, kv_tile)
    for _ in range(12):                 # shrink tiles to the chip's VMEM budget
        if pass2_vmem(tq, tk) <= budget or (tq <= 8 and tk <= 8):
            break
        if tk >= tq:
            nt = _pick_tile(L, max(8, tk // 2))
            if nt < tk:
                tk = nt
                continue
        nq = _pick_tile(L, max(8, tq // 2))
        if nq < tq:
            tq = nq
            continue
        nt = _pick_tile(L, max(8, tk // 2))
        if nt < tk:
            tk = nt
            continue
        break

    cp2 = dict(dimension_semantics=("parallel", "parallel", "arbitrary"))
    need2 = pass2_vmem(tq, tk)
    if need2 > 16 * MiB:
        # TODO(synk): on v7x (64 MiB VMEM) stream w_fc / w_mproj column tiles
        # (extra grid axis or a third pallas_call) instead of keeping the full
        # MLP weights VMEM-resident.
        cp2["vmem_limit_bytes"] = int(min(max(need2, 32 * MiB), 0.9 * cap))

    flops2 = int(4 * B * H * L * L * dh + 2 * B * L * S * C + 4 * B * L * C * M)
    bytes2 = int(8 * B * L * C                       # x read + out write (f32)
                 + 2 * B * L * S                     # q read once (bf16)
                 + 4 * B * L * S * (L // tq)         # k+v re-streamed per q tile
                 + 2 * (S * C + 2 * C * M))          # bf16 weights

    exp_dtype = jnp.bfloat16 if _use_bf16_exp() else jnp.float32

    out = pl.pallas_call(
        functools.partial(attn_mlp_kernel, exp_dtype=exp_dtype),
        grid=(B, L // tq, L // tk),
        in_specs=[
            pl.BlockSpec((None, tq, C), lambda b, qi, ki: (b, qi, 0)),         # x
            pl.BlockSpec((None, H, tq, dh), lambda b, qi, ki: (b, 0, qi, 0)),  # q
            pl.BlockSpec((None, H, tk, dh), lambda b, qi, ki: (b, 0, ki, 0)),  # k
            pl.BlockSpec((None, H, tk, dh), lambda b, qi, ki: (b, 0, ki, 0)),  # v
            pl.BlockSpec((H, dh, C), lambda b, qi, ki: (0, 0, 0)),     # w_aproj
            pl.BlockSpec((1, C), lambda b, qi, ki: (0, 0)),            # b_aproj
            pl.BlockSpec((1, C), lambda b, qi, ki: (0, 0)),            # ln1_g
            pl.BlockSpec((1, C), lambda b, qi, ki: (0, 0)),            # ln1_b
            pl.BlockSpec((C, M), lambda b, qi, ki: (0, 0)),            # w_fc
            pl.BlockSpec((1, M), lambda b, qi, ki: (0, 0)),            # b_fc
            pl.BlockSpec((M, C), lambda b, qi, ki: (0, 0)),            # w_mproj
            pl.BlockSpec((1, C), lambda b, qi, ki: (0, 0)),            # b_mproj
        ],
        out_specs=pl.BlockSpec((None, tq, C), lambda b, qi, ki: (b, qi, 0)),
        out_shape=jax.ShapeDtypeStruct((B, L, C), jnp.float32),
        scratch_shapes=[pltpu.VMEM((H, tq, 1), jnp.float32),     # running max
                        pltpu.VMEM((H, tq, 1), jnp.float32),     # running sum
                        pltpu.VMEM((H, tq, dh), jnp.float32)],   # attn accum
        compiler_params=pltpu.CompilerParams(**cp2),
        cost_estimate=pl.CostEstimate(
            flops=flops2,
            transcendentals=int(B * H * L * L + B * L * M),
            bytes_accessed=bytes2),
    )(x, q4, k4, v4, p['w_aproj'], p['b_aproj'], p['ln1_g'], p['ln1_b'],
      p['w_fc'], p['b_fc'], p['w_mproj'], p['b_mproj'])
    return out


@functools.partial(jax.jit, static_argnames=("n_head",))
def transformer_forward(x, layer_params, n_head):
    """Transformer.forward(x, encoder_kv=None, sample=False, fp16=False)."""
    # TODO(synk): sample=True KV-cache path, record_attn, and attn_order != 0
    # (sparse/block attention variants) are not implemented; this covers the
    # dense attn_order=0 forward with mask=False and dropout=0.
    x = x.astype(jnp.float32)
    for p in layer_params:
        x = res_attn_block(x, p, n_head)
    return x.astype(jnp.float32)   # fp16_out=False -> .float()


# ------------------------- pure-JAX reference ----------------------------- #
def _ref_block(x, p, n_head):
    def ln(h, g, b):
        mu = h.mean(-1, keepdims=True)
        var = ((h - mu) ** 2).mean(-1, keepdims=True)
        return (h - mu) / jnp.sqrt(var + LN_EPS) * g + b

    B, L, C = x.shape
    h = ln(x, p['ln0_g'], p['ln0_b'])
    qkv = h @ p['w_attn'] + p['b_attn']
    S = qkv.shape[-1] // 3
    q, k, v = qkv[..., :S], qkv[..., S:2 * S], qkv[..., 2 * S:]
    dh = S // n_head
    split = lambda t: t.reshape(B, L, n_head, dh).transpose(0, 2, 1, 3)
    q, k, v = split(q), split(k), split(v)
    w = jnp.einsum('bhqd,bhkd->bhqk', q, k) / jnp.sqrt(float(dh))
    w = jax.nn.softmax(w, axis=-1)
    a = jnp.einsum('bhqk,bhkd->bhqd', w, v).transpose(0, 2, 1, 3).reshape(B, L, S)
    a = a @ p['w_aproj'] + p['b_aproj']
    xa = x + a
    h1 = ln(xa, p['ln1_g'], p['ln1_b'])
    m = h1 @ p['w_fc'] + p['b_fc']
    m = m * jax.nn.sigmoid(1.702 * m)
    m = m @ p['w_mproj'] + p['b_mproj']
    return xa + m


def transformer_ref(x, params, n_head):
    for p in params:
        x = _ref_block(x, p, n_head)
    return x


# ---------------------------- parameter init ------------------------------ #
def init_params(key, n_in, n_head, n_depth, m_attn=0.25, m_mlp=1.0, init_scale=1.0):
    S = int(m_attn * n_in)
    M = int(m_mlp * n_in)
    assert S % n_head == 0
    std = 0.02 * init_scale                  # Conv1D: normal(std=0.02*init_scale)
    params = []
    for _ in range(n_depth):
        key, k0, k1, k2, k3 = jax.random.split(key, 5)
        params.append(dict(
            ln0_g=jnp.ones((n_in,), jnp.float32),
            ln0_b=jnp.zeros((n_in,), jnp.float32),
            w_attn=std * jax.random.normal(k0, (n_in, 3 * S), jnp.float32),
            b_attn=jnp.zeros((3 * S,), jnp.float32),
            w_aproj=std * jax.random.normal(k1, (S, n_in), jnp.float32),
            b_aproj=jnp.zeros((n_in,), jnp.float32),
            ln1_g=jnp.ones((n_in,), jnp.float32),
            ln1_b=jnp.zeros((n_in,), jnp.float32),
            w_fc=std * jax.random.normal(k2, (n_in, M), jnp.float32),
            b_fc=jnp.zeros((M,), jnp.float32),
            w_mproj=std * jax.random.normal(k3, (M, n_in), jnp.float32),
            b_mproj=jnp.zeros((n_in,), jnp.float32),
        ))
    return params


if __name__ == "__main__":
    # Transformer(n_in=32, n_ctx=8, n_head=2, n_depth=2) with defaults:
    # attn_order=0 (dense, attn_func=0), mask=False, dropouts=0,
    # m_attn=0.25 -> n_state=8, m_mlp=1.0 -> 32, res_scale=False -> 1.0
    B, L, C, n_head, n_depth = 2, 8, 32, 2, 2

    key = jax.random.PRNGKey(0)
    key, kx, kp = jax.random.split(key, 3)
    x = jax.random.normal(kx, (B, L, C), jnp.float32)
    params = init_params(kp, C, n_head, n_depth)
    prep = [prepare_layer_params(p, n_head) for p in params]

    out = jax.block_until_ready(transformer_forward(x, prep, n_head=n_head))

    ref = jax.block_until_ready(transformer_ref(x, params, n_head))
    np.testing.assert_allclose(np.asarray(out), np.asarray(ref), rtol=2e-2, atol=2e-2)
    assert out.shape == (B, L, C) and out.dtype == jnp.float32

    print("KERNEL_OK")
</pallas_src>

<mosaic_0001>
module attributes {stable_mosaic.version = 11 : i64} {
  func.func @ln_qkv_kernel(%arg0: i32, %arg1: i32, %arg2: memref<1x8x32xf32, #tpu.memory_space<vmem>>, %arg3: memref<1x32xf32, #tpu.memory_space<vmem>>, %arg4: memref<1x32xf32, #tpu.memory_space<vmem>>, %arg5: memref<32x8xbf16, #tpu.memory_space<vmem>>, %arg6: memref<32x8xbf16, #tpu.memory_space<vmem>>, %arg7: memref<32x8xbf16, #tpu.memory_space<vmem>>, %arg8: memref<1x8xf32, #tpu.memory_space<vmem>>, %arg9: memref<1x8xf32, #tpu.memory_space<vmem>>, %arg10: memref<1x8xf32, #tpu.memory_space<vmem>>, %arg11: memref<1x2x8x4xbf16, #tpu.memory_space<vmem>>, %arg12: memref<1x2x8x4xbf16, #tpu.memory_space<vmem>>, %arg13: memref<1x2x8x4xbf16, #tpu.memory_space<vmem>>) attributes {dimension_semantics = [#tpu.dimension_semantics<parallel>, #tpu.dimension_semantics<parallel>], iteration_bounds = array<i64: 2, 1>, scalar_prefetch = 0 : i64, scratch_operands = 0 : i64, tpu.core_type = #tpu.core_type<tc>, window_params = [{transform_indices = @transform_0, window_bounds = array<i64: 1, 8, 32>}, {pipeline_mode = #tpu.pipeline_mode<synchronous>, transform_indices = @transform_1, window_bounds = array<i64: 1, 32>}, {pipeline_mode = #tpu.pipeline_mode<synchronous>, transform_indices = @transform_2, window_bounds = array<i64: 1, 32>}, {pipeline_mode = #tpu.pipeline_mode<synchronous>, transform_indices = @transform_3, window_bounds = array<i64: 32, 8>}, {pipeline_mode = #tpu.pipeline_mode<synchronous>, transform_indices = @transform_4, window_bounds = array<i64: 32, 8>}, {pipeline_mode = #tpu.pipeline_mode<synchronous>, transform_indices = @transform_5, window_bounds = array<i64: 32, 8>}, {pipeline_mode = #tpu.pipeline_mode<synchronous>, transform_indices = @transform_6, window_bounds = array<i64: 1, 8>}, {pipeline_mode = #tpu.pipeline_mode<synchronous>, transform_indices = @transform_7, window_bounds = array<i64: 1, 8>}, {pipeline_mode = #tpu.pipeline_mode<synchronous>, transform_indices = @transform_8, window_bounds = array<i64: 1, 8>}, {transform_indices = @transform_9, window_bounds = array<i64: 1, 2, 8, 4>}, {transform_indices = @transform_10, window_bounds = array<i64: 1, 2, 8, 4>}, {transform_indices = @transform_11, window_bounds = array<i64: 1, 2, 8, 4>}]} {
    %c0 = arith.constant 0 : index
    %c0_0 = arith.constant 0 : index
    %c0_1 = arith.constant 0 : index
    %0 = vector.load %arg2[%c0, %c0_0, %c0_1] : memref<1x8x32xf32, #tpu.memory_space<vmem>>, vector<1x8x32xf32>
    %1 = vector.shape_cast %0 : vector<1x8x32xf32> to vector<8x32xf32>
    %c0_2 = arith.constant 0 : index
    %c0_3 = arith.constant 0 : index
    %2 = vector.load %arg3[%c0_2, %c0_3] : memref<1x32xf32, #tpu.memory_space<vmem>>, vector<1x32xf32>
    %c0_4 = arith.constant 0 : index
    %c0_5 = arith.constant 0 : index
    %3 = vector.load %arg4[%c0_4, %c0_5] : memref<1x32xf32, #tpu.memory_space<vmem>>, vector<1x32xf32>
    %cst = arith.constant dense<0.000000e+00> : vector<8xf32>
    %4 = vector.multi_reduction <add>, %1, %cst [1] : vector<8x32xf32> to vector<8xf32>
    %5 = vector.shape_cast %4 : vector<8xf32> to vector<8x1xf32>
    %cst_6 = arith.constant 3.200000e+01 : f32
    %6 = vector.broadcast %cst_6 : f32 to vector<8x1xf32>
    %7 = arith.divf %5, %6 : vector<8x1xf32>
    %8 = vector.broadcast %7 : vector<8x1xf32> to vector<8x32xf32>
    %9 = arith.subf %1, %8 : vector<8x32xf32>
    %10 = vector.broadcast %7 : vector<8x1xf32> to vector<8x32xf32>
    %11 = arith.subf %1, %10 : vector<8x32xf32>
    %12 = arith.mulf %9, %11 : vector<8x32xf32>
    %cst_7 = arith.constant dense<0.000000e+00> : vector<8xf32>
    %13 = vector.multi_reduction <add>, %12, %cst_7 [1] : vector<8x32xf32> to vector<8xf32>
    %14 = vector.shape_cast %13 : vector<8xf32> to vector<8x1xf32>
    %cst_8 = arith.constant 3.200000e+01 : f32
    %15 = vector.broadcast %cst_8 : f32 to vector<8x1xf32>
    %16 = arith.divf %14, %15 : vector<8x1xf32>
    %17 = vector.broadcast %7 : vector<8x1xf32> to vector<8x32xf32>
    %18 = arith.subf %1, %17 : vector<8x32xf32>
    %cst_9 = arith.constant 9.99999974E-6 : f32
    %19 = vector.broadcast %cst_9 : f32 to vector<8x1xf32>
    %20 = arith.addf %16, %19 : vector<8x1xf32>
    %21 = math.rsqrt %20 : vector<8x1xf32>
    %22 = vector.broadcast %21 : vector<8x1xf32> to vector<8x32xf32>
    %23 = arith.mulf %18, %22 : vector<8x32xf32>
    %24 = vector.broadcast %2 : vector<1x32xf32> to vector<8x32xf32>
    %25 = arith.mulf %23, %24 : vector<8x32xf32>
    %26 = vector.broadcast %3 : vector<1x32xf32> to vector<8x32xf32>
    %27 = arith.addf %25, %26 : vector<8x32xf32>
    %28 = arith.truncf %27 : vector<8x32xf32> to vector<8x32xbf16>
    %c0_10 = arith.constant 0 : index
    %c0_11 = arith.constant 0 : index
    %29 = vector.load %arg5[%c0_10, %c0_11] : memref<32x8xbf16, #tpu.memory_space<vmem>>, vector<32x8xbf16>
    %cst_12 = arith.constant dense<0.000000e+00> : vector<8x8xf32>
    %30 = tpu.matmul %28, %29, %cst_12 {dimension_numbers = #tpu.dot_dimension_numbers<[1], [0], [0], [1], [0, 0, 1, 1], [], []>} : vector<8x32xbf16>, vector<32x8xbf16>, vector<8x8xf32> -> vector<8x8xf32>
    %c0_13 = arith.constant 0 : index
    %c0_14 = arith.constant 0 : index
    %31 = vector.load %arg8[%c0_13, %c0_14] : memref<1x8xf32, #tpu.memory_space<vmem>>, vector<1x8xf32>
    %32 = vector.broadcast %31 : vector<1x8xf32> to vector<8x8xf32>
    %33 = arith.addf %30, %32 : vector<8x8xf32>
    %c0_15 = arith.constant 0 : index
    %c0_16 = arith.constant 0 : index
    %34 = vector.load %arg6[%c0_15, %c0_16] : memref<32x8xbf16, #tpu.memory_space<vmem>>, vector<32x8xbf16>
    %cst_17 = arith.constant dense<0.000000e+00> : vector<8x8xf32>
    %35 = tpu.matmul %28, %34, %cst_17 {dimension_numbers = #tpu.dot_dimension_numbers<[1], [0], [0], [1], [0, 0, 1, 1], [], []>} : vector<8x32xbf16>, vector<32x8xbf16>, vector<8x8xf32> -> vector<8x8xf32>
    %c0_18 = arith.constant 0 : index
    %c0_19 = arith.constant 0 : index
    %36 = vector.load %arg9[%c0_18, %c0_19] : memref<1x8xf32, #tpu.memory_space<vmem>>, vector<1x8xf32>
    %37 = vector.broadcast %36 : vector<1x8xf32> to vector<8x8xf32>
    %38 = arith.addf %35, %37 : vector<8x8xf32>
    %c0_20 = arith.constant 0 : index
    %c0_21 = arith.constant 0 : index
    %39 = vector.load %arg7[%c0_20, %c0_21] : memref<32x8xbf16, #tpu.memory_space<vmem>>, vector<32x8xbf16>
    %cst_22 = arith.constant dense<0.000000e+00> : vector<8x8xf32>
    %40 = tpu.matmul %28, %39, %cst_22 {dimension_numbers = #tpu.dot_dimension_numbers<[1], [0], [0], [1], [0, 0, 1, 1], [], []>} : vector<8x32xbf16>, vector<32x8xbf16>, vector<8x8xf32> -> vector<8x8xf32>
    %c0_23 = arith.constant 0 : index
    %c0_24 = arith.constant 0 : index
    %41 = vector.load %arg10[%c0_23, %c0_24] : memref<1x8xf32, #tpu.memory_space<vmem>>, vector<1x8xf32>
    %42 = vector.broadcast %41 : vector<1x8xf32> to vector<8x8xf32>
    %43 = arith.addf %40, %42 : vector<8x8xf32>
    %cst_25 = arith.constant 5.000000e-01 : f32
    %44 = vector.broadcast %cst_25 : f32 to vector<8x8xf32>
    %45 = arith.mulf %33, %44 : vector<8x8xf32>
    %46 = vector.extract_strided_slice %45 {offsets = [0, 0], sizes = [8, 4], strides = [1, 1]} : vector<8x8xf32> to vector<8x4xf32>
    %47 = arith.truncf %46 : vector<8x4xf32> to vector<8x4xbf16>
    %c0_26 = arith.constant 0 : index
    %c0_27 = arith.constant 0 : index
    %c0_28 = arith.constant 0 : index
    %c0_29 = arith.constant 0 : index
    %48 = vector.load %arg11[%c0_26, %c0_27, %c0_28, %c0_29] : memref<1x2x8x4xbf16, #tpu.memory_space<vmem>>, vector<1x1x8x4xbf16>
    %49 = vector.shape_cast %48 : vector<1x1x8x4xbf16> to vector<8x4xbf16>
    %50 = vector.shape_cast %47 : vector<8x4xbf16> to vector<1x1x8x4xbf16>
    tpu.vector_store %arg11[%c0_26, %c0_27, %c0_28, %c0_29], %50 {strides = array<i32>} : memref<1x2x8x4xbf16, #tpu.memory_space<vmem>>, vector<1x1x8x4xbf16>,
    %51 = vector.extract_strided_slice %38 {offsets = [0, 0], sizes = [8, 4], strides = [1, 1]} : vector<8x8xf32> to vector<8x4xf32>
    %52 = arith.truncf %51 : vector<8x4xf32> to vector<8x4xbf16>
    %c0_30 = arith.constant 0 : index
    %c0_31 = arith.constant 0 : index
    %c0_32 = arith.constant 0 : index
    %c0_33 = arith.constant 0 : index
    %53 = vector.load %arg12[%c0_30, %c0_31, %c0_32, %c0_33] : memref<1x2x8x4xbf16, #tpu.memory_space<vmem>>, vector<1x1x8x4xbf16>
    %54 = vector.shape_cast %53 : vector<1x1x8x4xbf16> to vector<8x4xbf16>
    %55 = vector.shape_cast %52 : vector<8x4xbf16> to vector<1x1x8x4xbf16>
    tpu.vector_store %arg12[%c0_30, %c0_31, %c0_32, %c0_33], %55 {strides = array<i32>} : memref<1x2x8x4xbf16, #tpu.memory_space<vmem>>, vector<1x1x8x4xbf16>,
    %56 = vector.extract_strided_slice %43 {offsets = [0, 0], sizes = [8, 4], strides = [1, 1]} : vector<8x8xf32> to vector<8x4xf32>
    %57 = arith.truncf %56 : vector<8x4xf32> to vector<8x4xbf16>
    %c0_34 = arith.constant 0 : index
    %c0_35 = arith.constant 0 : index
    %c0_36 = arith.constant 0 : index
    %c0_37 = arith.constant 0 : index
    %58 = vector.load %arg13[%c0_34, %c0_35, %c0_36, %c0_37] : memref<1x2x8x4xbf16, #tpu.memory_space<vmem>>, vector<1x1x8x4xbf16>
    %59 = vector.shape_cast %58 : vector<1x1x8x4xbf16> to vector<8x4xbf16>
    %60 = vector.shape_cast %57 : vector<8x4xbf16> to vector<1x1x8x4xbf16>
    tpu.vector_store %arg13[%c0_34, %c0_35, %c0_36, %c0_37], %60 {strides = array<i32>} : memref<1x2x8x4xbf16, #tpu.memory_space<vmem>>, vector<1x1x8x4xbf16>,
    %61 = vector.extract_strided_slice %45 {offsets = [0, 4], sizes = [8, 4], strides = [1, 1]} : vector<8x8xf32> to vector<8x4xf32>
    %62 = arith.truncf %61 : vector<8x4xf32> to vector<8x4xbf16>
    %c0_38 = arith.constant 0 : index
    %c1 = arith.constant 1 : index
    %c0_39 = arith.constant 0 : index
    %c0_40 = arith.constant 0 : index
    %63 = vector.load %arg11[%c0_38, %c1, %c0_39, %c0_40] : memref<1x2x8x4xbf16, #tpu.memory_space<vmem>>, vector<1x1x8x4xbf16>
    %64 = vector.shape_cast %63 : vector<1x1x8x4xbf16> to vector<8x4xbf16>
    %65 = vector.shape_cast %62 : vector<8x4xbf16> to vector<1x1x8x4xbf16>
    tpu.vector_store %arg11[%c0_38, %c1, %c0_39, %c0_40], %65 {strides = array<i32>} : memref<1x2x8x4xbf16, #tpu.memory_space<vmem>>, vector<1x1x8x4xbf16>,
    %66 = vector.extract_strided_slice %38 {offsets = [0, 4], sizes = [8, 4], strides = [1, 1]} : vector<8x8xf32> to vector<8x4xf32>
    %67 = arith.truncf %66 : vector<8x4xf32> to vector<8x4xbf16>
    %c0_41 = arith.constant 0 : index
    %c1_42 = arith.constant 1 : index
    %c0_43 = arith.constant 0 : index
    %c0_44 = arith.constant 0 : index
    %68 = vector.load %arg12[%c0_41, %c1_42, %c0_43, %c0_44] : memref<1x2x8x4xbf16, #tpu.memory_space<vmem>>, vector<1x1x8x4xbf16>
    %69 = vector.shape_cast %68 : vector<1x1x8x4xbf16> to vector<8x4xbf16>
    %70 = vector.shape_cast %67 : vector<8x4xbf16> to vector<1x1x8x4xbf16>
    tpu.vector_store %arg12[%c0_41, %c1_42, %c0_43, %c0_44], %70 {strides = array<i32>} : memref<1x2x8x4xbf16, #tpu.memory_space<vmem>>, vector<1x1x8x4xbf16>,
    %71 = vector.extract_strided_slice %43 {offsets = [0, 4], sizes = [8, 4], strides = [1, 1]} : vector<8x8xf32> to vector<8x4xf32>
    %72 = arith.truncf %71 : vector<8x4xf32> to vector<8x4xbf16>
    %c0_45 = arith.constant 0 : index
    %c1_46 = arith.constant 1 : index
    %c0_47 = arith.constant 0 : index
    %c0_48 = arith.constant 0 : index
    %73 = vector.load %arg13[%c0_45, %c1_46, %c0_47, %c0_48] : memref<1x2x8x4xbf16, #tpu.memory_space<vmem>>, vector<1x1x8x4xbf16>
    %74 = vector.shape_cast %73 : vector<1x1x8x4xbf16> to vector<8x4xbf16>
    %75 = vector.shape_cast %72 : vector<8x4xbf16> to vector<1x1x8x4xbf16>
    tpu.vector_store %arg13[%c0_45, %c1_46, %c0_47, %c0_48], %75 {strides = array<i32>} : memref<1x2x8x4xbf16, #tpu.memory_space<vmem>>, vector<1x1x8x4xbf16>,
    return
  }
  func.func @transform_0(%arg0: i32, %arg1: i32) -> (i32, i32, i32) {
    %c0_i32 = arith.constant 0 : i32
    %c0_i32_0 = arith.constant 0 : i32
    return %arg0, %arg1, %c0_i32 : i32, i32, i32
  }
  func.func @transform_1(%arg0: i32, %arg1: i32) -> (i32, i32) {
    %c0_i32 = arith.constant 0 : i32
    %c0_i32_0 = arith.constant 0 : i32
    %c0_i32_1 = arith.constant 0 : i32
    return %c0_i32, %c0_i32_0 : i32, i32
  }
  func.func @transform_2(%arg0: i32, %arg1: i32) -> (i32, i32) {
    %c0_i32 = arith.constant 0 : i32
    %c0_i32_0 = arith.constant 0 : i32
    %c0_i32_1 = arith.constant 0 : i32
    return %c0_i32, %c0_i32_0 : i32, i32
  }
  func.func @transform_3(%arg0: i32, %arg1: i32) -> (i32, i32) {
    %c0_i32 = arith.constant 0 : i32
    %c0_i32_0 = arith.constant 0 : i32
    %c0_i32_1 = arith.constant 0 : i32
    return %c0_i32, %c0_i32_0 : i32, i32
  }
  func.func @transform_4(%arg0: i32, %arg1: i32) -> (i32, i32) {
    %c0_i32 = arith.constant 0 : i32
    %c0_i32_0 = arith.constant 0 : i32
    %c0_i32_1 = arith.constant 0 : i32
    return %c0_i32, %c0_i32_0 : i32, i32
  }
  func.func @transform_5(%arg0: i32, %arg1: i32) -> (i32, i32) {
    %c0_i32 = arith.constant 0 : i32
    %c0_i32_0 = arith.constant 0 : i32
    %c0_i32_1 = arith.constant 0 : i32
    return %c0_i32, %c0_i32_0 : i32, i32
  }
  func.func @transform_6(%arg0: i32, %arg1: i32) -> (i32, i32) {
    %c0_i32 = arith.constant 0 : i32
    %c0_i32_0 = arith.constant 0 : i32
    %c0_i32_1 = arith.constant 0 : i32
    return %c0_i32, %c0_i32_0 : i32, i32
  }
  func.func @transform_7(%arg0: i32, %arg1: i32) -> (i32, i32) {
    %c0_i32 = arith.constant 0 : i32
    %c0_i32_0 = arith.constant 0 : i32
    %c0_i32_1 = arith.constant 0 : i32
    return %c0_i32, %c0_i32_0 : i32, i32
  }
  func.func @transform_8(%arg0: i32, %arg1: i32) -> (i32, i32) {
    %c0_i32 = arith.constant 0 : i32
    %c0_i32_0 = arith.constant 0 : i32
    %c0_i32_1 = arith.constant 0 : i32
    return %c0_i32, %c0_i32_0 : i32, i32
  }
  func.func @transform_9(%arg0: i32, %arg1: i32) -> (i32, i32, i32, i32) {
    %c0_i32 = arith.constant 0 : i32
    %c0_i32_0 = arith.constant 0 : i32
    %c0_i32_1 = arith.constant 0 : i32
    return %arg0, %c0_i32, %arg1, %c0_i32_0 : i32, i32, i32, i32
  }
  func.func @transform_10(%arg0: i32, %arg1: i32) -> (i32, i32, i32, i32) {
    %c0_i32 = arith.constant 0 : i32
    %c0_i32_0 = arith.constant 0 : i32
    %c0_i32_1 = arith.constant 0 : i32
    return %arg0, %c0_i32, %arg1, %c0_i32_0 : i32, i32, i32, i32
  }
  func.func @transform_11(%arg0: i32, %arg1: i32) -> (i32, i32, i32, i32) {
    %c0_i32 = arith.constant 0 : i32
    %c0_i32_0 = arith.constant 0 : i32
    %c0_i32_1 = arith.constant 0 : i32
    return %arg0, %c0_i32, %arg1, %c0_i32_0 : i32, i32, i32, i32
  }
}

module attributes {stable_mosaic.version = 11 : i64} {
  func.func @attn_mlp_kernel(%arg0: i32, %arg1: i32, %arg2: i32, %arg3: memref<1x8x32xf32, #tpu.memory_space<vmem>>, %arg4: memref<1x2x8x4xbf16, #tpu.memory_space<vmem>>, %arg5: memref<1x2x8x4xbf16, #tpu.memory_space<vmem>>, %arg6: memref<1x2x8x4xbf16, #tpu.memory_space<vmem>>, %arg7: memref<2x4x32xbf16, #tpu.memory_space<vmem>>, %arg8: memref<1x32xf32, #tpu.memory_space<vmem>>, %arg9: memref<1x32xf32, #tpu.memory_space<vmem>>, %arg10: memref<1x32xf32, #tpu.memory_space<vmem>>, %arg11: memref<32x32xbf16, #tpu.memory_space<vmem>>, %arg12: memref<1x32xf32, #tpu.memory_space<vmem>>, %arg13: memref<32x32xbf16, #tpu.memory_space<vmem>>, %arg14: memref<1x32xf32, #tpu.memory_space<vmem>>, %arg15: memref<1x8x32xf32, #tpu.memory_space<vmem>>, %arg16: memref<2x8x1xf32, #tpu.memory_space<vmem>>, %arg17: memref<2x8x1xf32, #tpu.memory_space<vmem>>, %arg18: memref<2x8x4xf32, #tpu.memory_space<vmem>>) attributes {dimension_semantics = [#tpu.dimension_semantics<parallel>, #tpu.dimension_semantics<parallel>, #tpu.dimension_semantics<arbitrary>], iteration_bounds = array<i64: 2, 1, 1>, scalar_prefetch = 0 : i64, scratch_operands = 3 : i64, tpu.core_type = #tpu.core_type<tc>, window_params = [{transform_indices = @transform_0, window_bounds = array<i64: 1, 8, 32>}, {transform_indices = @transform_1, window_bounds = array<i64: 1, 2, 8, 4>}, {transform_indices = @transform_2, window_bounds = array<i64: 1, 2, 8, 4>}, {transform_indices = @transform_3, window_bounds = array<i64: 1, 2, 8, 4>}, {pipeline_mode = #tpu.pipeline_mode<synchronous>, transform_indices = @transform_4, window_bounds = array<i64: 2, 4, 32>}, {pipeline_mode = #tpu.pipeline_mode<synchronous>, transform_indices = @transform_5, window_bounds = array<i64: 1, 32>}, {pipeline_mode = #tpu.pipeline_mode<synchronous>, transform_indices = @transform_6, window_bounds = array<i64: 1, 32>}, {pipeline_mode = #tpu.pipeline_mode<synchronous>, transform_indices = @transform_7, window_bounds = array<i64: 1, 32>}, {pipeline_mode = #tpu.pipeline_mode<synchronous>, transform_indices = @transform_8, window_bounds = array<i64: 32, 32>}, {pipeline_mode = #tpu.pipeline_mode<synchronous>, transform_indices = @transform_9, window_bounds = array<i64: 1, 32>}, {pipeline_mode = #tpu.pipeline_mode<synchronous>, transform_indices = @transform_10, window_bounds = array<i64: 32, 32>}, {pipeline_mode = #tpu.pipeline_mode<synchronous>, transform_indices = @transform_11, window_bounds = array<i64: 1, 32>}, {transform_indices = @transform_12, window_bounds = array<i64: 1, 8, 32>}]} {
    %c0_i32 = arith.constant 0 : i32
    %0 = arith.cmpi eq, %arg2, %c0_i32 : i32
    %1 = arith.extui %0 : i1 to i32
    %c0_i32_0 = arith.constant 0 : i32
    %2 = arith.cmpi ne, %1, %c0_i32_0 : i32
    scf.if %2 {
      %cst_35 = arith.constant 0xFF800000 : f32
      %37 = vector.broadcast %cst_35 : f32 to vector<2x8x1xf32>
      %c0_36 = arith.constant 0 : index
      %c0_37 = arith.constant 0 : index
      %c0_38 = arith.constant 0 : index
      %38 = vector.load %arg16[%c0_36, %c0_37, %c0_38] : memref<2x8x1xf32, #tpu.memory_space<vmem>>, vector<2x8x1xf32>
      tpu.vector_store %arg16[%c0_36, %c0_37, %c0_38], %37 {strides = array<i32>} : memref<2x8x1xf32, #tpu.memory_space<vmem>>, vector<2x8x1xf32>,
      %cst_39 = arith.constant 0.000000e+00 : f32
      %39 = vector.broadcast %cst_39 : f32 to vector<2x8x1xf32>
      %c0_40 = arith.constant 0 : index
      %c0_41 = arith.constant 0 : index
      %c0_42 = arith.constant 0 : index
      %40 = vector.load %arg17[%c0_40, %c0_41, %c0_42] : memref<2x8x1xf32, #tpu.memory_space<vmem>>, vector<2x8x1xf32>
      tpu.vector_store %arg17[%c0_40, %c0_41, %c0_42], %39 {strides = array<i32>} : memref<2x8x1xf32, #tpu.memory_space<vmem>>, vector<2x8x1xf32>,
      %cst_43 = arith.constant 0.000000e+00 : f32
      %41 = vector.broadcast %cst_43 : f32 to vector<2x8x4xf32>
      %c0_44 = arith.constant 0 : index
      %c0_45 = arith.constant 0 : index
      %c0_46 = arith.constant 0 : index
      %42 = vector.load %arg18[%c0_44, %c0_45, %c0_46] : memref<2x8x4xf32, #tpu.memory_space<vmem>>, vector<2x8x4xf32>
      tpu.vector_store %arg18[%c0_44, %c0_45, %c0_46], %41 {strides = array<i32>} : memref<2x8x4xf32, #tpu.memory_space<vmem>>, vector<2x8x4xf32>,
    } else {
    }
    %c0 = arith.constant 0 : index
    %c0_1 = arith.constant 0 : index
    %c0_2 = arith.constant 0 : index
    %c0_3 = arith.constant 0 : index
    %3 = vector.load %arg4[%c0, %c0_1, %c0_2, %c0_3] : memref<1x2x8x4xbf16, #tpu.memory_space<vmem>>, vector<1x2x8x4xbf16>
    %4 = vector.shape_cast %3 : vector<1x2x8x4xbf16> to vector<2x8x4xbf16>
    %c0_4 = arith.constant 0 : index
    %c0_5 = arith.constant 0 : index
    %c0_6 = arith.constant 0 : index
    %c0_7 = arith.constant 0 : index
    %5 = vector.load %arg5[%c0_4, %c0_5, %c0_6, %c0_7] : memref<1x2x8x4xbf16, #tpu.memory_space<vmem>>, vector<1x2x8x4xbf16>
    %6 = vector.shape_cast %5 : vector<1x2x8x4xbf16> to vector<2x8x4xbf16>
    %c0_8 = arith.constant 0 : index
    %c0_9 = arith.constant 0 : index
    %c0_10 = arith.constant 0 : index
    %c0_11 = arith.constant 0 : index
    %7 = vector.load %arg6[%c0_8, %c0_9, %c0_10, %c0_11] : memref<1x2x8x4xbf16, #tpu.memory_space<vmem>>, vector<1x2x8x4xbf16>
    %8 = vector.shape_cast %7 : vector<1x2x8x4xbf16> to vector<2x8x4xbf16>
    "tpu.trace_start"() <{level = 10 : i32, message = "hqd,hkd->hqk"}> : () -> ()
    %cst = arith.constant dense<0.000000e+00> : vector<2x8x8xf32>
    %9 = tpu.matmul %4, %6, %cst {dimension_numbers = #tpu.dot_dimension_numbers<[2], [2], [1], [1], [0, 0, 0, 1, 1, 1], [0], [0]>} : vector<2x8x4xbf16>, vector<2x8x4xbf16>, vector<2x8x8xf32> -> vector<2x8x8xf32>
    "tpu.trace_stop"() : () -> ()
    %c0_12 = arith.constant 0 : index
    %c0_13 = arith.constant 0 : index
    %c0_14 = arith.constant 0 : index
    %10 = vector.load %arg16[%c0_12, %c0_13, %c0_14] : memref<2x8x1xf32, #tpu.memory_space<vmem>>, vector<2x8x1xf32>
    %cst_15 = arith.constant dense<0xFF800000> : vector<2x8xf32>
    %11 = vector.multi_reduction <maximumf>, %9, %cst_15 [2] : vector<2x8x8xf32> to vector<2x8xf32>
    %12 = vector.shape_cast %11 : vector<2x8xf32> to vector<2x8x1xf32>
    %13 = arith.maximumf %10, %12 : vector<2x8x1xf32>
    %14 = arith.subf %10, %13 : vector<2x8x1xf32>
    %15 = math.exp %14 : vector<2x8x1xf32>
    %16 = vector.broadcast %13 : vector<2x8x1xf32> to vector<2x8x8xf32>
    %17 = arith.subf %9, %16 : vector<2x8x8xf32>
    %18 = arith.truncf %17 : vector<2x8x8xf32> to vector<2x8x8xbf16>
    %19 = math.exp %18 : vector<2x8x8xbf16>
    %c0_16 = arith.constant 0 : index
    %c0_17 = arith.constant 0 : index
    %c0_18 = arith.constant 0 : index
    %20 = vector.load %arg17[%c0_16, %c0_17, %c0_18] : memref<2x8x1xf32, #tpu.memory_space<vmem>>, vector<2x8x1xf32>
    %21 = arith.mulf %15, %20 : vector<2x8x1xf32>
    %22 = arith.extf %19 : vector<2x8x8xbf16> to vector<2x8x8xf32>
    %cst_19 = arith.constant dense<0.000000e+00> : vector<2x8xf32>
    %23 = vector.multi_reduction <add>, %22, %cst_19 [2] : vector<2x8x8xf32> to vector<2x8xf32>
    %24 = vector.shape_cast %23 : vector<2x8xf32> to vector<2x8x1xf32>
    %25 = arith.addf %21, %24 : vector<2x8x1xf32>
    %c0_20 = arith.constant 0 : index
    %c0_21 = arith.constant 0 : index
    %c0_22 = arith.constant 0 : index
    %26 = vector.load %arg17[%c0_20, %c0_21, %c0_22] : memref<2x8x1xf32, #tpu.memory_space<vmem>>, vector<2x8x1xf32>
    tpu.vector_store %arg17[%c0_20, %c0_21, %c0_22], %25 {strides = array<i32>} : memref<2x8x1xf32, #tpu.memory_space<vmem>>, vector<2x8x1xf32>,
    %c0_23 = arith.constant 0 : index
    %c0_24 = arith.constant 0 : index
    %c0_25 = arith.constant 0 : index
    %27 = vector.load %arg18[%c0_23, %c0_24, %c0_25] : memref<2x8x4xf32, #tpu.memory_space<vmem>>, vector<2x8x4xf32>
    %28 = vector.broadcast %15 : vector<2x8x1xf32> to vector<2x8x4xf32>
    %29 = arith.mulf %28, %27 : vector<2x8x4xf32>
    "tpu.trace_start"() <{level = 10 : i32, message = "hqk,hkd->hqd"}> : () -> ()
    %cst_26 = arith.constant dense<0.000000e+00> : vector<2x8x4xf32>
    %30 = tpu.matmul %19, %8, %cst_26 {dimension_numbers = #tpu.dot_dimension_numbers<[2], [1], [1], [2], [0, 0, 0, 1, 1, 2], [0], [0]>} : vector<2x8x8xbf16>, vector<2x8x4xbf16>, vector<2x8x4xf32> -> vector<2x8x4xf32>
    "tpu.trace_stop"() : () -> ()
    %31 = arith.addf %29, %30 : vector<2x8x4xf32>
    %c0_27 = arith.constant 0 : index
    %c0_28 = arith.constant 0 : index
    %c0_29 = arith.constant 0 : index
    %32 = vector.load %arg18[%c0_27, %c0_28, %c0_29] : memref<2x8x4xf32, #tpu.memory_space<vmem>>, vector<2x8x4xf32>
    tpu.vector_store %arg18[%c0_27, %c0_28, %c0_29], %31 {strides = array<i32>} : memref<2x8x4xf32, #tpu.memory_space<vmem>>, vector<2x8x4xf32>,
    %c0_30 = arith.constant 0 : index
    %c0_31 = arith.constant 0 : index
    %c0_32 = arith.constant 0 : index
    %33 = vector.load %arg16[%c0_30, %c0_31, %c0_32] : memref<2x8x1xf32, #tpu.memory_space<vmem>>, vector<2x8x1xf32>
    tpu.vector_store %arg16[%c0_30, %c0_31, %c0_32], %13 {strides = array<i32>} : memref<2x8x1xf32, #tpu.memory_space<vmem>>, vector<2x8x1xf32>,
    %c0_i32_33 = arith.constant 0 : i32
    %34 = arith.cmpi eq, %arg2, %c0_i32_33 : i32
    %35 = arith.extui %34 : i1 to i32
    %c0_i32_34 = arith.constant 0 : i32
    %36 = arith.cmpi ne, %35, %c0_i32_34 : i32
    scf.if %36 {
      %c0_35 = arith.constant 0 : index
      %c0_36 = arith.constant 0 : index
      %c0_37 = arith.constant 0 : index
      %37 = vector.load %arg18[%c0_35, %c0_36, %c0_37] : memref<2x8x4xf32, #tpu.memory_space<vmem>>, vector<2x8x4xf32>
      %c0_38 = arith.constant 0 : index
      %c0_39 = arith.constant 0 : index
      %c0_40 = arith.constant 0 : index
      %38 = vector.load %arg17[%c0_38, %c0_39, %c0_40] : memref<2x8x1xf32, #tpu.memory_space<vmem>>, vector<2x8x1xf32>
      %39 = tpu.reciprocal %38 {approx = true} : vector<2x8x1xf32> -> vector<2x8x1xf32>
      %40 = vector.broadcast %39 : vector<2x8x1xf32> to vector<2x8x4xf32>
      %41 = arith.mulf %37, %40 : vector<2x8x4xf32>
      %42 = arith.truncf %41 : vector<2x8x4xf32> to vector<2x8x4xbf16>
      %43 = vector.extract_strided_slice %42 {offsets = [0, 0, 0], sizes = [1, 8, 4], strides = [1, 1, 1]} : vector<2x8x4xbf16> to vector<1x8x4xbf16>
      %44 = vector.shape_cast %43 : vector<1x8x4xbf16> to vector<8x4xbf16>
      %c0_41 = arith.constant 0 : index
      %c0_42 = arith.constant 0 : index
      %c0_43 = arith.constant 0 : index
      %45 = vector.load %arg7[%c0_41, %c0_42, %c0_43] : memref<2x4x32xbf16, #tpu.memory_space<vmem>>, vector<1x4x32xbf16>
      %46 = vector.shape_cast %45 : vector<1x4x32xbf16> to vector<4x32xbf16>
      %cst_44 = arith.constant dense<0.000000e+00> : vector<8x32xf32>
      %47 = tpu.matmul %44, %46, %cst_44 {dimension_numbers = #tpu.dot_dimension_numbers<[1], [0], [0], [1], [0, 0, 1, 1], [], []>} : vector<8x4xbf16>, vector<4x32xbf16>, vector<8x32xf32> -> vector<8x32xf32>
      %48 = vector.extract_strided_slice %42 {offsets = [1, 0, 0], sizes = [1, 8, 4], strides = [1, 1, 1]} : vector<2x8x4xbf16> to vector<1x8x4xbf16>
      %49 = vector.shape_cast %48 : vector<1x8x4xbf16> to vector<8x4xbf16>
      %c1 = arith.constant 1 : index
      %c0_45 = arith.constant 0 : index
      %c0_46 = arith.constant 0 : index
      %50 = vector.load %arg7[%c1, %c0_45, %c0_46] : memref<2x4x32xbf16, #tpu.memory_space<vmem>>, vector<1x4x32xbf16>
      %51 = vector.shape_cast %50 : vector<1x4x32xbf16> to vector<4x32xbf16>
      %cst_47 = arith.constant dense<0.000000e+00> : vector<8x32xf32>
      %52 = tpu.matmul %49, %51, %cst_47 {dimension_numbers = #tpu.dot_dimension_numbers<[1], [0], [0], [1], [0, 0, 1, 1], [], []>} : vector<8x4xbf16>, vector<4x32xbf16>, vector<8x32xf32> -> vector<8x32xf32>
      %53 = arith.addf %47, %52 : vector<8x32xf32>
      %c0_48 = arith.constant 0 : index
      %c0_49 = arith.constant 0 : index
      %54 = vector.load %arg8[%c0_48, %c0_49] : memref<1x32xf32, #tpu.memory_space<vmem>>, vector<1x32xf32>
      %55 = vector.broadcast %54 : vector<1x32xf32> to vector<8x32xf32>
      %56 = arith.addf %53, %55 : vector<8x32xf32>
      %c0_50 = arith.constant 0 : index
      %c0_51 = arith.constant 0 : index
      %c0_52 = arith.constant 0 : index
      %57 = vector.load %arg3[%c0_50, %c0_51, %c0_52] : memref<1x8x32xf32, #tpu.memory_space<vmem>>, vector<1x8x32xf32>
      %58 = vector.shape_cast %57 : vector<1x8x32xf32> to vector<8x32xf32>
      %59 = arith.addf %58, %56 : vector<8x32xf32>
      %c0_53 = arith.constant 0 : index
      %c0_54 = arith.constant 0 : index
      %60 = vector.load %arg9[%c0_53, %c0_54] : memref<1x32xf32, #tpu.memory_space<vmem>>, vector<1x32xf32>
      %c0_55 = arith.constant 0 : index
      %c0_56 = arith.constant 0 : index
      %61 = vector.load %arg10[%c0_55, %c0_56] : memref<1x32xf32, #tpu.memory_space<vmem>>, vector<1x32xf32>
      %cst_57 = arith.constant dense<0.000000e+00> : vector<8xf32>
      %62 = vector.multi_reduction <add>, %59, %cst_57 [1] : vector<8x32xf32> to vector<8xf32>
      %63 = vector.shape_cast %62 : vector<8xf32> to vector<8x1xf32>
      %cst_58 = arith.constant 3.200000e+01 : f32
      %64 = vector.broadcast %cst_58 : f32 to vector<8x1xf32>
      %65 = arith.divf %63, %64 : vector<8x1xf32>
      %66 = vector.broadcast %65 : vector<8x1xf32> to vector<8x32xf32>
      %67 = arith.subf %59, %66 : vector<8x32xf32>
      %68 = vector.broadcast %65 : vector<8x1xf32> to vector<8x32xf32>
      %69 = arith.subf %59, %68 : vector<8x32xf32>
      %70 = arith.mulf %67, %69 : vector<8x32xf32>
      %cst_59 = arith.constant dense<0.000000e+00> : vector<8xf32>
      %71 = vector.multi_reduction <add>, %70, %cst_59 [1] : vector<8x32xf32> to vector<8xf32>
      %72 = vector.shape_cast %71 : vector<8xf32> to vector<8x1xf32>
      %cst_60 = arith.constant 3.200000e+01 : f32
      %73 = vector.broadcast %cst_60 : f32 to vector<8x1xf32>
      %74 = arith.divf %72, %73 : vector<8x1xf32>
      %75 = vector.broadcast %65 : vector<8x1xf32> to vector<8x32xf32>
      %76 = arith.subf %59, %75 : vector<8x32xf32>
      %cst_61 = arith.constant 9.99999974E-6 : f32
      %77 = vector.broadcast %cst_61 : f32 to vector<8x1xf32>
      %78 = arith.addf %74, %77 : vector<8x1xf32>
      %79 = math.rsqrt %78 : vector<8x1xf32>
      %80 = vector.broadcast %79 : vector<8x1xf32> to vector<8x32xf32>
      %81 = arith.mulf %76, %80 : vector<8x32xf32>
      %82 = vector.broadcast %60 : vector<1x32xf32> to vector<8x32xf32>
      %83 = arith.mulf %81, %82 : vector<8x32xf32>
      %84 = vector.broadcast %61 : vector<1x32xf32> to vector<8x32xf32>
      %85 = arith.addf %83, %84 : vector<8x32xf32>
      %86 = arith.truncf %85 : vector<8x32xf32> to vector<8x32xbf16>
      %c0_62 = arith.constant 0 : index
      %c0_63 = arith.constant 0 : index
      %87 = vector.load %arg11[%c0_62, %c0_63] : memref<32x32xbf16, #tpu.memory_space<vmem>>, vector<32x32xbf16>
      %cst_64 = arith.constant dense<0.000000e+00> : vector<8x32xf32>
      %88 = tpu.matmul %86, %87, %cst_64 {dimension_numbers = #tpu.dot_dimension_numbers<[1], [0], [0], [1], [0, 0, 1, 1], [], []>} : vector<8x32xbf16>, vector<32x32xbf16>, vector<8x32xf32> -> vector<8x32xf32>
      %c0_65 = arith.constant 0 : index
      %c0_66 = arith.constant 0 : index
      %89 = vector.load %arg12[%c0_65, %c0_66] : memref<1x32xf32, #tpu.memory_space<vmem>>, vector<1x32xf32>
      %90 = vector.broadcast %89 : vector<1x32xf32> to vector<8x32xf32>
      %91 = arith.addf %88, %90 : vector<8x32xf32>
      %cst_67 = arith.constant 1.702000e+00 : f32
      %92 = vector.broadcast %cst_67 : f32 to vector<8x32xf32>
      %93 = arith.mulf %92, %91 : vector<8x32xf32>
      %94 = arith.negf %93 : vector<8x32xf32>
      %95 = math.exp %94 : vector<8x32xf32>
      %cst_68 = arith.constant 1.000000e+00 : f32
      %96 = vector.broadcast %cst_68 : f32 to vector<8x32xf32>
      %97 = arith.addf %96, %95 : vector<8x32xf32>
      %98 = arith.divf %96, %97 : vector<8x32xf32>
      %99 = arith.mulf %91, %98 : vector<8x32xf32>
      %100 = arith.truncf %99 : vector<8x32xf32> to vector<8x32xbf16>
      %c0_69 = arith.constant 0 : index
      %c0_70 = arith.constant 0 : index
      %101 = vector.load %arg13[%c0_69, %c0_70] : memref<32x32xbf16, #tpu.memory_space<vmem>>, vector<32x32xbf16>
      %cst_71 = arith.constant dense<0.000000e+00> : vector<8x32xf32>
      %102 = tpu.matmul %100, %101, %cst_71 {dimension_numbers = #tpu.dot_dimension_numbers<[1], [0], [0], [1], [0, 0, 1, 1], [], []>} : vector<8x32xbf16>, vector<32x32xbf16>, vector<8x32xf32> -> vector<8x32xf32>
      %c0_72 = arith.constant 0 : index
      %c0_73 = arith.constant 0 : index
      %103 = vector.load %arg14[%c0_72, %c0_73] : memref<1x32xf32, #tpu.memory_space<vmem>>, vector<1x32xf32>
      %104 = vector.broadcast %103 : vector<1x32xf32> to vector<8x32xf32>
      %105 = arith.addf %102, %104 : vector<8x32xf32>
      %106 = arith.addf %59, %105 : vector<8x32xf32>
      %c0_74 = arith.constant 0 : index
      %c0_75 = arith.constant 0 : index
      %c0_76 = arith.constant 0 : index
      %107 = vector.load %arg15[%c0_74, %c0_75, %c0_76] : memref<1x8x32xf32, #tpu.memory_space<vmem>>, vector<1x8x32xf32>
      %108 = vector.shape_cast %107 : vector<1x8x32xf32> to vector<8x32xf32>
      %109 = vector.shape_cast %106 : vector<8x32xf32> to vector<1x8x32xf32>
      tpu.vector_store %arg15[%c0_74, %c0_75, %c0_76], %109 {strides = array<i32>} : memref<1x8x32xf32, #tpu.memory_space<vmem>>, vector<1x8x32xf32>,
    } else {
    }
    return
  }
  func.func @transform_0(%arg0: i32, %arg1: i32, %arg2: i32) -> (i32, i32, i32) {
    %c0_i32 = arith.constant 0 : i32
    %c0_i32_0 = arith.constant 0 : i32
    return %arg0, %arg1, %c0_i32 : i32, i32, i32
  }
  func.func @transform_1(%arg0: i32, %arg1: i32, %arg2: i32) -> (i32, i32, i32, i32) {
    %c0_i32 = arith.constant 0 : i32
    %c0_i32_0 = arith.constant 0 : i32
    %c0_i32_1 = arith.constant 0 : i32
    return %arg0, %c0_i32, %arg1, %c0_i32_0 : i32, i32, i32, i32
  }
  func.func @transform_2(%arg0: i32, %arg1: i32, %arg2: i32) -> (i32, i32, i32, i32) {
    %c0_i32 = arith.constant 0 : i32
    %c0_i32_0 = arith.constant 0 : i32
    %c0_i32_1 = arith.constant 0 : i32
    return %arg0, %c0_i32, %arg2, %c0_i32_0 : i32, i32, i32, i32
  }
  func.func @transform_3(%arg0: i32, %arg1: i32, %arg2: i32) -> (i32, i32, i32, i32) {
    %c0_i32 = arith.constant 0 : i32
    %c0_i32_0 = arith.constant 0 : i32
    %c0_i32_1 = arith.constant 0 : i32
    return %arg0, %c0_i32, %arg2, %c0_i32_0 : i32, i32, i32, i32
  }
  func.func @transform_4(%arg0: i32, %arg1: i32, %arg2: i32) -> (i32, i32, i32) {
    %c0_i32 = arith.constant 0 : i32
    %c0_i32_0 = arith.constant 0 : i32
    %c0_i32_1 = arith.constant 0 : i32
    %c0_i32_2 = arith.constant 0 : i32
    return %c0_i32, %c0_i32_0, %c0_i32_1 : i32, i32, i32
  }
  func.func @transform_5(%arg0: i32, %arg1: i32, %arg2: i32) -> (i32, i32) {
    %c0_i32 = arith.constant 0 : i32
    %c0_i32_0 = arith.constant 0 : i32
    %c0_i32_1 = arith.constant 0 : i32
    return %c0_i32, %c0_i32_0 : i32, i32
  }
  func.func @transform_6(%arg0: i32, %arg1: i32, %arg2: i32) -> (i32, i32) {
    %c0_i32 = arith.constant 0 : i32
    %c0_i32_0 = arith.constant 0 : i32
    %c0_i32_1 = arith.constant 0 : i32
    return %c0_i32, %c0_i32_0 : i32, i32
  }
  func.func @transform_7(%arg0: i32, %arg1: i32, %arg2: i32) -> (i32, i32) {
    %c0_i32 = arith.constant 0 : i32
    %c0_i32_0 = arith.constant 0 : i32
    %c0_i32_1 = arith.constant 0 : i32
    return %c0_i32, %c0_i32_0 : i32, i32
  }
  func.func @transform_8(%arg0: i32, %arg1: i32, %arg2: i32) -> (i32, i32) {
    %c0_i32 = arith.constant 0 : i32
    %c0_i32_0 = arith.constant 0 : i32
    %c0_i32_1 = arith.constant 0 : i32
    return %c0_i32, %c0_i32_0 : i32, i32
  }
  func.func @transform_9(%arg0: i32, %arg1: i32, %arg2: i32) -> (i32, i32) {
    %c0_i32 = arith.constant 0 : i32
    %c0_i32_0 = arith.constant 0 : i32
    %c0_i32_1 = arith.constant 0 : i32
    return %c0_i32, %c0_i32_0 : i32, i32
  }
  func.func @transform_10(%arg0: i32, %arg1: i32, %arg2: i32) -> (i32, i32) {
    %c0_i32 = arith.constant 0 : i32
    %c0_i32_0 = arith.constant 0 : i32
    %c0_i32_1 = arith.constant 0 : i32
    return %c0_i32, %c0_i32_0 : i32, i32
  }
  func.func @transform_11(%arg0: i32, %arg1: i32, %arg2: i32) -> (i32, i32) {
    %c0_i32 = arith.constant 0 : i32
    %c0_i32_0 = arith.constant 0 : i32
    %c0_i32_1 = arith.constant 0 : i32
    return %c0_i32, %c0_i32_0 : i32, i32
  }
  func.func @transform_12(%arg0: i32, %arg1: i32, %arg2: i32) -> (i32, i32, i32) {
    %c0_i32 = arith.constant 0 : i32
    %c0_i32_0 = arith.constant 0 : i32
    return %arg0, %arg1, %c0_i32 : i32, i32, i32
  }
}

module attributes {stable_mosaic.version = 11 : i64} {
  func.func @attn_mlp_kernel(%arg0: i32, %arg1: i32, %arg2: i32, %arg3: memref<1x8x32xf32, #tpu.memory_space<vmem>>, %arg4: memref<1x2x8x4xbf16, #tpu.memory_space<vmem>>, %arg5: memref<1x2x8x4xbf16, #tpu.memory_space<vmem>>, %arg6: memref<1x2x8x4xbf16, #tpu.memory_space<vmem>>, %arg7: memref<2x4x32xbf16, #tpu.memory_space<vmem>>, %arg8: memref<1x32xf32, #tpu.memory_space<vmem>>, %arg9: memref<1x32xf32, #tpu.memory_space<vmem>>, %arg10: memref<1x32xf32, #tpu.memory_space<vmem>>, %arg11: memref<32x32xbf16, #tpu.memory_space<vmem>>, %arg12: memref<1x32xf32, #tpu.memory_space<vmem>>, %arg13: memref<32x32xbf16, #tpu.memory_space<vmem>>, %arg14: memref<1x32xf32, #tpu.memory_space<vmem>>, %arg15: memref<1x8x32xf32, #tpu.memory_space<vmem>>, %arg16: memref<2x8x1xf32, #tpu.memory_space<vmem>>, %arg17: memref<2x8x1xf32, #tpu.memory_space<vmem>>, %arg18: memref<2x8x4xf32, #tpu.memory_space<vmem>>) attributes {dimension_semantics = [#tpu.dimension_semantics<parallel>, #tpu.dimension_semantics<parallel>, #tpu.dimension_semantics<arbitrary>], iteration_bounds = array<i64: 2, 1, 1>, scalar_prefetch = 0 : i64, scratch_operands = 3 : i64, tpu.core_type = #tpu.core_type<tc>, window_params = [{transform_indices = @transform_0, window_bounds = array<i64: 1, 8, 32>}, {transform_indices = @transform_1, window_bounds = array<i64: 1, 2, 8, 4>}, {transform_indices = @transform_2, window_bounds = array<i64: 1, 2, 8, 4>}, {transform_indices = @transform_3, window_bounds = array<i64: 1, 2, 8, 4>}, {pipeline_mode = #tpu.pipeline_mode<synchronous>, transform_indices = @transform_4, window_bounds = array<i64: 2, 4, 32>}, {pipeline_mode = #tpu.pipeline_mode<synchronous>, transform_indices = @transform_5, window_bounds = array<i64: 1, 32>}, {pipeline_mode = #tpu.pipeline_mode<synchronous>, transform_indices = @transform_6, window_bounds = array<i64: 1, 32>}, {pipeline_mode = #tpu.pipeline_mode<synchronous>, transform_indices = @transform_7, window_bounds = array<i64: 1, 32>}, {pipeline_mode = #tpu.pipeline_mode<synchronous>, transform_indices = @transform_8, window_bounds = array<i64: 32, 32>}, {pipeline_mode = #tpu.pipeline_mode<synchronous>, transform_indices = @transform_9, window_bounds = array<i64: 1, 32>}, {pipeline_mode = #tpu.pipeline_mode<synchronous>, transform_indices = @transform_10, window_bounds = array<i64: 32, 32>}, {pipeline_mode = #tpu.pipeline_mode<synchronous>, transform_indices = @transform_11, window_bounds = array<i64: 1, 32>}, {transform_indices = @transform_12, window_bounds = array<i64: 1, 8, 32>}]} {
    %c0_i32 = arith.constant 0 : i32
    %0 = arith.cmpi eq, %arg2, %c0_i32 : i32
    %1 = arith.extui %0 : i1 to i32
    %c0_i32_0 = arith.constant 0 : i32
    %2 = arith.cmpi ne, %1, %c0_i32_0 : i32
    scf.if %2 {
      %cst_35 = arith.constant 0xFF800000 : f32
      %37 = vector.broadcast %cst_35 : f32 to vector<2x8x1xf32>
      %c0_36 = arith.constant 0 : index
      %c0_37 = arith.constant 0 : index
      %c0_38 = arith.constant 0 : index
      %38 = vector.load %arg16[%c0_36, %c0_37, %c0_38] : memref<2x8x1xf32, #tpu.memory_space<vmem>>, vector<2x8x1xf32>
      tpu.vector_store %arg16[%c0_36, %c0_37, %c0_38], %37 {strides = array<i32>} : memref<2x8x1xf32, #tpu.memory_space<vmem>>, vector<2x8x1xf32>,
      %cst_39 = arith.constant 0.000000e+00 : f32
      %39 = vector.broadcast %cst_39 : f32 to vector<2x8x1xf32>
      %c0_40 = arith.constant 0 : index
      %c0_41 = arith.constant 0 : index
      %c0_42 = arith.constant 0 : index
      %40 = vector.load %arg17[%c0_40, %c0_41, %c0_42] : memref<2x8x1xf32, #tpu.memory_space<vmem>>, vector<2x8x1xf32>
      tpu.vector_store %arg17[%c0_40, %c0_41, %c0_42], %39 {strides = array<i32>} : memref<2x8x1xf32, #tpu.memory_space<vmem>>, vector<2x8x1xf32>,
      %cst_43 = arith.constant 0.000000e+00 : f32
      %41 = vector.broadcast %cst_43 : f32 to vector<2x8x4xf32>
      %c0_44 = arith.constant 0 : index
      %c0_45 = arith.constant 0 : index
      %c0_46 = arith.constant 0 : index
      %42 = vector.load %arg18[%c0_44, %c0_45, %c0_46] : memref<2x8x4xf32, #tpu.memory_space<vmem>>, vector<2x8x4xf32>
      tpu.vector_store %arg18[%c0_44, %c0_45, %c0_46], %41 {strides = array<i32>} : memref<2x8x4xf32, #tpu.memory_space<vmem>>, vector<2x8x4xf32>,
    } else {
    }
    %c0 = arith.constant 0 : index
    %c0_1 = arith.constant 0 : index
    %c0_2 = arith.constant 0 : index
    %c0_3 = arith.constant 0 : index
    %3 = vector.load %arg4[%c0, %c0_1, %c0_2, %c0_3] : memref<1x2x8x4xbf16, #tpu.memory_space<vmem>>, vector<1x2x8x4xbf16>
    %4 = vector.shape_cast %3 : vector<1x2x8x4xbf16> to vector<2x8x4xbf16>
    %c0_4 = arith.constant 0 : index
    %c0_5 = arith.constant 0 : index
    %c0_6 = arith.constant 0 : index
    %c0_7 = arith.constant 0 : index
    %5 = vector.load %arg5[%c0_4, %c0_5, %c0_6, %c0_7] : memref<1x2x8x4xbf16, #tpu.memory_space<vmem>>, vector<1x2x8x4xbf16>
    %6 = vector.shape_cast %5 : vector<1x2x8x4xbf16> to vector<2x8x4xbf16>
    %c0_8 = arith.constant 0 : index
    %c0_9 = arith.constant 0 : index
    %c0_10 = arith.constant 0 : index
    %c0_11 = arith.constant 0 : index
    %7 = vector.load %arg6[%c0_8, %c0_9, %c0_10, %c0_11] : memref<1x2x8x4xbf16, #tpu.memory_space<vmem>>, vector<1x2x8x4xbf16>
    %8 = vector.shape_cast %7 : vector<1x2x8x4xbf16> to vector<2x8x4xbf16>
    "tpu.trace_start"() <{level = 10 : i32, message = "hqd,hkd->hqk"}> : () -> ()
    %cst = arith.constant dense<0.000000e+00> : vector<2x8x8xf32>
    %9 = tpu.matmul %4, %6, %cst {dimension_numbers = #tpu.dot_dimension_numbers<[2], [2], [1], [1], [0, 0, 0, 1, 1, 1], [0], [0]>} : vector<2x8x4xbf16>, vector<2x8x4xbf16>, vector<2x8x8xf32> -> vector<2x8x8xf32>
    "tpu.trace_stop"() : () -> ()
    %c0_12 = arith.constant 0 : index
    %c0_13 = arith.constant 0 : index
    %c0_14 = arith.constant 0 : index
    %10 = vector.load %arg16[%c0_12, %c0_13, %c0_14] : memref<2x8x1xf32, #tpu.memory_space<vmem>>, vector<2x8x1xf32>
    %cst_15 = arith.constant dense<0xFF800000> : vector<2x8xf32>
    %11 = vector.multi_reduction <maximumf>, %9, %cst_15 [2] : vector<2x8x8xf32> to vector<2x8xf32>
    %12 = vector.shape_cast %11 : vector<2x8xf32> to vector<2x8x1xf32>
    %13 = arith.maximumf %10, %12 : vector<2x8x1xf32>
    %14 = arith.subf %10, %13 : vector<2x8x1xf32>
    %15 = math.exp %14 : vector<2x8x1xf32>
    %16 = vector.broadcast %13 : vector<2x8x1xf32> to vector<2x8x8xf32>
    %17 = arith.subf %9, %16 : vector<2x8x8xf32>
    %18 = arith.truncf %17 : vector<2x8x8xf32> to vector<2x8x8xbf16>
    %19 = math.exp %18 : vector<2x8x8xbf16>
    %c0_16 = arith.constant 0 : index
    %c0_17 = arith.constant 0 : index
    %c0_18 = arith.constant 0 : index
    %20 = vector.load %arg17[%c0_16, %c0_17, %c0_18] : memref<2x8x1xf32, #tpu.memory_space<vmem>>, vector<2x8x1xf32>
    %21 = arith.mulf %15, %20 : vector<2x8x1xf32>
    %22 = arith.extf %19 : vector<2x8x8xbf16> to vector<2x8x8xf32>
    %cst_19 = arith.constant dense<0.000000e+00> : vector<2x8xf32>
    %23 = vector.multi_reduction <add>, %22, %cst_19 [2] : vector<2x8x8xf32> to vector<2x8xf32>
    %24 = vector.shape_cast %23 : vector<2x8xf32> to vector<2x8x1xf32>
    %25 = arith.addf %21, %24 : vector<2x8x1xf32>
    %c0_20 = arith.constant 0 : index
    %c0_21 = arith.constant 0 : index
    %c0_22 = arith.constant 0 : index
    %26 = vector.load %arg17[%c0_20, %c0_21, %c0_22] : memref<2x8x1xf32, #tpu.memory_space<vmem>>, vector<2x8x1xf32>
    tpu.vector_store %arg17[%c0_20, %c0_21, %c0_22], %25 {strides = array<i32>} : memref<2x8x1xf32, #tpu.memory_space<vmem>>, vector<2x8x1xf32>,
    %c0_23 = arith.constant 0 : index
    %c0_24 = arith.constant 0 : index
    %c0_25 = arith.constant 0 : index
    %27 = vector.load %arg18[%c0_23, %c0_24, %c0_25] : memref<2x8x4xf32, #tpu.memory_space<vmem>>, vector<2x8x4xf32>
    %28 = vector.broadcast %15 : vector<2x8x1xf32> to vector<2x8x4xf32>
    %29 = arith.mulf %28, %27 : vector<2x8x4xf32>
    "tpu.trace_start"() <{level = 10 : i32, message = "hqk,hkd->hqd"}> : () -> ()
    %cst_26 = arith.constant dense<0.000000e+00> : vector<2x8x4xf32>
    %30 = tpu.matmul %19, %8, %cst_26 {dimension_numbers = #tpu.dot_dimension_numbers<[2], [1], [1], [2], [0, 0, 0, 1, 1, 2], [0], [0]>} : vector<2x8x8xbf16>, vector<2x8x4xbf16>, vector<2x8x4xf32> -> vector<2x8x4xf32>
    "tpu.trace_stop"() : () -> ()
    %31 = arith.addf %29, %30 : vector<2x8x4xf32>
    %c0_27 = arith.constant 0 : index
    %c0_28 = arith.constant 0 : index
    %c0_29 = arith.constant 0 : index
    %32 = vector.load %arg18[%c0_27, %c0_28, %c0_29] : memref<2x8x4xf32, #tpu.memory_space<vmem>>, vector<2x8x4xf32>
    tpu.vector_store %arg18[%c0_27, %c0_28, %c0_29], %31 {strides = array<i32>} : memref<2x8x4xf32, #tpu.memory_space<vmem>>, vector<2x8x4xf32>,
    %c0_30 = arith.constant 0 : index
    %c0_31 = arith.constant 0 : index
    %c0_32 = arith.constant 0 : index
    %33 = vector.load %arg16[%c0_30, %c0_31, %c0_32] : memref<2x8x1xf32, #tpu.memory_space<vmem>>, vector<2x8x1xf32>
    tpu.vector_store %arg16[%c0_30, %c0_31, %c0_32], %13 {strides = array<i32>} : memref<2x8x1xf32, #tpu.memory_space<vmem>>, vector<2x8x1xf32>,
    %c0_i32_33 = arith.constant 0 : i32
    %34 = arith.cmpi eq, %arg2, %c0_i32_33 : i32
    %35 = arith.extui %34 : i1 to i32
    %c0_i32_34 = arith.constant 0 : i32
    %36 = arith.cmpi ne, %35, %c0_i32_34 : i32
    scf.if %36 {
      %c0_35 = arith.constant 0 : index
      %c0_36 = arith.constant 0 : index
      %c0_37 = arith.constant 0 : index
      %37 = vector.load %arg18[%c0_35, %c0_36, %c0_37] : memref<2x8x4xf32, #tpu.memory_space<vmem>>, vector<2x8x4xf32>
      %c0_38 = arith.constant 0 : index
      %c0_39 = arith.constant 0 : index
      %c0_40 = arith.constant 0 : index
      %38 = vector.load %arg17[%c0_38, %c0_39, %c0_40] : memref<2x8x1xf32, #tpu.memory_space<vmem>>, vector<2x8x1xf32>
      %39 = tpu.reciprocal %38 {approx = true} : vector<2x8x1xf32> -> vector<2x8x1xf32>
      %40 = vector.broadcast %39 : vector<2x8x1xf32> to vector<2x8x4xf32>
      %41 = arith.mulf %37, %40 : vector<2x8x4xf32>
      %42 = arith.truncf %41 : vector<2x8x4xf32> to vector<2x8x4xbf16>
      %43 = vector.extract_strided_slice %42 {offsets = [0, 0, 0], sizes = [1, 8, 4], strides = [1, 1, 1]} : vector<2x8x4xbf16> to vector<1x8x4xbf16>
      %44 = vector.shape_cast %43 : vector<1x8x4xbf16> to vector<8x4xbf16>
      %c0_41 = arith.constant 0 : index
      %c0_42 = arith.constant 0 : index
      %c0_43 = arith.constant 0 : index
      %45 = vector.load %arg7[%c0_41, %c0_42, %c0_43] : memref<2x4x32xbf16, #tpu.memory_space<vmem>>, vector<1x4x32xbf16>
      %46 = vector.shape_cast %45 : vector<1x4x32xbf16> to vector<4x32xbf16>
      %cst_44 = arith.constant dense<0.000000e+00> : vector<8x32xf32>
      %47 = tpu.matmul %44, %46, %cst_44 {dimension_numbers = #tpu.dot_dimension_numbers<[1], [0], [0], [1], [0, 0, 1, 1], [], []>} : vector<8x4xbf16>, vector<4x32xbf16>, vector<8x32xf32> -> vector<8x32xf32>
      %48 = vector.extract_strided_slice %42 {offsets = [1, 0, 0], sizes = [1, 8, 4], strides = [1, 1, 1]} : vector<2x8x4xbf16> to vector<1x8x4xbf16>
      %49 = vector.shape_cast %48 : vector<1x8x4xbf16> to vector<8x4xbf16>
      %c1 = arith.constant 1 : index
      %c0_45 = arith.constant 0 : index
      %c0_46 = arith.constant 0 : index
      %50 = vector.load %arg7[%c1, %c0_45, %c0_46] : memref<2x4x32xbf16, #tpu.memory_space<vmem>>, vector<1x4x32xbf16>
      %51 = vector.shape_cast %50 : vector<1x4x32xbf16> to vector<4x32xbf16>
      %cst_47 = arith.constant dense<0.000000e+00> : vector<8x32xf32>
      %52 = tpu.matmul %49, %51, %cst_47 {dimension_numbers = #tpu.dot_dimension_numbers<[1], [0], [0], [1], [0, 0, 1, 1], [], []>} : vector<8x4xbf16>, vector<4x32xbf16>, vector<8x32xf32> -> vector<8x32xf32>
      %53 = arith.addf %47, %52 : vector<8x32xf32>
      %c0_48 = arith.constant 0 : index
      %c0_49 = arith.constant 0 : index
      %54 = vector.load %arg8[%c0_48, %c0_49] : memref<1x32xf32, #tpu.memory_space<vmem>>, vector<1x32xf32>
      %55 = vector.broadcast %54 : vector<1x32xf32> to vector<8x32xf32>
      %56 = arith.addf %53, %55 : vector<8x32xf32>
      %c0_50 = arith.constant 0 : index
      %c0_51 = arith.constant 0 : index
      %c0_52 = arith.constant 0 : index
      %57 = vector.load %arg3[%c0_50, %c0_51, %c0_52] : memref<1x8x32xf32, #tpu.memory_space<vmem>>, vector<1x8x32xf32>
      %58 = vector.shape_cast %57 : vector<1x8x32xf32> to vector<8x32xf32>
      %59 = arith.addf %58, %56 : vector<8x32xf32>
      %c0_53 = arith.constant 0 : index
      %c0_54 = arith.constant 0 : index
      %60 = vector.load %arg9[%c0_53, %c0_54] : memref<1x32xf32, #tpu.memory_space<vmem>>, vector<1x32xf32>
      %c0_55 = arith.constant 0 : index
      %c0_56 = arith.constant 0 : index
      %61 = vector.load %arg10[%c0_55, %c0_56] : memref<1x32xf32, #tpu.memory_space<vmem>>, vector<1x32xf32>
      %cst_57 = arith.constant dense<0.000000e+00> : vector<8xf32>
      %62 = vector.multi_reduction <add>, %59, %cst_57 [1] : vector<8x32xf32> to vector<8xf32>
      %63 = vector.shape_cast %62 : vector<8xf32> to vector<8x1xf32>
      %cst_58 = arith.constant 3.200000e+01 : f32
      %64 = vector.broadcast %cst_58 : f32 to vector<8x1xf32>
      %65 = arith.divf %63, %64 : vector<8x1xf32>
      %66 = vector.broadcast %65 : vector<8x1xf32> to vector<8x32xf32>
      %67 = arith.subf %59, %66 : vector<8x32xf32>
      %68 = vector.broadcast %65 : vector<8x1xf32> to vector<8x32xf32>
      %69 = arith.subf %59, %68 : vector<8x32xf32>
      %70 = arith.mulf %67, %69 : vector<8x32xf32>
      %cst_59 = arith.constant dense<0.000000e+00> : vector<8xf32>
      %71 = vector.multi_reduction <add>, %70, %cst_59 [1] : vector<8x32xf32> to vector<8xf32>
      %72 = vector.shape_cast %71 : vector<8xf32> to vector<8x1xf32>
      %cst_60 = arith.constant 3.200000e+01 : f32
      %73 = vector.broadcast %cst_60 : f32 to vector<8x1xf32>
      %74 = arith.divf %72, %73 : vector<8x1xf32>
      %75 = vector.broadcast %65 : vector<8x1xf32> to vector<8x32xf32>
      %76 = arith.subf %59, %75 : vector<8x32xf32>
      %cst_61 = arith.constant 9.99999974E-6 : f32
      %77 = vector.broadcast %cst_61 : f32 to vector<8x1xf32>
      %78 = arith.addf %74, %77 : vector<8x1xf32>
      %79 = math.rsqrt %78 : vector<8x1xf32>
      %80 = vector.broadcast %79 : vector<8x1xf32> to vector<8x32xf32>
      %81 = arith.mulf %76, %80 : vector<8x32xf32>
      %82 = vector.broadcast %60 : vector<1x32xf32> to vector<8x32xf32>
      %83 = arith.mulf %81, %82 : vector<8x32xf32>
      %84 = vector.broadcast %61 : vector<1x32xf32> to vector<8x32xf32>
      %85 = arith.addf %83, %84 : vector<8x32xf32>
      %86 = arith.truncf %85 : vector<8x32xf32> to vector<8x32xbf16>
      %c0_62 = arith.constant 0 : index
      %c0_63 = arith.constant 0 : index
      %87 = vector.load %arg11[%c0_62, %c0_63] : memref<32x32xbf16, #tpu.memory_space<vmem>>, vector<32x32xbf16>
      %cst_64 = arith.constant dense<0.000000e+00> : vector<8x32xf32>
      %88 = tpu.matmul %86, %87, %cst_64 {dimension_numbers = #tpu.dot_dimension_numbers<[1], [0], [0], [1], [0, 0, 1, 1], [], []>} : vector<8x32xbf16>, vector<32x32xbf16>, vector<8x32xf32> -> vector<8x32xf32>
      %c0_65 = arith.constant 0 : index
      %c0_66 = arith.constant 0 : index
      %89 = vector.load %arg12[%c0_65, %c0_66] : memref<1x32xf32, #tpu.memory_space<vmem>>, vector<1x32xf32>
      %90 = vector.broadcast %89 : vector<1x32xf32> to vector<8x32xf32>
      %91 = arith.addf %88, %90 : vector<8x32xf32>
      %cst_67 = arith.constant 1.702000e+00 : f32
      %92 = vector.broadcast %cst_67 : f32 to vector<8x32xf32>
      %93 = arith.mulf %92, %91 : vector<8x32xf32>
      %94 = arith.negf %93 : vector<8x32xf32>
      %95 = math.exp %94 : vector<8x32xf32>
      %cst_68 = arith.constant 1.000000e+00 : f32
      %96 = vector.broadcast %cst_68 : f32 to vector<8x32xf32>
      %97 = arith.addf %96, %95 : vector<8x32xf32>
      %98 = arith.divf %96, %97 : vector<8x32xf32>
      %99 = arith.mulf %91, %98 : vector<8x32xf32>
      %100 = arith.truncf %99 : vector<8x32xf32> to vector<8x32xbf16>
      %c0_69 = arith.constant 0 : index
      %c0_70 = arith.constant 0 : index
      %101 = vector.load %arg13[%c0_69, %c0_70] : memref<32x32xbf16, #tpu.memory_space<vmem>>, vector<32x32xbf16>
      %cst_71 = arith.constant dense<0.000000e+00> : vector<8x32xf32>
      %102 = tpu.matmul %100, %101, %cst_71 {dimension_numbers = #tpu.dot_dimension_numbers<[1], [0], [0], [1], [0, 0, 1, 1], [], []>} : vector<8x32xbf16>, vector<32x32xbf16>, vector<8x32xf32> -> vector<8x32xf32>
      %c0_72 = arith.constant 0 : index
      %c0_73 = arith.constant 0 : index
      %103 = vector.load %arg14[%c0_72, %c0_73] : memref<1x32xf32, #tpu.memory_space<vmem>>, vector<1x32xf32>
      %104 = vector.broadcast %103 : vector<1x32xf32> to vector<8x32xf32>
      %105 = arith.addf %102, %104 : vector<8x32xf32>
      %106 = arith.addf %59, %105 : vector<8x32xf32>
      %c0_74 = arith.constant 0 : index
      %c0_75 = arith.constant 0 : index
      %c0_76 = arith.constant 0 : index
      %107 = vector.load %arg15[%c0_74, %c0_75, %c0_76] : memref<1x8x32xf32, #tpu.memory_space<vmem>>, vector<1x8x32xf32>
      %108 = vector.shape_cast %107 : vector<1x8x32xf32> to vector<8x32xf32>
      %109 = vector.shape_cast %106 : vector<8x32xf32> to vector<1x8x32xf32>
      tpu.vector_store %arg15[%c0_74, %c0_75, %c0_76], %109 {strides = array<i32>} : memref<1x8x32xf32, #tpu.memory_space<vmem>>, vector<1x8x32xf32>,
    } else {
    }
    return
  }
  func.func @transform_0(%arg0: i32, %arg1: i32, %arg2: i32) -> (i32, i32, i32) {
    %c0_i32 = arith.constant 0 : i32
    %c0_i32_0 = arith.constant 0 : i32
    return %arg0, %arg1, %c0_i32 : i32, i32, i32
  }
  func.func @transform_1(%arg0: i32, %arg1: i32, %arg2: i32) -> (i32, i32, i32, i32) {
    %c0_i32 = arith.constant 0 : i32
    %c0_i32_0 = arith.constant 0 : i32
    %c0_i32_1 = arith.constant 0 : i32
    return %arg0, %c0_i32, %arg1, %c0_i32_0 : i32, i32, i32, i32
  }
  func.func @transform_2(%arg0: i32, %arg1: i32, %arg2: i32) -> (i32, i32, i32, i32) {
    %c0_i32 = arith.constant 0 : i32
    %c0_i32_0 = arith.constant 0 : i32
    %c0_i32_1 = arith.constant 0 : i32
    return %arg0, %c0_i32, %arg2, %c0_i32_0 : i32, i32, i32, i32
  }
  func.func @transform_3(%arg0: i32, %arg1: i32, %arg2: i32) -> (i32, i32, i32, i32) {
    %c0_i32 = arith.constant 0 : i32
    %c0_i32_0 = arith.constant 0 : i32
    %c0_i32_1 = arith.constant 0 : i32
    return %arg0, %c0_i32, %arg2, %c0_i32_0 : i32, i32, i32, i32
  }
  func.func @transform_4(%arg0: i32, %arg1: i32, %arg2: i32) -> (i32, i32, i32) {
    %c0_i32 = arith.constant 0 : i32
    %c0_i32_0 = arith.constant 0 : i32
    %c0_i32_1 = arith.constant 0 : i32
    %c0_i32_2 = arith.constant 0 : i32
    return %c0_i32, %c0_i32_0, %c0_i32_1 : i32, i32, i32
  }
  func.func @transform_5(%arg0: i32, %arg1: i32, %arg2: i32) -> (i32, i32) {
    %c0_i32 = arith.constant 0 : i32
    %c0_i32_0 = arith.constant 0 : i32
    %c0_i32_1 = arith.constant 0 : i32
    return %c0_i32, %c0_i32_0 : i32, i32
  }
  func.func @transform_6(%arg0: i32, %arg1: i32, %arg2: i32) -> (i32, i32) {
    %c0_i32 = arith.constant 0 : i32
    %c0_i32_0 = arith.constant 0 : i32
    %c0_i32_1 = arith.constant 0 : i32
    return %c0_i32, %c0_i32_0 : i32, i32
  }
  func.func @transform_7(%arg0: i32, %arg1: i32, %arg2: i32) -> (i32, i32) {
    %c0_i32 = arith.constant 0 : i32
    %c0_i32_0 = arith.constant 0 : i32
    %c0_i32_1 = arith.constant 0 : i32
    return %c0_i32, %c0_i32_0 : i32, i32
  }
  func.func @transform_8(%arg0: i32, %arg1: i32, %arg2: i32) -> (i32, i32) {
    %c0_i32 = arith.constant 0 : i32
    %c0_i32_0 = arith.constant 0 : i32
    %c0_i32_1 = arith.constant 0 : i32
    return %c0_i32, %c0_i32_0 : i32, i32
  }
  func.func @transform_9(%arg0: i32, %arg1: i32, %arg2: i32) -> (i32, i32) {
    %c0_i32 = arith.constant 0 : i32
    %c0_i32_0 = arith.constant 0 : i32
    %c0_i32_1 = arith.constant 0 : i32
    return %c0_i32, %c0_i32_0 : i32, i32
  }
  func.func @transform_10(%arg0: i32, %arg1: i32, %arg2: i32) -> (i32, i32) {
    %c0_i32 = arith.constant 0 : i32
    %c0_i32_0 = arith.constant 0 : i32
    %c0_i32_1 = arith.constant 0 : i32
    return %c0_i32, %c0_i32_0 : i32, i32
  }
  func.func @transform_11(%arg0: i32, %arg1: i32, %arg2: i32) -> (i32, i32) {
    %c0_i32 = arith.constant 0 : i32
    %c0_i32_0 = arith.constant 0 : i32
    %c0_i32_1 = arith.constant 0 : i32
    return %c0_i32, %c0_i32_0 : i32, i32
  }
  func.func @transform_12(%arg0: i32, %arg1: i32, %arg2: i32) -> (i32, i32, i32) {
    %c0_i32 = arith.constant 0 : i32
    %c0_i32_0 = arith.constant 0 : i32
    return %arg0, %arg1, %c0_i32 : i32, i32, i32
  }
}

</mosaic_0001>

<llo_original>
// kernel: transformer_forward.4
$region0: #{transformer_forward.4}
  #allocation0 [shape = 'u32[]', space=smem, size = 0x4, offset = 0x4, fixed_abs, tag = 'smem constant byte address 0x4 - core index']
  #allocation1 [shape = 'u32[144,128]{1,0:T(1,128)}', space=vmem, size = 0x12000, scoped, tag = 'internal scratch']
  %s0 = inlined_call_operand.vmem [shape: f32[2,8,32], index: 0, kind: input, shape index: {}]
  %s1 = inlined_call_operand.vmem [shape: f32[1,32], index: 1, kind: input, shape index: {}]
  %s2 = inlined_call_operand.vmem [shape: f32[1,32], index: 2, kind: input, shape index: {}]
  %s3 = inlined_call_operand.vmem [shape: bf16[32,8], index: 3, kind: input, shape index: {}]
  %s4 = inlined_call_operand.vmem [shape: bf16[32,8], index: 4, kind: input, shape index: {}]
  %s5 = inlined_call_operand.vmem [shape: bf16[32,8], index: 5, kind: input, shape index: {}]
  %s6 = inlined_call_operand.vmem [shape: f32[1,8], index: 6, kind: input, shape index: {}]
  %s7 = inlined_call_operand.vmem [shape: f32[1,8], index: 7, kind: input, shape index: {}]
  %s8 = inlined_call_operand.vmem [shape: f32[1,8], index: 8, kind: input, shape index: {}]
  %s9 = inlined_call_operand.vmem [shape: bf16[2,2,8,4], index: 9, kind: output, shape index: {0}]
  %s10 = inlined_call_operand.vmem [shape: bf16[2,2,8,4], index: 10, kind: output, shape index: {1}]
  %s11 = inlined_call_operand.vmem [shape: bf16[2,2,8,4], index: 11, kind: output, shape index: {2}]
  %12 = xla_tuple %s9, %s10, %s11
  %s13 = sld [smem:[#allocation0]]
  $region85: #{transformer_forward.4} parent=0
    _
  %s15 = ssub.s32 1, %s13
  %s16 = scalar_select 0, %s15, %s13
  loop: start=0, step=1, limit=4
  $region2: #{transformer_forward.4} parent=0 // loop_pre_header
    _
  $region3: #{transformer_forward.4} parent=0 // loop_header
    %s18 = sphi 0, %s22
    %p19 = scmp.ge.s32.totalorder %s18, 4
    %s25 = sphi 0, %s37
    %s26 = sphi 0, %s33
    %s27 = sphi 0, %s25
    %s28 = sphi 0, %s26
    %s29 = sphi 0, %s27
    %s30 = sphi 0, %s28
    %s42 = sphi 0, %s44
    %s45 = sphi 0, %s42
    %s46 = sphi 0, %s45
    %s62 = sphi 0, %s46
    %s66 = sphi 0, %s66
    %s68 = sphi 0, %s66
    %s69 = sphi 0, %s68
    %s83 = sphi 0, %s69
    %s87 = sphi 0, %s87
    %s89 = sphi 0, %s87
    %s90 = sphi 0, %s89
    %s104 = sphi 0, %s90
    %s108 = sphi 0, %s108
    %s110 = sphi 0, %s108
    %s111 = sphi 0, %s110
    %s125 = sphi 0, %s111
    %s129 = sphi 0, %s129
    %s131 = sphi 0, %s129
    %s132 = sphi 0, %s131
    %s146 = sphi 0, %s132
    %s150 = sphi 0, %s150
    %s152 = sphi 0, %s150
    %s153 = sphi 0, %s152
    %s167 = sphi 0, %s153
    %s171 = sphi 0, %s171
    %s173 = sphi 0, %s171
    %s174 = sphi 0, %s173
    %s188 = sphi 0, %s174
    %s192 = sphi 0, %s192
    %s194 = sphi 0, %s192
    %s195 = sphi 0, %s194
    %s209 = sphi 0, %s195
    %s213 = sphi 0, %s213
    %s215 = sphi 0, %s213
    %s216 = sphi 0, %s215
    %s230 = sphi 0, %s216
    %s238 = sphi 0, %s240
    %s241 = sphi 0, %s238
    %s242 = sphi 0, %s241
    %s258 = sphi 0, %s242
    %s266 = sphi 0, %s268
    %s269 = sphi 0, %s266
    %s270 = sphi 0, %s269
    %s286 = sphi 0, %s270
    %s294 = sphi 0, %s296
    %s297 = sphi 0, %s294
    %s298 = sphi 0, %s297
    %s314 = sphi 0, %s298
  $region4: #{transformer_forward.4} parent=0 // loop_header_branch
    %21 = sbr.rel (%p19) target = $region8
  $region5: #{transformer_forward.4} parent=0 // loop_body
    %s23 = ssub.s32 %s18, 1
    %s24 = ssub.s32 %s18, 2
    %s31 = sadd.s32 1, %s26
    %p32 = scmp.ge.s32.totalorder %s31, 1
    %s33 = scalar_select %p32, 0, %s31
    %s34 = sadd.s32 1, %s25
    %s35 = scalar_select %p32, %s34, %s25
    %p36 = scmp.ge.s32.totalorder %s35, 2
    %s37 = scalar_select %p36, 0, %s35
    %s38 = ssub.s32 %s25, %s37
    %s39 = ssub.s32 %s26, %s33
    %s40 = sor.u32 %s38, %s39
    %p41 = scmp.eq.s32.totalorder %s40, 0
    %s43 = sadd.s32 %s42, 1
    %s44 = scalar_select %p41, %s42, %s43
    %p47 = pneg %p41
    %p48 = scmp.eq.s32.totalorder %s18, 1
    %p49 = por %p47, %p48
    %p50 = scmp.ne.s32.totalorder %s42, %s45
    %p51 = scmp.eq.s32.totalorder %s18, 0
    %p52 = por %p50, %p51
    %p53 = scmp.ne.s32.totalorder %s42, %s45
    %p54 = scmp.eq.s32.totalorder %s23, 1
    %p55 = por %p53, %p54
    %p56 = scmp.ne.s32.totalorder %s45, %s46
    %p57 = scmp.eq.s32.totalorder %s23, 0
    %p58 = por %p56, %p57
    %p59 = scmp.ne.s32.totalorder %s45, %s46
    %p60 = scmp.eq.s32.totalorder %s24, 1
    %p61 = por %p59, %p60
    %p63 = scmp.ne.s32.totalorder %s46, %s62
    %p64 = scmp.eq.s32.totalorder %s24, 0
    %p65 = por %p63, %p64
    %s67 = sadd.s32 %s66, 1
    %p70 = scmp.eq.s32.totalorder %s18, 1
    %p71 = scmp.ne.s32.totalorder %s66, %s68
    %p72 = scmp.eq.s32.totalorder %s18, 0
    %p73 = por %p71, %p72
    %p74 = scmp.ne.s32.totalorder %s66, %s68
    %p75 = scmp.eq.s32.totalorder %s23, 1
    %p76 = por %p74, %p75
    %p77 = scmp.ne.s32.totalorder %s68, %s69
    %p78 = scmp.eq.s32.totalorder %s23, 0
    %p79 = por %p77, %p78
    %p80 = scmp.ne.s32.totalorder %s68, %s69
    %p81 = scmp.eq.s32.totalorder %s24, 1
    %p82 = por %p80, %p81
    %p84 = scmp.ne.s32.totalorder %s69, %s83
    %p85 = scmp.eq.s32.totalorder %s24, 0
    %p86 = por %p84, %p85
    %s88 = sadd.s32 %s87, 1
    %p91 = scmp.eq.s32.totalorder %s18, 1
    %p92 = scmp.ne.s32.totalorder %s87, %s89
    %p93 = scmp.eq.s32.totalorder %s18, 0
    %p94 = por %p92, %p93
    %p95 = scmp.ne.s32.totalorder %s87, %s89
    %p96 = scmp.eq.s32.totalorder %s23, 1
    %p97 = por %p95, %p96
    %p98 = scmp.ne.s32.totalorder %s89, %s90
    %p99 = scmp.eq.s32.totalorder %s23, 0
    %p100 = por %p98, %p99
    %p101 = scmp.ne.s32.totalorder %s89, %s90
    %p102 = scmp.eq.s32.totalorder %s24, 1
    %p103 = por %p101, %p102
    %p105 = scmp.ne.s32.totalorder %s90, %s104
    %p106 = scmp.eq.s32.totalorder %s24, 0
    %p107 = por %p105, %p106
    %s109 = sadd.s32 %s108, 1
    %p112 = scmp.eq.s32.totalorder %s18, 1
    %p113 = scmp.ne.s32.totalorder %s108, %s110
    %p114 = scmp.eq.s32.totalorder %s18, 0
    %p115 = por %p113, %p114
    %p116 = scmp.ne.s32.totalorder %s108, %s110
    %p117 = scmp.eq.s32.totalorder %s23, 1
    %p118 = por %p116, %p117
    %p119 = scmp.ne.s32.totalorder %s110, %s111
    %p120 = scmp.eq.s32.totalorder %s23, 0
    %p121 = por %p119, %p120
    %p122 = scmp.ne.s32.totalorder %s110, %s111
    %p123 = scmp.eq.s32.totalorder %s24, 1
    %p124 = por %p122, %p123
    %p126 = scmp.ne.s32.totalorder %s111, %s125
    %p127 = scmp.eq.s32.totalorder %s24, 0
    %p128 = por %p126, %p127
    %s130 = sadd.s32 %s129, 1
    %p133 = scmp.eq.s32.totalorder %s18, 1
    %p134 = scmp.ne.s32.totalorder %s129, %s131
    %p135 = scmp.eq.s32.totalorder %s18, 0
    %p136 = por %p134, %p135
    %p137 = scmp.ne.s32.totalorder %s129, %s131
    %p138 = scmp.eq.s32.totalorder %s23, 1
    %p139 = por %p137, %p138
    %p140 = scmp.ne.s32.totalorder %s131, %s132
    %p141 = scmp.eq.s32.totalorder %s23, 0
    %p142 = por %p140, %p141
    %p143 = scmp.ne.s32.totalorder %s131, %s132
    %p144 = scmp.eq.s32.totalorder %s24, 1
    %p145 = por %p143, %p144
    %p147 = scmp.ne.s32.totalorder %s132, %s146
    %p148 = scmp.eq.s32.totalorder %s24, 0
    %p149 = por %p147, %p148
    %s151 = sadd.s32 %s150, 1
    %p154 = scmp.eq.s32.totalorder %s18, 1
    %p155 = scmp.ne.s32.totalorder %s150, %s152
    %p156 = scmp.eq.s32.totalorder %s18, 0
    %p157 = por %p155, %p156
    %p158 = scmp.ne.s32.totalorder %s150, %s152
    %p159 = scmp.eq.s32.totalorder %s23, 1
    %p160 = por %p158, %p159
    %p161 = scmp.ne.s32.totalorder %s152, %s153
    %p162 = scmp.eq.s32.totalorder %s23, 0
    %p163 = por %p161, %p162
    %p164 = scmp.ne.s32.totalorder %s152, %s153
    %p165 = scmp.eq.s32.totalorder %s24, 1
    %p166 = por %p164, %p165
    %p168 = scmp.ne.s32.totalorder %s153, %s167
    %p169 = scmp.eq.s32.totalorder %s24, 0
    %p170 = por %p168, %p169
    %s172 = sadd.s32 %s171, 1
    %p175 = scmp.eq.s32.totalorder %s18, 1
    %p176 = scmp.ne.s32.totalorder %s171, %s173
    %p177 = scmp.eq.s32.totalorder %s18, 0
    %p178 = por %p176, %p177
    %p179 = scmp.ne.s32.totalorder %s171, %s173
    %p180 = scmp.eq.s32.totalorder %s23, 1
    %p181 = por %p179, %p180
    %p182 = scmp.ne.s32.totalorder %s173, %s174
    %p183 = scmp.eq.s32.totalorder %s23, 0
    %p184 = por %p182, %p183
    %p185 = scmp.ne.s32.totalorder %s173, %s174
    %p186 = scmp.eq.s32.totalorder %s24, 1
    %p187 = por %p185, %p186
    %p189 = scmp.ne.s32.totalorder %s174, %s188
    %p190 = scmp.eq.s32.totalorder %s24, 0
    %p191 = por %p189, %p190
    %s193 = sadd.s32 %s192, 1
    %p196 = scmp.eq.s32.totalorder %s18, 1
    %p197 = scmp.ne.s32.totalorder %s192, %s194
    %p198 = scmp.eq.s32.totalorder %s18, 0
    %p199 = por %p197, %p198
    %p200 = scmp.ne.s32.totalorder %s192, %s194
    %p201 = scmp.eq.s32.totalorder %s23, 1
    %p202 = por %p200, %p201
    %p203 = scmp.ne.s32.totalorder %s194, %s195
    %p204 = scmp.eq.s32.totalorder %s23, 0
    %p205 = por %p203, %p204
    %p206 = scmp.ne.s32.totalorder %s194, %s195
    %p207 = scmp.eq.s32.totalorder %s24, 1
    %p208 = por %p206, %p207
    %p210 = scmp.ne.s32.totalorder %s195, %s209
    %p211 = scmp.eq.s32.totalorder %s24, 0
    %p212 = por %p210, %p211
    %s214 = sadd.s32 %s213, 1
    %p217 = scmp.eq.s32.totalorder %s18, 1
    %p218 = scmp.ne.s32.totalorder %s213, %s215
    %p219 = scmp.eq.s32.totalorder %s18, 0
    %p220 = por %p218, %p219
    %p221 = scmp.ne.s32.totalorder %s213, %s215
    %p222 = scmp.eq.s32.totalorder %s23, 1
    %p223 = por %p221, %p222
    %p224 = scmp.ne.s32.totalorder %s215, %s216
    %p225 = scmp.eq.s32.totalorder %s23, 0
    %p226 = por %p224, %p225
    %p227 = scmp.ne.s32.totalorder %s215, %s216
    %p228 = scmp.eq.s32.totalorder %s24, 1
    %p229 = por %p227, %p228
    %p231 = scmp.ne.s32.totalorder %s216, %s230
    %p232 = scmp.eq.s32.totalorder %s24, 0
    %p233 = por %p231, %p232
    %s234 = ssub.s32 %s25, %s37
    %s235 = ssub.s32 %s26, %s33
    %s236 = sor.u32 %s234, %s235
    %p237 = scmp.eq.s32.totalorder %s236, 0
    %s239 = sadd.s32 %s238, 1
    %s240 = scalar_select %p237, %s238, %s239
    %p243 = pneg %p237
    %p244 = scmp.eq.s32.totalorder %s18, 1
    %p245 = por %p243, %p244
    %p246 = scmp.ne.s32.totalorder %s238, %s241
    %p247 = scmp.eq.s32.totalorder %s18, 0
    %p248 = por %p246, %p247
    %p249 = scmp.ne.s32.totalorder %s238, %s241
    %p250 = scmp.eq.s32.totalorder %s23, 1
    %p251 = por %p249, %p250
    %p252 = scmp.ne.s32.totalorder %s241, %s242
    %p253 = scmp.eq.s32.totalorder %s23, 0
    %p254 = por %p252, %p253
    %p255 = scmp.ne.s32.totalorder %s241, %s242
    %p256 = scmp.eq.s32.totalorder %s24, 1
    %p257 = por %p255, %p256
    %p259 = scmp.ne.s32.totalorder %s242, %s258
    %p260 = scmp.eq.s32.totalorder %s24, 0
    %p261 = por %p259, %p260
    %s262 = ssub.s32 %s25, %s37
    %s263 = ssub.s32 %s26, %s33
    %s264 = sor.u32 %s262, %s263
    %p265 = scmp.eq.s32.totalorder %s264, 0
    %s267 = sadd.s32 %s266, 1
    %s268 = scalar_select %p265, %s266, %s267
    %p271 = pneg %p265
    %p272 = scmp.eq.s32.totalorder %s18, 1
    %p273 = por %p271, %p272
    %p274 = scmp.ne.s32.totalorder %s266, %s269
    %p275 = scmp.eq.s32.totalorder %s18, 0
    %p276 = por %p274, %p275
    %p277 = scmp.ne.s32.totalorder %s266, %s269
    %p278 = scmp.eq.s32.totalorder %s23, 1
    %p279 = por %p277, %p278
    %p280 = scmp.ne.s32.totalorder %s269, %s270
    %p281 = scmp.eq.s32.totalorder %s23, 0
    %p282 = por %p280, %p281
    %p283 = scmp.ne.s32.totalorder %s269, %s270
    %p284 = scmp.eq.s32.totalorder %s24, 1
    %p285 = por %p283, %p284
    %p287 = scmp.ne.s32.totalorder %s270, %s286
    %p288 = scmp.eq.s32.totalorder %s24, 0
    %p289 = por %p287, %p288
    %s290 = ssub.s32 %s25, %s37
    %s291 = ssub.s32 %s26, %s33
    %s292 = sor.u32 %s290, %s291
    %p293 = scmp.eq.s32.totalorder %s292, 0
    %s295 = sadd.s32 %s294, 1
    %s296 = scalar_select %p293, %s294, %s295
    %p299 = pneg %p293
    %p300 = scmp.eq.s32.totalorder %s18, 1
    %p301 = por %p299, %p300
    %p302 = scmp.ne.s32.totalorder %s294, %s297
    %p303 = scmp.eq.s32.totalorder %s18, 0
    %p304 = por %p302, %p303
    %p305 = scmp.ne.s32.totalorder %s294, %s297
    %p306 = scmp.eq.s32.totalorder %s23, 1
    %p307 = por %p305, %p306
    %p308 = scmp.ne.s32.totalorder %s297, %s298
    %p309 = scmp.eq.s32.totalorder %s23, 0
    %p310 = por %p308, %p309
    %p311 = scmp.ne.s32.totalorder %s297, %s298
    %p312 = scmp.eq.s32.totalorder %s24, 1
    %p313 = por %p311, %p312
    %p315 = scmp.ne.s32.totalorder %s298, %s314
    %p316 = scmp.eq.s32.totalorder %s24, 0
    %p317 = por %p315, %p316
    %p318 = scmp.le.s32.totalorder 1, %s18
    %p319 = scmp.lt.s32.totalorder %s18, 3
    %p320 = pnand %p318, %p319
    %p321 = pneg %p320
    // Predicated region
    $region9: #{transformer_forward.4} parent=5 // pred_check
      _
    $region10: #{transformer_forward.4} parent=5 // pred_check_branch
      %323 = sbr.rel (%p320) target = $region12
    $region11: #{transformer_forward.4} parent=5 // pred_region
      %s324 = ssub.s32 %s18, 1
      // Predicated region
      $region13: #{transformer_forward.4} parent=11 // pred_check
        %p325 = pneg %p79
      $region14: #{transformer_forward.4} parent=11 // pred_check_branch
        %327 = sbr.rel (%p325) target = $region16
      $region15: #{transformer_forward.4} parent=11 // pred_region
        _
      $region16: #{transformer_forward.4} parent=11 // pred_fallthru
        _
      // Predicated region
      $region17: #{transformer_forward.4} parent=11 // pred_check
        %p328 = pneg %p100
      $region18: #{transformer_forward.4} parent=11 // pred_check_branch
        %330 = sbr.rel (%p328) target = $region20
      $region19: #{transformer_forward.4} parent=11 // pred_region
        _
      $region20: #{transformer_forward.4} parent=11 // pred_fallthru
        _
      // Predicated region
      $region21: #{transformer_forward.4} parent=11 // pred_check
        %p331 = pneg %p121
      $region22: #{transformer_forward.4} parent=11 // pred_check_branch
        %333 = sbr.rel (%p331) target = $region24
      $region23: #{transformer_forward.4} parent=11 // pred_region
        _
      $region24: #{transformer_forward.4} parent=11 // pred_fallthru
        _
      // Predicated region
      $region25: #{transformer_forward.4} parent=11 // pred_check
        %p334 = pneg %p142
      $region26: #{transformer_forward.4} parent=11 // pred_check_branch
        %336 = sbr.rel (%p334) target = $region28
      $region27: #{transformer_forward.4} parent=11 // pred_region
        _
      $region28: #{transformer_forward.4} parent=11 // pred_fallthru
        _
      // Predicated region
      $region29: #{transformer_forward.4} parent=11 // pred_check
        %p337 = pneg %p163
      $region30: #{transformer_forward.4} parent=11 // pred_check_branch
        %339 = sbr.rel (%p337) target = $region32
      $region31: #{transformer_forward.4} parent=11 // pred_region
        _
      $region32: #{transformer_forward.4} parent=11 // pred_fallthru
        _
      // Predicated region
      $region33: #{transformer_forward.4} parent=11 // pred_check
        %p340 = pneg %p184
      $region34: #{transformer_forward.4} parent=11 // pred_check_branch
        %342 = sbr.rel (%p340) target = $region36
      $region35: #{transformer_forward.4} parent=11 // pred_region
        _
      $region36: #{transformer_forward.4} parent=11 // pred_fallthru
        _
      // Predicated region
      $region37: #{transformer_forward.4} parent=11 // pred_check
        %p343 = pneg %p205
      $region38: #{transformer_forward.4} parent=11 // pred_check_branch
        %345 = sbr.rel (%p343) target = $region40
      $region39: #{transformer_forward.4} parent=11 // pred_region
        _
      $region40: #{transformer_forward.4} parent=11 // pred_fallthru
        _
      // Predicated region
      $region41: #{transformer_forward.4} parent=11 // pred_check
        %p346 = pneg %p226
      $region42: #{transformer_forward.4} parent=11 // pred_check_branch
        %348 = sbr.rel (%p346) target = $region44
      $region43: #{transformer_forward.4} parent=11 // pred_region
        _
      $region44: #{transformer_forward.4} parent=11 // pred_fallthru
        _
    $region12: #{transformer_forward.4} parent=5 // pred_fallthru
      _
    %p349 = scmp.lt.s32.totalorder %s18, 2
    // Predicated region
    $region45: #{transformer_forward.4} parent=5 // pred_check
      %p350 = pneg %p349
    $region46: #{transformer_forward.4} parent=5 // pred_check_branch
      %352 = sbr.rel (%p350) target = $region48
    $region47: #{transformer_forward.4} parent=5 // pred_region
      // Predicated region
      $region49: #{transformer_forward.4} parent=47 // pred_check
        %p353 = pneg %p52
      $region50: #{transformer_forward.4} parent=47 // pred_check_branch
        %355 = sbr.rel (%p353) target = $region52
      $region51: #{transformer_forward.4} parent=47 // pred_region
        %p356 = scmp.lt.s32.totalorder %s25, 1
        %s357 = scalar_select %p356, %s25, 1
        %p358 = scmp.lt.s32.totalorder %s26, 0
        %s359 = scalar_select %p358, %s26, 0
        %s360 = sadd.s32 %s359, %s357
        %s361 = smul.addr %s360, 8
        %s362 = scalar_lea.vmem %s0, %s361
      $region52: #{transformer_forward.4} parent=47 // pred_fallthru
        _
    $region48: #{transformer_forward.4} parent=5 // pred_fallthru
      _
    %p363 = scmp.le.s32.totalorder 1, %s18
    %p364 = scmp.lt.s32.totalorder %s18, 3
    %p365 = pnand %p363, %p364
    %p366 = pneg %p365
    // Predicated region
    $region53: #{transformer_forward.4} parent=5 // pred_check
      _
    $region54: #{transformer_forward.4} parent=5 // pred_check_branch
      %368 = sbr.rel (%p365) target = $region56
    $region55: #{transformer_forward.4} parent=5 // pred_region
      %s369 = ssub.s32 %s18, 1
      %p370 = scmp.lt.s32.totalorder %s27, 1
      %s371 = scalar_select %p370, %s27, 1
      %p372 = scmp.lt.s32.totalorder %s28, 0
      %s373 = scalar_select %p372, %s28, 0
      %s374 = sadd.s32 %s373, %s371
      %s375 = smul.addr %s374, 8
      %s376 = scalar_lea.vmem %s0, %s375
      %p377 = pneg %p58
      %p378 = pneg %p55
      %p379 = pneg %p79
      %p380 = pneg %p76
      %p381 = pneg %p100
      %p382 = pneg %p97
      %p383 = pneg %p121
      %p384 = pneg %p118
      %p385 = pneg %p142
      %p386 = pneg %p139
      %p387 = pneg %p163
      %p388 = pneg %p160
      %p389 = pneg %p184
      %p390 = pneg %p181
      %p391 = pneg %p205
      %p392 = pneg %p202
      %p393 = pneg %p226
      %p394 = pneg %p223
      %p395 = pneg %p254
      %p396 = pneg %p251
      %p397 = scmp.lt.s32.totalorder %s27, 1
      %s398 = scalar_select %p397, %s27, 1
      %p399 = scmp.lt.s32.totalorder %s28, 0
      %s400 = scalar_select %p399, %s28, 0
      %s401 = smul.addr %s398, 2
      %s402 = sadd.s32 %s400, %s401
      %s403 = smul.addr %s402, 4
      %s404 = scalar_lea.vmem %s9, %s403
      %p405 = pneg %p282
      %p406 = pneg %p279
      %p407 = scmp.lt.s32.totalorder %s27, 1
      %s408 = scalar_select %p407, %s27, 1
      %p409 = scmp.lt.s32.totalorder %s28, 0
      %s410 = scalar_select %p409, %s28, 0
      %s411 = smul.addr %s408, 2
      %s412 = sadd.s32 %s410, %s411
      %s413 = smul.addr %s412, 4
      %s414 = scalar_lea.vmem %s10, %s413
      %p415 = pneg %p310
      %p416 = pneg %p307
      %p417 = scmp.lt.s32.totalorder %s27, 1
      %s418 = scalar_select %p417, %s27, 1
      %p419 = scmp.lt.s32.totalorder %s28, 0
      %s420 = scalar_select %p419, %s28, 0
      %s421 = smul.addr %s418, 2
      %s422 = sadd.s32 %s420, %s421
      %s423 = smul.addr %s422, 4
      %s424 = scalar_lea.vmem %s11, %s423
      %p425 = scmp.lt.s32.totalorder %s27, 1
      %s426 = scalar_select %p425, %s27, 1
      %p427 = scmp.lt.s32.totalorder %s28, 0
      %s428 = scalar_select %p427, %s28, 0
      %s429 = sadd.s32 %s428, %s426
      %s430 = smul.addr %s429, 8
      %s431 = scalar_lea.vmem %s0, %s430
      %p432 = scmp.lt.s32.totalorder %s27, 1
      %s433 = scalar_select %p432, %s27, 1
      %p434 = scmp.lt.s32.totalorder %s28, 0
      %s435 = scalar_select %p434, %s28, 0
      %s436 = smul.addr %s433, 2
      %s437 = sadd.s32 %s435, %s436
      %s438 = smul.addr %s437, 4
      %s439 = scalar_lea.vmem %s9, %s438
      %p440 = scmp.lt.s32.totalorder %s27, 1
      %s441 = scalar_select %p440, %s27, 1
      %p442 = scmp.lt.s32.totalorder %s28, 0
      %s443 = scalar_select %p442, %s28, 0
      %s444 = smul.addr %s441, 2
      %s445 = sadd.s32 %s443, %s444
      %s446 = smul.addr %s445, 4
      %s447 = scalar_lea.vmem %s10, %s446
      %p448 = scmp.lt.s32.totalorder %s27, 1
      %s449 = scalar_select %p448, %s27, 1
      %p450 = scmp.lt.s32.totalorder %s28, 0
      %s451 = scalar_select %p450, %s28, 0
      %s452 = smul.addr %s449, 2
      %s453 = sadd.s32 %s451, %s452
      %s454 = smul.addr %s453, 4
      %s455 = scalar_lea.vmem %s11, %s454
      %v457 = vld [vmem:[%s431] sm:$0xff]
      %v458 = vld [vmem:[%s1] sm:$0x1]
      %v459 = vld [vmem:[%s2] sm:$0x1]
      %vm460 = vcmask 261120
      %v461 = vsel %vm460, %v457, 0.0
      %462 = vadd.xlane.f32.xlu0 %v461
      %v463 = vpop.xlane.xlu0 %462
      %v464 = vrcp.pop 32.0
      %v465 = vmul.f32 %v463, %v464
      %v466 = vsub.f32 %v457, %v465
      %v467 = vmul.f32 %v466, %v466
      %v468 = vsel %vm460, %v467, 0.0
      %469 = vadd.xlane.f32.xlu0 %v468
      %v470 = vpop.xlane.xlu0 %469
      %v471 = vmul.f32 %v470, %v464
      %v472 = vadd.f32 %v471, 1e-05
      %v473 = vrsqrt.pop %v472
      %v474 = vmul.f32 %v466, %v473
      %v476 = vlaneseq
      %v477 = vshrl.u32 %v476, 7
      %v478 = vsub.s32 0, %v477
      %v479 = vrot.slane %v458, %v478
      %v481 = vmul.f32 %v474, %v479
      %v483 = vlaneseq
      %v484 = vshrl.u32 %v483, 7
      %v485 = vsub.s32 0, %v484
      %v486 = vrot.slane %v459, %v485
      %v488 = vadd.f32 %v481, %v486
      %v489 = vpack.c.bf16 %v488, %v488
      %v490 = vld [vmem:[%s3] sm:$0xf]
      %v491 = vld [vmem:[%s3 + $0x4] sm:$0xf]
      %v492 = vld [vmem:[%s3 + $0x8] sm:$0xf]
      %v493 = vld [vmem:[%s3 + $0xc] sm:$0xf]
      %v494 = vld [vmem:[%s6] sm:$0x1]
      %v496 = vlaneseq
      %v497 = vshrl.u32 %v496, 7
      %v498 = vsub.s32 0, %v497
      %v499 = vrot.slane %v494, %v498
      %v505 = vunpack.c.l.b16 %v490
      %v506 = vunpack.c.l.b16 %v491
      %v507 = vunpack.c.l.b16 %v492
      %v508 = vunpack.c.l.b16 %v493
      %v509 = vpack.c.b16 %v506, %v505
      %v510 = vpack.c.b16 %v508, %v507
      %v514 = vsel %vm460, %v489, 0
      %516 = vmatprep.subr.bf16.mxu0 0
      %517 = vmatpush1.bf16.msra.mxu0 0
      %518 = vmatprep.subr.bf16.mxu0 0
      %519 = vmatpush1.bf16.msra.mxu0 0
      %520 = vmatprep.subr.bf16.mxu0 0
      %521 = vmatpush1.bf16.msra.mxu0 0
      %522 = vmatprep.subr.bf16.mxu0 0
      %523 = vmatpush1.bf16.msra.mxu0 0
      %524 = vmatprep.subr.bf16.mxu0 0
      %525 = vmatpush1.bf16.msra.mxu0 0
      %526 = vmatprep.subr.bf16.mxu0 0
      %527 = vmatpush1.bf16.msra.mxu0 0
      %528 = vmatprep.subr.bf16.mxu0 0
      %529 = vmatpush1.bf16.msra.mxu0 %v510
      %530 = vmatprep.subr.bf16.mxu0 0
      %531 = vmatpush1.bf16.msra.mxu0 %v509
      %532 = vmatprep.subr.bf16.mxu0 0
      %533 = vmatpush2.bf16.msra.mxu0 0
      %534 = vmatprep.subr.bf16.mxu0 0
      %535 = vmatpush2.bf16.msra.mxu0 0
      %536 = vmatprep.subr.bf16.mxu0 0
      %537 = vmatpush2.bf16.msra.mxu0 0
      %538 = vmatprep.subr.bf16.mxu0 0
      %539 = vmatpush2.bf16.msra.mxu0 0
      %540 = vmatprep.subr.bf16.mxu0 0
      %541 = vmatpush2.bf16.msra.mxu0 0
      %542 = vmatprep.subr.bf16.mxu0 0
      %543 = vmatpush2.bf16.msra.mxu0 0
      %544 = vmatprep.subr.bf16.mxu0 0
      %545 = vmatpush2.bf16.msra.mxu0 0
      %546 = vmatprep.subr.bf16.mxu0 0
      %547 = vmatpush2.bf16.msra.mxu0 0
      %548 = vmatprep.mubr.bf16.mxu0 0
      %549 = vmatmul.mubr.bf16.gmra.mxu0 %v514
      %v550 = vpop.f32.mrf.mxu0
      %v551 = vadd.f32 %v499, %v550
      %v552 = vpop.f32.mrf.mxu0
      %v553 = vpop.f32.mrf.mxu0
      %v554 = vpop.f32.mrf.mxu0
      %555 = vdwg.mxu0
      %v556 = vld [vmem:[%s4] sm:$0xf]
      %v557 = vld [vmem:[%s4 + $0x4] sm:$0xf]
      %v558 = vld [vmem:[%s4 + $0x8] sm:$0xf]
      %v559 = vld [vmem:[%s4 + $0xc] sm:$0xf]
      %v560 = vld [vmem:[%s7] sm:$0x1]
      %v562 = vlaneseq
      %v563 = vshrl.u32 %v562, 7
      %v564 = vsub.s32 0, %v563
      %v565 = vrot.slane %v560, %v564
      %v571 = vunpack.c.l.b16 %v556
      %v572 = vunpack.c.l.b16 %v557
      %v573 = vunpack.c.l.b16 %v558
      %v574 = vunpack.c.l.b16 %v559
      %v575 = vpack.c.b16 %v572, %v571
      %v576 = vpack.c.b16 %v574, %v573
      %579 = vmatprep.subr.bf16.mxu0 0
      %580 = vmatpush1.bf16.msra.mxu0 0
      %581 = vmatprep.subr.bf16.mxu0 0
      %582 = vmatpush1.bf16.msra.mxu0 0
      %583 = vmatprep.subr.bf16.mxu0 0
      %584 = vmatpush1.bf16.msra.mxu0 0
      %585 = vmatprep.subr.bf16.mxu0 0
      %586 = vmatpush1.bf16.msra.mxu0 0
      %587 = vmatprep.subr.bf16.mxu0 0
      %588 = vmatpush1.bf16.msra.mxu0 0
      %589 = vmatprep.subr.bf16.mxu0 0
      %590 = vmatpush1.bf16.msra.mxu0 0
      %591 = vmatprep.subr.bf16.mxu0 0
      %592 = vmatpush1.bf16.msra.mxu0 %v576
      %593 = vmatprep.subr.bf16.mxu0 0
      %594 = vmatpush1.bf16.msra.mxu0 %v575
      %595 = vmatprep.subr.bf16.mxu0 0
      %596 = vmatpush2.bf16.msra.mxu0 0
      %597 = vmatprep.subr.bf16.mxu0 0
      %598 = vmatpush2.bf16.msra.mxu0 0
      %599 = vmatprep.subr.bf16.mxu0 0
      %600 = vmatpush2.bf16.msra.mxu0 0
      %601 = vmatprep.subr.bf16.mxu0 0
      %602 = vmatpush2.bf16.msra.mxu0 0
      %603 = vmatprep.subr.bf16.mxu0 0
      %604 = vmatpush2.bf16.msra.mxu0 0
      %605 = vmatprep.subr.bf16.mxu0 0
      %606 = vmatpush2.bf16.msra.mxu0 0
      %607 = vmatprep.subr.bf16.mxu0 0
      %608 = vmatpush2.bf16.msra.mxu0 0
      %609 = vmatprep.subr.bf16.mxu0 0
      %610 = vmatpush2.bf16.msra.mxu0 0
      %611 = vmatprep.mubr.bf16.mxu0 0
      %612 = vmatmul.mubr.bf16.gmra.mxu0 %v514
      %v613 = vpop.f32.mrf.mxu0
      %v614 = vadd.f32 %v565, %v613
      %v615 = vpop.f32.mrf.mxu0
      %v616 = vpop.f32.mrf.mxu0
      %v617 = vpop.f32.mrf.mxu0
      %618 = vdwg.mxu0
      %v619 = vld [vmem:[%s5] sm:$0xf]
      %v620 = vld [vmem:[%s5 + $0x4] sm:$0xf]
      %v621 = vld [vmem:[%s5 + $0x8] sm:$0xf]
      %v622 = vld [vmem:[%s5 + $0xc] sm:$0xf]
      %v623 = vld [vmem:[%s8] sm:$0x1]
      %v625 = vlaneseq
      %v626 = vshrl.u32 %v625, 7
      %v627 = vsub.s32 0, %v626
      %v628 = vrot.slane %v623, %v627
      %v634 = vunpack.c.l.b16 %v619
      %v635 = vunpack.c.l.b16 %v620
      %v636 = vunpack.c.l.b16 %v621
      %v637 = vunpack.c.l.b16 %v622
      %v638 = vpack.c.b16 %v635, %v634
      %v639 = vpack.c.b16 %v637, %v636
      %642 = vmatprep.subr.bf16.mxu0 0
      %643 = vmatpush1.bf16.msra.mxu0 0
      %644 = vmatprep.subr.bf16.mxu0 0
      %645 = vmatpush1.bf16.msra.mxu0 0
      %646 = vmatprep.subr.bf16.mxu0 0
      %647 = vmatpush1.bf16.msra.mxu0 0
      %648 = vmatprep.subr.bf16.mxu0 0
      %649 = vmatpush1.bf16.msra.mxu0 0
      %650 = vmatprep.subr.bf16.mxu0 0
      %651 = vmatpush1.bf16.msra.mxu0 0
      %652 = vmatprep.subr.bf16.mxu0 0
      %653 = vmatpush1.bf16.msra.mxu0 0
      %654 = vmatprep.subr.bf16.mxu0 0
      %655 = vmatpush1.bf16.msra.mxu0 %v639
      %656 = vmatprep.subr.bf16.mxu0 0
      %657 = vmatpush1.bf16.msra.mxu0 %v638
      %658 = vmatprep.subr.bf16.mxu0 0
      %659 = vmatpush2.bf16.msra.mxu0 0
      %660 = vmatprep.subr.bf16.mxu0 0
      %661 = vmatpush2.bf16.msra.mxu0 0
      %662 = vmatprep.subr.bf16.mxu0 0
      %663 = vmatpush2.bf16.msra.mxu0 0
      %664 = vmatprep.subr.bf16.mxu0 0
      %665 = vmatpush2.bf16.msra.mxu0 0
      %666 = vmatprep.subr.bf16.mxu0 0
      %667 = vmatpush2.bf16.msra.mxu0 0
      %668 = vmatprep.subr.bf16.mxu0 0
      %669 = vmatpush2.bf16.msra.mxu0 0
      %670 = vmatprep.subr.bf16.mxu0 0
      %671 = vmatpush2.bf16.msra.mxu0 0
      %672 = vmatprep.subr.bf16.mxu0 0
      %673 = vmatpush2.bf16.msra.mxu0 0
      %674 = vmatprep.mubr.bf16.mxu0 0
      %675 = vmatmul.mubr.bf16.gmra.mxu0 %v514
      %v676 = vpop.f32.mrf.mxu0
      %v677 = vadd.f32 %v628, %v676
      %v678 = vpop.f32.mrf.mxu0
      %v679 = vpop.f32.mrf.mxu0
      %v680 = vpop.f32.mrf.mxu0
      %681 = vdwg.mxu0
      %v682 = vmul.f32 %v551, 0.5
      %v683 = vpack.c.bf16 %v682, %v682
      %vm684 = vcmask 27648
      %685 = vst.msk [vmem:[%s439] sm:$0xf] %vm684, %v683
      %v686 = vpack.c.bf16 %v614, %v614
      %687 = vst.msk [vmem:[%s447] sm:$0xf] %vm684, %v686
      %v688 = vpack.c.bf16 %v677, %v677
      %689 = vst.msk [vmem:[%s455] sm:$0xf] %vm684, %v688
      %v691 = vunpack.c.l.b16 %v683
      %v692 = vpack.c.b16 %v691, %v691
      %693 = vrot.lane.b32.xlu0 %v692, 124
      %v694 = vpop.permute.xlu0 %693
      %s696 = scalar_lea.vmem %s439, 4
      %697 = vst.msk [vmem:[%s696] sm:$0xf] %vm684, %v694
      %v699 = vunpack.c.l.b16 %v686
      %v700 = vpack.c.b16 %v699, %v699
      %701 = vrot.lane.b32.xlu0 %v700, 124
      %v702 = vpop.permute.xlu0 %701
      %s704 = scalar_lea.vmem %s447, 4
      %705 = vst.msk [vmem:[%s704] sm:$0xf] %vm684, %v702
      %v707 = vunpack.c.l.b16 %v688
      %v708 = vpack.c.b16 %v707, %v707
      %709 = vrot.lane.b32.xlu0 %v708, 124
      %v710 = vpop.permute.xlu0 %709
      %s712 = scalar_lea.vmem %s455, 4
      %713 = vst.msk [vmem:[%s712] sm:$0xf] %vm684, %v710
      %p714 = scmp.lt.s32.totalorder %s27, 1
      %s715 = scalar_select %p714, %s27, 1
      %p716 = scmp.lt.s32.totalorder %s28, 0
      %s717 = scalar_select %p716, %s28, 0
      %s718 = smul.addr %s715, 2
      %s719 = sadd.s32 %s717, %s718
      %s720 = smul.addr %s719, 4
      %s721 = scalar_lea.vmem %s9, %s720
      %p722 = scmp.lt.s32.totalorder %s27, 1
      %s723 = scalar_select %p722, %s27, 1
      %p724 = scmp.lt.s32.totalorder %s28, 0
      %s725 = scalar_select %p724, %s28, 0
      %s726 = smul.addr %s723, 2
      %s727 = sadd.s32 %s725, %s726
      %s728 = smul.addr %s727, 4
      %s729 = scalar_lea.vmem %s10, %s728
      %p730 = scmp.lt.s32.totalorder %s27, 1
      %s731 = scalar_select %p730, %s27, 1
      %p732 = scmp.lt.s32.totalorder %s28, 0
      %s733 = scalar_select %p732, %s28, 0
      %s734 = smul.addr %s731, 2
      %s735 = sadd.s32 %s733, %s734
      %s736 = smul.addr %s735, 4
      %s737 = scalar_lea.vmem %s11, %s736
      // Predicated region
      $region57: #{transformer_forward.4} parent=55 // pred_check
        %p738 = pneg %p251
      $region58: #{transformer_forward.4} parent=55 // pred_check_branch
        %740 = sbr.rel (%p738) target = $region60
      $region59: #{transformer_forward.4} parent=55 // pred_region
        _
      $region60: #{transformer_forward.4} parent=55 // pred_fallthru
        _
      // Predicated region
      $region61: #{transformer_forward.4} parent=55 // pred_check
        %p741 = pneg %p279
      $region62: #{transformer_forward.4} parent=55 // pred_check_branch
        %743 = sbr.rel (%p741) target = $region64
      $region63: #{transformer_forward.4} parent=55 // pred_region
        _
      $region64: #{transformer_forward.4} parent=55 // pred_fallthru
        _
      // Predicated region
      $region65: #{transformer_forward.4} parent=55 // pred_check
        %p744 = pneg %p307
      $region66: #{transformer_forward.4} parent=55 // pred_check_branch
        %746 = sbr.rel (%p744) target = $region68
      $region67: #{transformer_forward.4} parent=55 // pred_region
        _
      $region68: #{transformer_forward.4} parent=55 // pred_fallthru
        _
    $region56: #{transformer_forward.4} parent=5 // pred_fallthru
      _
    %p747 = scmp.le.s32.totalorder 2, %s18
    // Predicated region
    $region69: #{transformer_forward.4} parent=5 // pred_check
      %p748 = pneg %p747
    $region70: #{transformer_forward.4} parent=5 // pred_check_branch
      %750 = sbr.rel (%p748) target = $region72
    $region71: #{transformer_forward.4} parent=5 // pred_region
      %s751 = ssub.s32 %s18, 2
      // Predicated region
      $region73: #{transformer_forward.4} parent=71 // pred_check
        %p752 = pneg %p257
      $region74: #{transformer_forward.4} parent=71 // pred_check_branch
        %754 = sbr.rel (%p752) target = $region76
      $region75: #{transformer_forward.4} parent=71 // pred_region
        %p755 = scmp.lt.s32.totalorder %s29, 1
        %s756 = scalar_select %p755, %s29, 1
        %p757 = scmp.lt.s32.totalorder %s30, 0
        %s758 = scalar_select %p757, %s30, 0
        %s759 = smul.addr %s756, 2
        %s760 = sadd.s32 %s758, %s759
        %s761 = smul.addr %s760, 4
        %s762 = scalar_lea.vmem %s9, %s761
      $region76: #{transformer_forward.4} parent=71 // pred_fallthru
        _
      // Predicated region
      $region77: #{transformer_forward.4} parent=71 // pred_check
        %p763 = pneg %p285
      $region78: #{transformer_forward.4} parent=71 // pred_check_branch
        %765 = sbr.rel (%p763) target = $region80
      $region79: #{transformer_forward.4} parent=71 // pred_region
        %p766 = scmp.lt.s32.totalorder %s29, 1
        %s767 = scalar_select %p766, %s29, 1
        %p768 = scmp.lt.s32.totalorder %s30, 0
        %s769 = scalar_select %p768, %s30, 0
        %s770 = smul.addr %s767, 2
        %s771 = sadd.s32 %s769, %s770
        %s772 = smul.addr %s771, 4
        %s773 = scalar_lea.vmem %s10, %s772
      $region80: #{transformer_forward.4} parent=71 // pred_fallthru
        _
      // Predicated region
      $region81: #{transformer_forward.4} parent=71 // pred_check
        %p774 = pneg %p313
      $region82: #{transformer_forward.4} parent=71 // pred_check_branch
        %776 = sbr.rel (%p774) target = $region84
      $region83: #{transformer_forward.4} parent=71 // pred_region
        %p777 = scmp.lt.s32.totalorder %s29, 1
        %s778 = scalar_select %p777, %s29, 1
        %p779 = scmp.lt.s32.totalorder %s30, 0
        %s780 = scalar_select %p779, %s30, 0
        %s781 = smul.addr %s778, 2
        %s782 = sadd.s32 %s780, %s781
        %s783 = smul.addr %s782, 4
        %s784 = scalar_lea.vmem %s11, %s783
      $region84: #{transformer_forward.4} parent=71 // pred_fallthru
        _
    $region72: #{transformer_forward.4} parent=5 // pred_fallthru
      _
  $region6: #{transformer_forward.4} parent=0 // loop_footer
    %s22 = sadd.s32 1, %s18
  $region7: #{transformer_forward.4} parent=0 // loop_footer_branch
    %17 = sbr.rel target = $region3
  $region8: #{transformer_forward.4} parent=0 // loop_exit
    _

// kernel: transformer_forward.7
$region0: #{transformer_forward.7}
  #allocation0 [shape = 'u32[]', space=smem, size = 0x4, offset = 0x4, fixed_abs, tag = 'smem constant byte address 0x4 - core index']
  #allocation1 [shape = 'u32[144,128]{1,0:T(1,128)}', space=vmem, size = 0x12000, scoped, tag = 'internal scratch']
  #allocation2 [shape = 'f32[2,8,1]{2,1,0:T(8,128)}', space=vmem, size = 0x2000, scoped, tag = 'scratch operand']
  #allocation3 [shape = 'f32[2,8,1]{2,1,0:T(8,128)}', space=vmem, size = 0x2000, scoped, tag = 'scratch operand']
  #allocation4 [shape = 'f32[2,8,4]{2,1,0:T(8,128)}', space=vmem, size = 0x2000, scoped, tag = 'scratch operand']
  %s0 = inlined_call_operand.vmem [shape: f32[2,8,32], index: 0, kind: input, shape index: {}]
  %s1 = inlined_call_operand.vmem [shape: bf16[2,2,8,4], index: 1, kind: input, shape index: {}]
  %s2 = inlined_call_operand.vmem [shape: bf16[2,2,8,4], index: 2, kind: input, shape index: {}]
  %s3 = inlined_call_operand.vmem [shape: bf16[2,2,8,4], index: 3, kind: input, shape index: {}]
  %s4 = inlined_call_operand.vmem [shape: bf16[2,4,32], index: 4, kind: input, shape index: {}]
  %s5 = inlined_call_operand.vmem [shape: f32[1,32], index: 5, kind: input, shape index: {}]
  %s6 = inlined_call_operand.vmem [shape: f32[1,32], index: 6, kind: input, shape index: {}]
  %s7 = inlined_call_operand.vmem [shape: f32[1,32], index: 7, kind: input, shape index: {}]
  %s8 = inlined_call_operand.vmem [shape: bf16[32,32], index: 8, kind: input, shape index: {}]
  %s9 = inlined_call_operand.vmem [shape: f32[1,32], index: 9, kind: input, shape index: {}]
  %s10 = inlined_call_operand.vmem [shape: bf16[32,32], index: 10, kind: input, shape index: {}]
  %s11 = inlined_call_operand.vmem [shape: f32[1,32], index: 11, kind: input, shape index: {}]
  %s12 = inlined_call_operand.hbm [shape: f32[2,8,32], index: 12, kind: output, shape index: {}]
  %s13 = sld [smem:[#allocation0]]
  $region89: #{transformer_forward.7} parent=0
    _
  %s15 = ssub.s32 1, %s13
  %s16 = scalar_select 0, %s15, %s13
  $region1: #{transformer_forward.7} parent=0
    #allocation5 [shape = 'u8[8192]{0}', space=vmem, size = 0x2000, scoped, tag = 'output window, operand 0']
    #allocation6 [shape = 's32[2]{0}', space=sflag, size = 0x8, scoped, tag = 'scoped memory for transformer_forward.7']
    %17 = vsyncpa [#allocation6], 0
    %s18 = scalar_lea.sflag [#allocation6], 1
    %19 = vsyncpa %s18, 0
    loop: start=0, step=1, limit=4
    $region2: #{transformer_forward.7} parent=1 // loop_pre_header
      _
    $region3: #{transformer_forward.7} parent=1 // loop_header
      %s21 = sphi 0, %s25
      %p22 = scmp.ge.s32.totalorder %s21, 4
      %s28 = sphi 0, %s47
      %s29 = sphi 0, %s43
      %s30 = sphi 0, %s39
      %s31 = sphi 0, %s28
      %s32 = sphi 0, %s29
      %s33 = sphi 0, %s30
      %s34 = sphi 0, %s31
      %s35 = sphi 0, %s32
      %s36 = sphi 0, %s33
      %s52 = sphi 0, %s54
      %s55 = sphi 0, %s52
      %s56 = sphi 0, %s55
      %s72 = sphi 0, %s56
      %s80 = sphi 0, %s82
      %s83 = sphi 0, %s80
      %s84 = sphi 0, %s83
      %s100 = sphi 0, %s84
      %s108 = sphi 0, %s110
      %s111 = sphi 0, %s108
      %s112 = sphi 0, %s111
      %s128 = sphi 0, %s112
      %s136 = sphi 0, %s138
      %s139 = sphi 0, %s136
      %s140 = sphi 0, %s139
      %s156 = sphi 0, %s140
      %s160 = sphi 0, %s160
      %s162 = sphi 0, %s160
      %s163 = sphi 0, %s162
      %s177 = sphi 0, %s163
      %s181 = sphi 0, %s181
      %s183 = sphi 0, %s181
      %s184 = sphi 0, %s183
      %s198 = sphi 0, %s184
      %s202 = sphi 0, %s202
      %s204 = sphi 0, %s202
      %s205 = sphi 0, %s204
      %s219 = sphi 0, %s205
      %s223 = sphi 0, %s223
      %s225 = sphi 0, %s223
      %s226 = sphi 0, %s225
      %s240 = sphi 0, %s226
      %s244 = sphi 0, %s244
      %s246 = sphi 0, %s244
      %s247 = sphi 0, %s246
      %s261 = sphi 0, %s247
      %s265 = sphi 0, %s265
      %s267 = sphi 0, %s265
      %s268 = sphi 0, %s267
      %s282 = sphi 0, %s268
      %s286 = sphi 0, %s286
      %s288 = sphi 0, %s286
      %s289 = sphi 0, %s288
      %s303 = sphi 0, %s289
      %s307 = sphi 0, %s307
      %s309 = sphi 0, %s307
      %s310 = sphi 0, %s309
      %s324 = sphi 0, %s310
      %s332 = sphi 0, %s334
      %s335 = sphi 0, %s332
      %s336 = sphi 0, %s335
      %s352 = sphi 0, %s336
    $region4: #{transformer_forward.7} parent=1 // loop_header_branch
      %24 = sbr.rel (%p22) target = $region8
    $region5: #{transformer_forward.7} parent=1 // loop_body
      %s26 = ssub.s32 %s21, 1
      %s27 = ssub.s32 %s21, 2
      %s37 = sadd.s32 1, %s30
      %p38 = scmp.ge.s32.totalorder %s37, 1
      %s39 = scalar_select %p38, 0, %s37
      %s40 = sadd.s32 1, %s29
      %s41 = scalar_select %p38, %s40, %s29
      %p42 = scmp.ge.s32.totalorder %s41, 1
      %s43 = scalar_select %p42, 0, %s41
      %s44 = sadd.s32 1, %s28
      %s45 = scalar_select %p42, %s44, %s28
      %p46 = scmp.ge.s32.totalorder %s45, 2
      %s47 = scalar_select %p46, 0, %s45
      %s48 = ssub.s32 %s28, %s47
      %s49 = ssub.s32 %s29, %s43
      %s50 = sor.u32 %s48, %s49
      %p51 = scmp.eq.s32.totalorder %s50, 0
      %s53 = sadd.s32 %s52, 1
      %s54 = scalar_select %p51, %s52, %s53
      %p57 = pneg %p51
      %p58 = scmp.eq.s32.totalorder %s21, 1
      %p59 = por %p57, %p58
      %p60 = scmp.ne.s32.totalorder %s52, %s55
      %p61 = scmp.eq.s32.totalorder %s21, 0
      %p62 = por %p60, %p61
      %p63 = scmp.ne.s32.totalorder %s52, %s55
      %p64 = scmp.eq.s32.totalorder %s26, 1
      %p65 = por %p63, %p64
      %p66 = scmp.ne.s32.totalorder %s55, %s56
      %p67 = scmp.eq.s32.totalorder %s26, 0
      %p68 = por %p66, %p67
      %p69 = scmp.ne.s32.totalorder %s55, %s56
      %p70 = scmp.eq.s32.totalorder %s27, 1
      %p71 = por %p69, %p70
      %p73 = scmp.ne.s32.totalorder %s56, %s72
      %p74 = scmp.eq.s32.totalorder %s27, 0
      %p75 = por %p73, %p74
      %s76 = ssub.s32 %s28, %s47
      %s77 = ssub.s32 %s29, %s43
      %s78 = sor.u32 %s76, %s77
      %p79 = scmp.eq.s32.totalorder %s78, 0
      %s81 = sadd.s32 %s80, 1
      %s82 = scalar_select %p79, %s80, %s81
      %p85 = pneg %p79
      %p86 = scmp.eq.s32.totalorder %s21, 1
      %p87 = por %p85, %p86
      %p88 = scmp.ne.s32.totalorder %s80, %s83
      %p89 = scmp.eq.s32.totalorder %s21, 0
      %p90 = por %p88, %p89
      %p91 = scmp.ne.s32.totalorder %s80, %s83
      %p92 = scmp.eq.s32.totalorder %s26, 1
      %p93 = por %p91, %p92
      %p94 = scmp.ne.s32.totalorder %s83, %s84
      %p95 = scmp.eq.s32.totalorder %s26, 0
      %p96 = por %p94, %p95
      %p97 = scmp.ne.s32.totalorder %s83, %s84
      %p98 = scmp.eq.s32.totalorder %s27, 1
      %p99 = por %p97, %p98
      %p101 = scmp.ne.s32.totalorder %s84, %s100
      %p102 = scmp.eq.s32.totalorder %s27, 0
      %p103 = por %p101, %p102
      %s104 = ssub.s32 %s28, %s47
      %s105 = ssub.s32 %s30, %s39
      %s106 = sor.u32 %s104, %s105
      %p107 = scmp.eq.s32.totalorder %s106, 0
      %s109 = sadd.s32 %s108, 1
      %s110 = scalar_select %p107, %s108, %s109
      %p113 = pneg %p107
      %p114 = scmp.eq.s32.totalorder %s21, 1
      %p115 = por %p113, %p114
      %p116 = scmp.ne.s32.totalorder %s108, %s111
      %p117 = scmp.eq.s32.totalorder %s21, 0
      %p118 = por %p116, %p117
      %p119 = scmp.ne.s32.totalorder %s108, %s111
      %p120 = scmp.eq.s32.totalorder %s26, 1
      %p121 = por %p119, %p120
      %p122 = scmp.ne.s32.totalorder %s111, %s112
      %p123 = scmp.eq.s32.totalorder %s26, 0
      %p124 = por %p122, %p123
      %p125 = scmp.ne.s32.totalorder %s111, %s112
      %p126 = scmp.eq.s32.totalorder %s27, 1
      %p127 = por %p125, %p126
      %p129 = scmp.ne.s32.totalorder %s112, %s128
      %p130 = scmp.eq.s32.totalorder %s27, 0
      %p131 = por %p129, %p130
      %s132 = ssub.s32 %s28, %s47
      %s133 = ssub.s32 %s30, %s39
      %s134 = sor.u32 %s132, %s133
      %p135 = scmp.eq.s32.totalorder %s134, 0
      %s137 = sadd.s32 %s136, 1
      %s138 = scalar_select %p135, %s136, %s137
      %p141 = pneg %p135
      %p142 = scmp.eq.s32.totalorder %s21, 1
      %p143 = por %p141, %p142
      %p144 = scmp.ne.s32.totalorder %s136, %s139
      %p145 = scmp.eq.s32.totalorder %s21, 0
      %p146 = por %p144, %p145
      %p147 = scmp.ne.s32.totalorder %s136, %s139
      %p148 = scmp.eq.s32.totalorder %s26, 1
      %p149 = por %p147, %p148
      %p150 = scmp.ne.s32.totalorder %s139, %s140
      %p151 = scmp.eq.s32.totalorder %s26, 0
      %p152 = por %p150, %p151
      %p153 = scmp.ne.s32.totalorder %s139, %s140
      %p154 = scmp.eq.s32.totalorder %s27, 1
      %p155 = por %p153, %p154
      %p157 = scmp.ne.s32.totalorder %s140, %s156
      %p158 = scmp.eq.s32.totalorder %s27, 0
      %p159 = por %p157, %p158
      %s161 = sadd.s32 %s160, 1
      %p164 = scmp.eq.s32.totalorder %s21, 1
      %p165 = scmp.ne.s32.totalorder %s160, %s162
      %p166 = scmp.eq.s32.totalorder %s21, 0
      %p167 = por %p165, %p166
      %p168 = scmp.ne.s32.totalorder %s160, %s162
      %p169 = scmp.eq.s32.totalorder %s26, 1
      %p170 = por %p168, %p169
      %p171 = scmp.ne.s32.totalorder %s162, %s163
      %p172 = scmp.eq.s32.totalorder %s26, 0
      %p173 = por %p171, %p172
      %p174 = scmp.ne.s32.totalorder %s162, %s163
      %p175 = scmp.eq.s32.totalorder %s27, 1
      %p176 = por %p174, %p175
      %p178 = scmp.ne.s32.totalorder %s163, %s177
      %p179 = scmp.eq.s32.totalorder %s27, 0
      %p180 = por %p178, %p179
      %s182 = sadd.s32 %s181, 1
      %p185 = scmp.eq.s32.totalorder %s21, 1
      %p186 = scmp.ne.s32.totalorder %s181, %s183
      %p187 = scmp.eq.s32.totalorder %s21, 0
      %p188 = por %p186, %p187
      %p189 = scmp.ne.s32.totalorder %s181, %s183
      %p190 = scmp.eq.s32.totalorder %s26, 1
      %p191 = por %p189, %p190
      %p192 = scmp.ne.s32.totalorder %s183, %s184
      %p193 = scmp.eq.s32.totalorder %s26, 0
      %p194 = por %p192, %p193
      %p195 = scmp.ne.s32.totalorder %s183, %s184
      %p196 = scmp.eq.s32.totalorder %s27, 1
      %p197 = por %p195, %p196
      %p199 = scmp.ne.s32.totalorder %s184, %s198
      %p200 = scmp.eq.s32.totalorder %s27, 0
      %p201 = por %p199, %p200
      %s203 = sadd.s32 %s202, 1
      %p206 = scmp.eq.s32.totalorder %s21, 1
      %p207 = scmp.ne.s32.totalorder %s202, %s204
      %p208 = scmp.eq.s32.totalorder %s21, 0
      %p209 = por %p207, %p208
      %p210 = scmp.ne.s32.totalorder %s202, %s204
      %p211 = scmp.eq.s32.totalorder %s26, 1
      %p212 = por %p210, %p211
      %p213 = scmp.ne.s32.totalorder %s204, %s205
      %p214 = scmp.eq.s32.totalorder %s26, 0
      %p215 = por %p213, %p214
      %p216 = scmp.ne.s32.totalorder %s204, %s205
      %p217 = scmp.eq.s32.totalorder %s27, 1
      %p218 = por %p216, %p217
      %p220 = scmp.ne.s32.totalorder %s205, %s219
      %p221 = scmp.eq.s32.totalorder %s27, 0
      %p222 = por %p220, %p221
      %s224 = sadd.s32 %s223, 1
      %p227 = scmp.eq.s32.totalorder %s21, 1
      %p228 = scmp.ne.s32.totalorder %s223, %s225
      %p229 = scmp.eq.s32.totalorder %s21, 0
      %p230 = por %p228, %p229
      %p231 = scmp.ne.s32.totalorder %s223, %s225
      %p232 = scmp.eq.s32.totalorder %s26, 1
      %p233 = por %p231, %p232
      %p234 = scmp.ne.s32.totalorder %s225, %s226
      %p235 = scmp.eq.s32.totalorder %s26, 0
      %p236 = por %p234, %p235
      %p237 = scmp.ne.s32.totalorder %s225, %s226
      %p238 = scmp.eq.s32.totalorder %s27, 1
      %p239 = por %p237, %p238
      %p241 = scmp.ne.s32.totalorder %s226, %s240
      %p242 = scmp.eq.s32.totalorder %s27, 0
      %p243 = por %p241, %p242
      %s245 = sadd.s32 %s244, 1
      %p248 = scmp.eq.s32.totalorder %s21, 1
      %p249 = scmp.ne.s32.totalorder %s244, %s246
      %p250 = scmp.eq.s32.totalorder %s21, 0
      %p251 = por %p249, %p250
      %p252 = scmp.ne.s32.totalorder %s244, %s246
      %p253 = scmp.eq.s32.totalorder %s26, 1
      %p254 = por %p252, %p253
      %p255 = scmp.ne.s32.totalorder %s246, %s247
      %p256 = scmp.eq.s32.totalorder %s26, 0
      %p257 = por %p255, %p256
      %p258 = scmp.ne.s32.totalorder %s246, %s247
      %p259 = scmp.eq.s32.totalorder %s27, 1
      %p260 = por %p258, %p259
      %p262 = scmp.ne.s32.totalorder %s247, %s261
      %p263 = scmp.eq.s32.totalorder %s27, 0
      %p264 = por %p262, %p263
      %s266 = sadd.s32 %s265, 1
      %p269 = scmp.eq.s32.totalorder %s21, 1
      %p270 = scmp.ne.s32.totalorder %s265, %s267
      %p271 = scmp.eq.s32.totalorder %s21, 0
      %p272 = por %p270, %p271
      %p273 = scmp.ne.s32.totalorder %s265, %s267
      %p274 = scmp.eq.s32.totalorder %s26, 1
      %p275 = por %p273, %p274
      %p276 = scmp.ne.s32.totalorder %s267, %s268
      %p277 = scmp.eq.s32.totalorder %s26, 0
      %p278 = por %p276, %p277
      %p279 = scmp.ne.s32.totalorder %s267, %s268
      %p280 = scmp.eq.s32.totalorder %s27, 1
      %p281 = por %p279, %p280
      %p283 = scmp.ne.s32.totalorder %s268, %s282
      %p284 = scmp.eq.s32.totalorder %s27, 0
      %p285 = por %p283, %p284
      %s287 = sadd.s32 %s286, 1
      %p290 = scmp.eq.s32.totalorder %s21, 1
      %p291 = scmp.ne.s32.totalorder %s286, %s288
      %p292 = scmp.eq.s32.totalorder %s21, 0
      %p293 = por %p291, %p292
      %p294 = scmp.ne.s32.totalorder %s286, %s288
      %p295 = scmp.eq.s32.totalorder %s26, 1
      %p296 = por %p294, %p295
      %p297 = scmp.ne.s32.totalorder %s288, %s289
      %p298 = scmp.eq.s32.totalorder %s26, 0
      %p299 = por %p297, %p298
      %p300 = scmp.ne.s32.totalorder %s288, %s289
      %p301 = scmp.eq.s32.totalorder %s27, 1
      %p302 = por %p300, %p301
      %p304 = scmp.ne.s32.totalorder %s289, %s303
      %p305 = scmp.eq.s32.totalorder %s27, 0
      %p306 = por %p304, %p305
      %s308 = sadd.s32 %s307, 1
      %p311 = scmp.eq.s32.totalorder %s21, 1
      %p312 = scmp.ne.s32.totalorder %s307, %s309
      %p313 = scmp.eq.s32.totalorder %s21, 0
      %p314 = por %p312, %p313
      %p315 = scmp.ne.s32.totalorder %s307, %s309
      %p316 = scmp.eq.s32.totalorder %s26, 1
      %p317 = por %p315, %p316
      %p318 = scmp.ne.s32.totalorder %s309, %s310
      %p319 = scmp.eq.s32.totalorder %s26, 0
      %p320 = por %p318, %p319
      %p321 = scmp.ne.s32.totalorder %s309, %s310
      %p322 = scmp.eq.s32.totalorder %s27, 1
      %p323 = por %p321, %p322
      %p325 = scmp.ne.s32.totalorder %s310, %s324
      %p326 = scmp.eq.s32.totalorder %s27, 0
      %p327 = por %p325, %p326
      %s328 = ssub.s32 %s28, %s47
      %s329 = ssub.s32 %s29, %s43
      %s330 = sor.u32 %s328, %s329
      %p331 = scmp.eq.s32.totalorder %s330, 0
      %s333 = sadd.s32 %s332, 1
      %s334 = scalar_select %p331, %s332, %s333
      %p337 = pneg %p331
      %p338 = scmp.eq.s32.totalorder %s21, 1
      %p339 = por %p337, %p338
      %p340 = scmp.ne.s32.totalorder %s332, %s335
      %p341 = scmp.eq.s32.totalorder %s21, 0
      %p342 = por %p340, %p341
      %p343 = scmp.ne.s32.totalorder %s332, %s335
      %p344 = scmp.eq.s32.totalorder %s26, 1
      %p345 = por %p343, %p344
      %p346 = scmp.ne.s32.totalorder %s335, %s336
      %p347 = scmp.eq.s32.totalorder %s26, 0
      %p348 = por %p346, %p347
      %p349 = scmp.ne.s32.totalorder %s335, %s336
      %p350 = scmp.eq.s32.totalorder %s27, 1
      %p351 = por %p349, %p350
      %p353 = scmp.ne.s32.totalorder %s336, %s352
      %p354 = scmp.eq.s32.totalorder %s27, 0
      %p355 = por %p353, %p354
      %p356 = scmp.le.s32.totalorder 1, %s21
      %p357 = scmp.lt.s32.totalorder %s21, 3
      %p358 = pnand %p356, %p357
      %p359 = pneg %p358
      // Predicated region
      $region9: #{transformer_forward.7} parent=5 // pred_check
        _
      $region10: #{transformer_forward.7} parent=5 // pred_check_branch
        %361 = sbr.rel (%p358) target = $region12
      $region11: #{transformer_forward.7} parent=5 // pred_region
        %s362 = ssub.s32 %s21, 1
        // Predicated region
        $region13: #{transformer_forward.7} parent=11 // pred_check
          %p363 = pneg %p173
        $region14: #{transformer_forward.7} parent=11 // pred_check_branch
          %365 = sbr.rel (%p363) target = $region16
        $region15: #{transformer_forward.7} parent=11 // pred_region
          _
        $region16: #{transformer_forward.7} parent=11 // pred_fallthru
          _
        // Predicated region
        $region17: #{transformer_forward.7} parent=11 // pred_check
          %p366 = pneg %p194
        $region18: #{transformer_forward.7} parent=11 // pred_check_branch
          %368 = sbr.rel (%p366) target = $region20
        $region19: #{transformer_forward.7} parent=11 // pred_region
          _
        $region20: #{transformer_forward.7} parent=11 // pred_fallthru
          _
        // Predicated region
        $region21: #{transformer_forward.7} parent=11 // pred_check
          %p369 = pneg %p215
        $region22: #{transformer_forward.7} parent=11 // pred_check_branch
          %371 = sbr.rel (%p369) target = $region24
        $region23: #{transformer_forward.7} parent=11 // pred_region
          _
        $region24: #{transformer_forward.7} parent=11 // pred_fallthru
          _
        // Predicated region
        $region25: #{transformer_forward.7} parent=11 // pred_check
          %p372 = pneg %p236
        $region26: #{transformer_forward.7} parent=11 // pred_check_branch
          %374 = sbr.rel (%p372) target = $region28
        $region27: #{transformer_forward.7} parent=11 // pred_region
          _
        $region28: #{transformer_forward.7} parent=11 // pred_fallthru
          _
        // Predicated region
        $region29: #{transformer_forward.7} parent=11 // pred_check
          %p375 = pneg %p257
        $region30: #{transformer_forward.7} parent=11 // pred_check_branch
          %377 = sbr.rel (%p375) target = $region32
        $region31: #{transformer_forward.7} parent=11 // pred_region
          _
        $region32: #{transformer_forward.7} parent=11 // pred_fallthru
          _
        // Predicated region
        $region33: #{transformer_forward.7} parent=11 // pred_check
          %p378 = pneg %p278
        $region34: #{transformer_forward.7} parent=11 // pred_check_branch
          %380 = sbr.rel (%p378) target = $region36
        $region35: #{transformer_forward.7} parent=11 // pred_region
          _
        $region36: #{transformer_forward.7} parent=11 // pred_fallthru
          _
        // Predicated region
        $region37: #{transformer_forward.7} parent=11 // pred_check
          %p381 = pneg %p299
        $region38: #{transformer_forward.7} parent=11 // pred_check_branch
          %383 = sbr.rel (%p381) target = $region40
        $region39: #{transformer_forward.7} parent=11 // pred_region
          _
        $region40: #{transformer_forward.7} parent=11 // pred_fallthru
          _
        // Predicated region
        $region41: #{transformer_forward.7} parent=11 // pred_check
          %p384 = pneg %p320
        $region42: #{transformer_forward.7} parent=11 // pred_check_branch
          %386 = sbr.rel (%p384) target = $region44
        $region43: #{transformer_forward.7} parent=11 // pred_region
          _
        $region44: #{transformer_forward.7} parent=11 // pred_fallthru
          _
      $region12: #{transformer_forward.7} parent=5 // pred_fallthru
        _
      %p387 = scmp.lt.s32.totalorder %s21, 2
      // Predicated region
      $region45: #{transformer_forward.7} parent=5 // pred_check
        %p388 = pneg %p387
      $region46: #{transformer_forward.7} parent=5 // pred_check_branch
        %390 = sbr.rel (%p388) target = $region48
      $region47: #{transformer_forward.7} parent=5 // pred_region
        // Predicated region
        $region49: #{transformer_forward.7} parent=47 // pred_check
          %p391 = pneg %p62
        $region50: #{transformer_forward.7} parent=47 // pred_check_branch
          %393 = sbr.rel (%p391) target = $region52
        $region51: #{transformer_forward.7} parent=47 // pred_region
          %p394 = scmp.lt.s32.totalorder %s28, 1
          %s395 = scalar_select %p394, %s28, 1
          %p396 = scmp.lt.s32.totalorder %s29, 0
          %s397 = scalar_select %p396, %s29, 0
          %s398 = sadd.s32 %s397, %s395
          %s399 = smul.addr %s398, 8
          %s400 = scalar_lea.vmem %s0, %s399
        $region52: #{transformer_forward.7} parent=47 // pred_fallthru
          _
        // Predicated region
        $region53: #{transformer_forward.7} parent=47 // pred_check
          %p401 = pneg %p90
        $region54: #{transformer_forward.7} parent=47 // pred_check_branch
          %403 = sbr.rel (%p401) target = $region56
        $region55: #{transformer_forward.7} parent=47 // pred_region
          %p404 = scmp.lt.s32.totalorder %s28, 1
          %s405 = scalar_select %p404, %s28, 1
          %p406 = scmp.lt.s32.totalorder %s29, 0
          %s407 = scalar_select %p406, %s29, 0
          %s408 = smul.addr %s405, 2
          %s409 = sadd.s32 %s407, %s408
          %s410 = smul.addr %s409, 4
          %s411 = scalar_lea.vmem %s1, %s410
        $region56: #{transformer_forward.7} parent=47 // pred_fallthru
          _
        // Predicated region
        $region57: #{transformer_forward.7} parent=47 // pred_check
          %p412 = pneg %p118
        $region58: #{transformer_forward.7} parent=47 // pred_check_branch
          %414 = sbr.rel (%p412) target = $region60
        $region59: #{transformer_forward.7} parent=47 // pred_region
          %p415 = scmp.lt.s32.totalorder %s28, 1
          %s416 = scalar_select %p415, %s28, 1
          %p417 = scmp.lt.s32.totalorder %s30, 0
          %s418 = scalar_select %p417, %s30, 0
          %s419 = smul.addr %s416, 2
          %s420 = sadd.s32 %s418, %s419
          %s421 = smul.addr %s420, 4
          %s422 = scalar_lea.vmem %s2, %s421
        $region60: #{transformer_forward.7} parent=47 // pred_fallthru
          _
        // Predicated region
        $region61: #{transformer_forward.7} parent=47 // pred_check
          %p423 = pneg %p146
        $region62: #{transformer_forward.7} parent=47 // pred_check_branch
          %425 = sbr.rel (%p423) target = $region64
        $region63: #{transformer_forward.7} parent=47 // pred_region
          %p426 = scmp.lt.s32.totalorder %s28, 1
          %s427 = scalar_select %p426, %s28, 1
          %p428 = scmp.lt.s32.totalorder %s30, 0
          %s429 = scalar_select %p428, %s30, 0
          %s430 = smul.addr %s427, 2
          %s431 = sadd.s32 %s429, %s430
          %s432 = smul.addr %s431, 4
          %s433 = scalar_lea.vmem %s3, %s432
        $region64: #{transformer_forward.7} parent=47 // pred_fallthru
          _
      $region48: #{transformer_forward.7} parent=5 // pred_fallthru
        _
      %p434 = scmp.le.s32.totalorder 1, %s21
      %p435 = scmp.lt.s32.totalorder %s21, 3
      %p436 = pnand %p434, %p435
      %p437 = pneg %p436
      // Predicated region
      $region65: #{transformer_forward.7} parent=5 // pred_check
        _
      $region66: #{transformer_forward.7} parent=5 // pred_check_branch
        %439 = sbr.rel (%p436) target = $region68
      $region67: #{transformer_forward.7} parent=5 // pred_region
        %s440 = ssub.s32 %s21, 1
        %p441 = scmp.lt.s32.totalorder %s31, 1
        %s442 = scalar_select %p441, %s31, 1
        %p443 = scmp.lt.s32.totalorder %s32, 0
        %s444 = scalar_select %p443, %s32, 0
        %s445 = sadd.s32 %s444, %s442
        %s446 = smul.addr %s445, 8
        %s447 = scalar_lea.vmem %s0, %s446
        %p448 = pneg %p68
        %p449 = pneg %p65
        %p450 = scmp.lt.s32.totalorder %s31, 1
        %s451 = scalar_select %p450, %s31, 1
        %p452 = scmp.lt.s32.totalorder %s32, 0
        %s453 = scalar_select %p452, %s32, 0
        %s454 = smul.addr %s451, 2
        %s455 = sadd.s32 %s453, %s454
        %s456 = smul.addr %s455, 4
        %s457 = scalar_lea.vmem %s1, %s456
        %p458 = pneg %p96
        %p459 = pneg %p93
        %p460 = scmp.lt.s32.totalorder %s31, 1
        %s461 = scalar_select %p460, %s31, 1
        %p462 = scmp.lt.s32.totalorder %s33, 0
        %s463 = scalar_select %p462, %s33, 0
        %s464 = smul.addr %s461, 2
        %s465 = sadd.s32 %s463, %s464
        %s466 = smul.addr %s465, 4
        %s467 = scalar_lea.vmem %s2, %s466
        %p468 = pneg %p124
        %p469 = pneg %p121
        %p470 = scmp.lt.s32.totalorder %s31, 1
        %s471 = scalar_select %p470, %s31, 1
        %p472 = scmp.lt.s32.totalorder %s33, 0
        %s473 = scalar_select %p472, %s33, 0
        %s474 = smul.addr %s471, 2
        %s475 = sadd.s32 %s473, %s474
        %s476 = smul.addr %s475, 4
        %s477 = scalar_lea.vmem %s3, %s476
        %p478 = pneg %p152
        %p479 = pneg %p149
        %p480 = pneg %p173
        %p481 = pneg %p170
        %p482 = pneg %p194
        %p483 = pneg %p191
        %p484 = pneg %p215
        %p485 = pneg %p212
        %p486 = pneg %p236
        %p487 = pneg %p233
        %p488 = pneg %p257
        %p489 = pneg %p254
        %p490 = pneg %p278
        %p491 = pneg %p275
        %p492 = pneg %p299
        %p493 = pneg %p296
        %p494 = pneg %p320
        %p495 = pneg %p317
        %p496 = pneg %p348
        %p497 = pneg %p345
        %s498 = sand.u32 %s335, 1
        %s499 = scalar_lea.sflag [#allocation6], %s498
        %s500 = sand.u32 %s335, 1
        %s501 = smul.addr %s500, 8
        %s502 = scalar_lea.vmem [#allocation5], %s501
        %p503 = scmp.lt.s32.totalorder %s31, 1
        %s504 = scalar_select %p503, %s31, 1
        %p505 = scmp.lt.s32.totalorder %s32, 0
        %s506 = scalar_select %p505, %s32, 0
        %s507 = sadd.s32 %s506, %s504
        %s508 = smul.addr %s507, 8
        %s509 = scalar_lea.vmem %s0, %s508
        %p510 = scmp.lt.s32.totalorder %s31, 1
        %s511 = scalar_select %p510, %s31, 1
        %p512 = scmp.lt.s32.totalorder %s32, 0
        %s513 = scalar_select %p512, %s32, 0
        %s514 = smul.addr %s511, 2
        %s515 = sadd.s32 %s513, %s514
        %s516 = smul.addr %s515, 4
        %s517 = scalar_lea.vmem %s1, %s516
        %p518 = scmp.lt.s32.totalorder %s31, 1
        %s519 = scalar_select %p518, %s31, 1
        %p520 = scmp.lt.s32.totalorder %s33, 0
        %s521 = scalar_select %p520, %s33, 0
        %s522 = smul.addr %s519, 2
        %s523 = sadd.s32 %s521, %s522
        %s524 = smul.addr %s523, 4
        %s525 = scalar_lea.vmem %s2, %s524
        %p526 = scmp.lt.s32.totalorder %s31, 1
        %s527 = scalar_select %p526, %s31, 1
        %p528 = scmp.lt.s32.totalorder %s33, 0
        %s529 = scalar_select %p528, %s33, 0
        %s530 = smul.addr %s527, 2
        %s531 = sadd.s32 %s529, %s530
        %s532 = smul.addr %s531, 4
        %s533 = scalar_lea.vmem %s3, %s532
        %p535 = scmp.eq.s32.totalorder %s33, 0
        // Predicated region
        $region69: #{transformer_forward.7} parent=67 // pred_check
          %p536 = pneg %p535
        $region70: #{transformer_forward.7} parent=67 // pred_check_branch
          %538 = sbr.rel (%p536) target = $region72
        $region71: #{transformer_forward.7} parent=67 // pred_region
          %vm539 = vcmask 7168
          %540 = vst.msk [vmem:[#allocation2] sm:$0xff] %vm539, -inf
          %541 = vst.msk [vmem:[#allocation2 + $0x8] sm:$0xff] %vm539, -inf
          %542 = vst.msk [vmem:[#allocation3] sm:$0xff] %vm539, 0.0
          %543 = vst.msk [vmem:[#allocation3 + $0x8] sm:$0xff] %vm539, 0.0
          %vm544 = vcmask 31744
          %545 = vst.msk [vmem:[#allocation4] sm:$0xff] %vm544, 0.0
          %546 = vst.msk [vmem:[#allocation4 + $0x8] sm:$0xff] %vm544, 0.0
        $region72: #{transformer_forward.7} parent=67 // pred_fallthru
          _
        %v547 = vld [vmem:[%s517] sm:$0xf]
        %v548 = vld [vmem:[%s517 + $0x4] sm:$0xf]
        %v549 = vld [vmem:[%s525] sm:$0xf]
        %v550 = vld [vmem:[%s525 + $0x4] sm:$0xf]
        %v551 = vld [vmem:[%s533] sm:$0xf]
        %v552 = vld [vmem:[%s533 + $0x4] sm:$0xf]
        %vm553 = vcmask 31744
        %v555 = vsel %vm553, %v547, 0
        %v558 = vsel %vm553, %v549, 0
        %560 = vmatprep.subr.bf16.mxu0 0
        %561 = vmatpush1.bf16.xpose.msra.mxu0 0
        %562 = vmatprep.subr.bf16.mxu0 0
        %563 = vmatpush1.bf16.xpose.msra.mxu0 0
        %564 = vmatprep.subr.bf16.mxu0 0
        %565 = vmatpush1.bf16.xpose.msra.mxu0 0
        %566 = vmatprep.subr.bf16.mxu0 0
        %567 = vmatpush1.bf16.xpose.msra.mxu0 0
        %568 = vmatprep.subr.bf16.mxu0 0
        %569 = vmatpush1.bf16.xpose.msra.mxu0 0
        %570 = vmatprep.subr.bf16.mxu0 0
        %571 = vmatpush1.bf16.xpose.msra.mxu0 0
        %572 = vmatprep.subr.bf16.mxu0 0
        %573 = vmatpush1.bf16.xpose.msra.mxu0 0
        %574 = vmatprep.subr.bf16.mxu0 0
        %575 = vmatpush1.bf16.xpose.msra.mxu0 %v558
        %576 = vmatprep.subr.bf16.mxu0 0
        %577 = vmatpush2.bf16.xpose.msra.mxu0 0
        %578 = vmatprep.subr.bf16.mxu0 0
        %579 = vmatpush2.bf16.xpose.msra.mxu0 0
        %580 = vmatprep.subr.bf16.mxu0 0
        %581 = vmatpush2.bf16.xpose.msra.mxu0 0
        %582 = vmatprep.subr.bf16.mxu0 0
        %583 = vmatpush2.bf16.xpose.msra.mxu0 0
        %584 = vmatprep.subr.bf16.mxu0 0
        %585 = vmatpush2.bf16.xpose.msra.mxu0 0
        %586 = vmatprep.subr.bf16.mxu0 0
        %587 = vmatpush2.bf16.xpose.msra.mxu0 0
        %588 = vmatprep.subr.bf16.mxu0 0
        %589 = vmatpush2.bf16.xpose.msra.mxu0 0
        %590 = vmatprep.subr.bf16.mxu0 0
        %591 = vmatpush2.bf16.xpose.msra.mxu0 0
        %592 = vmatprep.mubr.bf16.mxu0 0
        %593 = vmatmul.mubr.bf16.gmra.mxu0 %v555
        %v594 = vpop.f32.mrf.mxu0
        %v595 = vadd.f32 0.0, %v594
        %v596 = vpop.f32.mrf.mxu0
        %v597 = vpop.f32.mrf.mxu0
        %v598 = vpop.f32.mrf.mxu0
        %599 = vdwg.mxu0
        %v601 = vsel %vm553, %v548, 0
        %v604 = vsel %vm553, %v550, 0
        %606 = vmatprep.subr.bf16.mxu0 0
        %607 = vmatpush1.bf16.xpose.msra.mxu0 0
        %608 = vmatprep.subr.bf16.mxu0 0
        %609 = vmatpush1.bf16.xpose.msra.mxu0 0
        %610 = vmatprep.subr.bf16.mxu0 0
        %611 = vmatpush1.bf16.xpose.msra.mxu0 0
        %612 = vmatprep.subr.bf16.mxu0 0
        %613 = vmatpush1.bf16.xpose.msra.mxu0 0
        %614 = vmatprep.subr.bf16.mxu0 0
        %615 = vmatpush1.bf16.xpose.msra.mxu0 0
        %616 = vmatprep.subr.bf16.mxu0 0
        %617 = vmatpush1.bf16.xpose.msra.mxu0 0
        %618 = vmatprep.subr.bf16.mxu0 0
        %619 = vmatpush1.bf16.xpose.msra.mxu0 0
        %620 = vmatprep.subr.bf16.mxu0 0
        %621 = vmatpush1.bf16.xpose.msra.mxu0 %v604
        %622 = vmatprep.subr.bf16.mxu0 0
        %623 = vmatpush2.bf16.xpose.msra.mxu0 0
        %624 = vmatprep.subr.bf16.mxu0 0
        %625 = vmatpush2.bf16.xpose.msra.mxu0 0
        %626 = vmatprep.subr.bf16.mxu0 0
        %627 = vmatpush2.bf16.xpose.msra.mxu0 0
        %628 = vmatprep.subr.bf16.mxu0 0
        %629 = vmatpush2.bf16.xpose.msra.mxu0 0
        %630 = vmatprep.subr.bf16.mxu0 0
        %631 = vmatpush2.bf16.xpose.msra.mxu0 0
        %632 = vmatprep.subr.bf16.mxu0 0
        %633 = vmatpush2.bf16.xpose.msra.mxu0 0
        %634 = vmatprep.subr.bf16.mxu0 0
        %635 = vmatpush2.bf16.xpose.msra.mxu0 0
        %636 = vmatprep.subr.bf16.mxu0 0
        %637 = vmatpush2.bf16.xpose.msra.mxu0 0
        %638 = vmatprep.mubr.bf16.mxu0 0
        %639 = vmatmul.mubr.bf16.gmra.mxu0 %v601
        %v640 = vpop.f32.mrf.mxu0
        %v641 = vadd.f32 0.0, %v640
        %v642 = vpop.f32.mrf.mxu0
        %v643 = vpop.f32.mrf.mxu0
        %v644 = vpop.f32.mrf.mxu0
        %645 = vdwg.mxu0
        %v646 = vld [vmem:[#allocation2] sm:$0xff]
        %v647 = vld [vmem:[#allocation2 + $0x8] sm:$0xff]
        %vm648 = vcmask 64512
        %v649 = vsel %vm648, %v595, -inf
        %650 = vmax.xlane.f32.xlu0 %v649
        %v651 = vpop.xlane.xlu0 %650
        %v652 = vsel %vm648, %v641, -inf
        %653 = vmax.xlane.f32.xlu0 %v652
        %v654 = vpop.xlane.xlu0 %653
        %v655 = vmax.f32 %v646, %v651
        %v656 = vmax.f32 %v647, %v654
        %v657 = vsub.f32 %v646, %v655
        %v658 = vsub.f32 %v647, %v656
        %v659 = vmul.f32 %v657, 1.442695
        %v660 = vpow.pop %v659
        %v661 = vmul.f32 %v658, 1.442695
        %v662 = vpow.pop %v661
        %664 = vset.pattern.permute.xlu0 0
        %665 = vperm.xlu0 %664, %v655
        %v666 = vpop.permute.xlu0 %665
        %669 = vset.pattern.permute.xlu0 0
        %670 = vperm.xlu0 %669, %v656
        %v671 = vpop.permute.xlu0 %670
        %v673 = vsub.f32 %v595, %v666
        %v674 = vsub.f32 %v641, %v671
        %v675 = vpack.c.bf16 %v673, %v673
        %v676 = vpack.c.bf16 %v674, %v674
        %v678 = vmul.bf16 %v675, 1069105081
        %v679 = vpow.bf16.pop %v678
        %v681 = vmul.bf16 %v676, 1069105081
        %v682 = vpow.bf16.pop %v681
        %v683 = vld [vmem:[#allocation3] sm:$0xff]
        %v684 = vld [vmem:[#allocation3 + $0x8] sm:$0xff]
        %v685 = vmul.f32 %v660, %v683
        %v686 = vmul.f32 %v662, %v684
        %v687 = vunpack.c.l.bf16 %v679
        %v688 = vunpack.c.l.bf16 %v682
        %v689 = vsel %vm648, %v687, 0.0
        %690 = vadd.xlane.f32.xlu0 %v689
        %v691 = vpop.xlane.xlu0 %690
        %v692 = vsel %vm648, %v688, 0.0
        %693 = vadd.xlane.f32.xlu0 %v692
        %v694 = vpop.xlane.xlu0 %693
        %v695 = vadd.f32 %v685, %v691
        %v696 = vadd.f32 %v686, %v694
        %vm697 = vcmask 7168
        %698 = vst.msk [vmem:[#allocation3] sm:$0xff] %vm697, %v695
        %699 = vst.msk [vmem:[#allocation3 + $0x8] sm:$0xff] %vm697, %v696
        %v700 = vld [vmem:[#allocation4] sm:$0xff]
        %v701 = vld [vmem:[#allocation4 + $0x8] sm:$0xff]
        %703 = vset.pattern.permute.xlu0 0
        %704 = vperm.xlu0 %703, %v660
        %v705 = vpop.permute.xlu0 %704
        %708 = vset.pattern.permute.xlu0 0
        %709 = vperm.xlu0 %708, %v662
        %v710 = vpop.permute.xlu0 %709
        %v712 = vmul.f32 %v705, %v700
        %v713 = vmul.f32 %v710, %v701
        %v715 = vsel %vm648, %v679, 0
        %vm717 = vcmask 1043456
        %v719 = vsel %vm717, %v551, 0
        %721 = vmatprep.subr.bf16.mxu0 0
        %722 = vmatpush1.bf16.msra.mxu0 0
        %723 = vmatprep.subr.bf16.mxu0 0
        %724 = vmatpush1.bf16.msra.mxu0 0
        %725 = vmatprep.subr.bf16.mxu0 0
        %726 = vmatpush1.bf16.msra.mxu0 0
        %727 = vmatprep.subr.bf16.mxu0 0
        %728 = vmatpush1.bf16.msra.mxu0 0
        %729 = vmatprep.subr.bf16.mxu0 0
        %730 = vmatpush1.bf16.msra.mxu0 0
        %731 = vmatprep.subr.bf16.mxu0 0
        %732 = vmatpush1.bf16.msra.mxu0 0
        %733 = vmatprep.subr.bf16.mxu0 0
        %734 = vmatpush1.bf16.msra.mxu0 0
        %735 = vmatprep.subr.bf16.mxu0 0
        %736 = vmatpush1.bf16.msra.mxu0 %v719
        %737 = vmatprep.subr.bf16.mxu0 0
        %738 = vmatpush2.bf16.msra.mxu0 0
        %739 = vmatprep.subr.bf16.mxu0 0
        %740 = vmatpush2.bf16.msra.mxu0 0
        %741 = vmatprep.subr.bf16.mxu0 0
        %742 = vmatpush2.bf16.msra.mxu0 0
        %743 = vmatprep.subr.bf16.mxu0 0
        %744 = vmatpush2.bf16.msra.mxu0 0
        %745 = vmatprep.subr.bf16.mxu0 0
        %746 = vmatpush2.bf16.msra.mxu0 0
        %747 = vmatprep.subr.bf16.mxu0 0
        %748 = vmatpush2.bf16.msra.mxu0 0
        %749 = vmatprep.subr.bf16.mxu0 0
        %750 = vmatpush2.bf16.msra.mxu0 0
        %751 = vmatprep.subr.bf16.mxu0 0
        %752 = vmatpush2.bf16.msra.mxu0 0
        %753 = vmatprep.mubr.bf16.mxu0 0
        %754 = vmatmul.mubr.bf16.gmra.mxu0 %v715
        %v755 = vpop.f32.mrf.mxu0
        %v756 = vadd.f32 0.0, %v755
        %v757 = vpop.f32.mrf.mxu0
        %v758 = vpop.f32.mrf.mxu0
        %v759 = vpop.f32.mrf.mxu0
        %760 = vdwg.mxu0
        %v762 = vsel %vm648, %v682, 0
        %v765 = vsel %vm717, %v552, 0
        %767 = vmatprep.subr.bf16.mxu0 0
        %768 = vmatpush1.bf16.msra.mxu0 0
        %769 = vmatprep.subr.bf16.mxu0 0
        %770 = vmatpush1.bf16.msra.mxu0 0
        %771 = vmatprep.subr.bf16.mxu0 0
        %772 = vmatpush1.bf16.msra.mxu0 0
        %773 = vmatprep.subr.bf16.mxu0 0
        %774 = vmatpush1.bf16.msra.mxu0 0
        %775 = vmatprep.subr.bf16.mxu0 0
        %776 = vmatpush1.bf16.msra.mxu0 0
        %777 = vmatprep.subr.bf16.mxu0 0
        %778 = vmatpush1.bf16.msra.mxu0 0
        %779 = vmatprep.subr.bf16.mxu0 0
        %780 = vmatpush1.bf16.msra.mxu0 0
        %781 = vmatprep.subr.bf16.mxu0 0
        %782 = vmatpush1.bf16.msra.mxu0 %v765
        %783 = vmatprep.subr.bf16.mxu0 0
        %784 = vmatpush2.bf16.msra.mxu0 0
        %785 = vmatprep.subr.bf16.mxu0 0
        %786 = vmatpush2.bf16.msra.mxu0 0
        %787 = vmatprep.subr.bf16.mxu0 0
        %788 = vmatpush2.bf16.msra.mxu0 0
        %789 = vmatprep.subr.bf16.mxu0 0
        %790 = vmatpush2.bf16.msra.mxu0 0
        %791 = vmatprep.subr.bf16.mxu0 0
        %792 = vmatpush2.bf16.msra.mxu0 0
        %793 = vmatprep.subr.bf16.mxu0 0
        %794 = vmatpush2.bf16.msra.mxu0 0
        %795 = vmatprep.subr.bf16.mxu0 0
        %796 = vmatpush2.bf16.msra.mxu0 0
        %797 = vmatprep.subr.bf16.mxu0 0
        %798 = vmatpush2.bf16.msra.mxu0 0
        %799 = vmatprep.mubr.bf16.mxu0 0
        %800 = vmatmul.mubr.bf16.gmra.mxu0 %v762
        %v801 = vpop.f32.mrf.mxu0
        %v802 = vadd.f32 0.0, %v801
        %v803 = vpop.f32.mrf.mxu0
        %v804 = vpop.f32.mrf.mxu0
        %v805 = vpop.f32.mrf.mxu0
        %806 = vdwg.mxu0
        %v807 = vadd.f32 %v712, %v756
        %v808 = vadd.f32 %v713, %v802
        %809 = vst.msk [vmem:[#allocation4] sm:$0xff] %vm553, %v807
        %810 = vst.msk [vmem:[#allocation4 + $0x8] sm:$0xff] %vm553, %v808
        %811 = vst.msk [vmem:[#allocation2] sm:$0xff] %vm697, %v655
        %812 = vst.msk [vmem:[#allocation2 + $0x8] sm:$0xff] %vm697, %v656
        // Predicated region
        $region73: #{transformer_forward.7} parent=67 // pred_check
          %p813 = pneg %p535
        $region74: #{transformer_forward.7} parent=67 // pred_check_branch
          %815 = sbr.rel (%p813) target = $region76
        $region75: #{transformer_forward.7} parent=67 // pred_region
          %v816 = vld [vmem:[#allocation4] sm:$0xff]
          %v817 = vld [vmem:[#allocation4 + $0x8] sm:$0xff]
          %v818 = vld [vmem:[#allocation3] sm:$0xff]
          %v819 = vld [vmem:[#allocation3 + $0x8] sm:$0xff]
          %v820 = vrcp.pop %v818
          %v821 = vrcp.pop %v819
          %823 = vset.pattern.permute.xlu0 0
          %824 = vperm.xlu0 %823, %v820
          %v825 = vpop.permute.xlu0 %824
          %828 = vset.pattern.permute.xlu0 0
          %829 = vperm.xlu0 %828, %v821
          %v830 = vpop.permute.xlu0 %829
          %v832 = vmul.f32 %v816, %v825
          %v833 = vmul.f32 %v817, %v830
          %v834 = vpack.c.bf16 %v832, %v832
          %v835 = vpack.c.bf16 %v833, %v833
          %v836 = vld [vmem:[%s4] sm:$0x3]
          %s837 = scalar_lea.vmem %s4, 2
          %v838 = vld [vmem:[%s837] sm:$0x3]
          %v840 = vsel %vm553, %v835, 0
          %vm842 = vcmask 1041408
          %v844 = vsel %vm842, %v838, 0
          %846 = vmatprep.subr.bf16.mxu0 0
          %847 = vmatpush1.bf16.msra.mxu0 0
          %848 = vmatprep.subr.bf16.mxu0 0
          %849 = vmatpush1.bf16.msra.mxu0 0
          %850 = vmatprep.subr.bf16.mxu0 0
          %851 = vmatpush1.bf16.msra.mxu0 0
          %852 = vmatprep.subr.bf16.mxu0 0
          %853 = vmatpush1.bf16.msra.mxu0 0
          %854 = vmatprep.subr.bf16.mxu0 0
          %855 = vmatpush1.bf16.msra.mxu0 0
          %856 = vmatprep.subr.bf16.mxu0 0
          %857 = vmatpush1.bf16.msra.mxu0 0
          %858 = vmatprep.subr.bf16.mxu0 0
          %859 = vmatpush1.bf16.msra.mxu0 0
          %860 = vmatprep.subr.bf16.mxu0 0
          %861 = vmatpush1.bf16.msra.mxu0 %v844
          %862 = vmatprep.subr.bf16.mxu0 0
          %863 = vmatpush2.bf16.msra.mxu0 0
          %864 = vmatprep.subr.bf16.mxu0 0
          %865 = vmatpush2.bf16.msra.mxu0 0
          %866 = vmatprep.subr.bf16.mxu0 0
          %867 = vmatpush2.bf16.msra.mxu0 0
          %868 = vmatprep.subr.bf16.mxu0 0
          %869 = vmatpush2.bf16.msra.mxu0 0
          %870 = vmatprep.subr.bf16.mxu0 0
          %871 = vmatpush2.bf16.msra.mxu0 0
          %872 = vmatprep.subr.bf16.mxu0 0
          %873 = vmatpush2.bf16.msra.mxu0 0
          %874 = vmatprep.subr.bf16.mxu0 0
          %875 = vmatpush2.bf16.msra.mxu0 0
          %876 = vmatprep.subr.bf16.mxu0 0
          %877 = vmatpush2.bf16.msra.mxu0 0
          %878 = vmatprep.mubr.bf16.mxu0 0
          %879 = vmatmul.mubr.bf16.gmra.mxu0 %v840
          %v880 = vpop.f32.mrf.mxu0
          %v881 = vadd.f32 0.0, %v880
          %v882 = vpop.f32.mrf.mxu0
          %v883 = vpop.f32.mrf.mxu0
          %v884 = vpop.f32.mrf.mxu0
          %885 = vdwg.mxu0
          %v887 = vsel %vm553, %v834, 0
          %v890 = vsel %vm842, %v836, 0
          %892 = vmatprep.subr.bf16.mxu0 0
          %893 = vmatpush1.bf16.msra.mxu0 0
          %894 = vmatprep.subr.bf16.mxu0 0
          %895 = vmatpush1.bf16.msra.mxu0 0
          %896 = vmatprep.subr.bf16.mxu0 0
          %897 = vmatpush1.bf16.msra.mxu0 0
          %898 = vmatprep.subr.bf16.mxu0 0
          %899 = vmatpush1.bf16.msra.mxu0 0
          %900 = vmatprep.subr.bf16.mxu0 0
          %901 = vmatpush1.bf16.msra.mxu0 0
          %902 = vmatprep.subr.bf16.mxu0 0
          %903 = vmatpush1.bf16.msra.mxu0 0
          %904 = vmatprep.subr.bf16.mxu0 0
          %905 = vmatpush1.bf16.msra.mxu0 0
          %906 = vmatprep.subr.bf16.mxu0 0
          %907 = vmatpush1.bf16.msra.mxu0 %v890
          %908 = vmatprep.subr.bf16.mxu0 0
          %909 = vmatpush2.bf16.msra.mxu0 0
          %910 = vmatprep.subr.bf16.mxu0 0
          %911 = vmatpush2.bf16.msra.mxu0 0
          %912 = vmatprep.subr.bf16.mxu0 0
          %913 = vmatpush2.bf16.msra.mxu0 0
          %914 = vmatprep.subr.bf16.mxu0 0
          %915 = vmatpush2.bf16.msra.mxu0 0
          %916 = vmatprep.subr.bf16.mxu0 0
          %917 = vmatpush2.bf16.msra.mxu0 0
          %918 = vmatprep.subr.bf16.mxu0 0
          %919 = vmatpush2.bf16.msra.mxu0 0
          %920 = vmatprep.subr.bf16.mxu0 0
          %921 = vmatpush2.bf16.msra.mxu0 0
          %922 = vmatprep.subr.bf16.mxu0 0
          %923 = vmatpush2.bf16.msra.mxu0 0
          %924 = vmatprep.mubr.bf16.mxu0 0
          %925 = vmatmul.mubr.bf16.gmra.mxu0 %v887
          %v926 = vpop.f32.mrf.mxu0
          %v927 = vadd.f32 %v881, %v926
          %v928 = vpop.f32.mrf.mxu0
          %v929 = vpop.f32.mrf.mxu0
          %v930 = vpop.f32.mrf.mxu0
          %931 = vdwg.mxu0
          %v932 = vld [vmem:[%s5] sm:$0x1]
          %v934 = vlaneseq
          %v935 = vshrl.u32 %v934, 7
          %v936 = vsub.s32 0, %v935
          %v937 = vrot.slane %v932, %v936
          %v939 = vadd.f32 %v927, %v937
          %v940 = vld [vmem:[%s509] sm:$0xff]
          %v941 = vadd.f32 %v940, %v939
          %v942 = vld [vmem:[%s6] sm:$0x1]
          %v943 = vld [vmem:[%s7] sm:$0x1]
          %vm944 = vcmask 261120
          %v945 = vsel %vm944, %v941, 0.0
          %946 = vadd.xlane.f32.xlu0 %v945
          %v947 = vpop.xlane.xlu0 %946
          %v948 = vrcp.pop 32.0
          %v949 = vmul.f32 %v947, %v948
          %v950 = vsub.f32 %v941, %v949
          %v951 = vmul.f32 %v950, %v950
          %v952 = vsel %vm944, %v951, 0.0
          %953 = vadd.xlane.f32.xlu0 %v952
          %v954 = vpop.xlane.xlu0 %953
          %v955 = vmul.f32 %v954, %v948
          %v956 = vadd.f32 %v955, 1e-05
          %v957 = vrsqrt.pop %v956
          %v958 = vmul.f32 %v950, %v957
          %v960 = vlaneseq
          %v961 = vshrl.u32 %v960, 7
          %v962 = vsub.s32 0, %v961
          %v963 = vrot.slane %v942, %v962
          %v965 = vmul.f32 %v958, %v963
          %v967 = vlaneseq
          %v968 = vshrl.u32 %v967, 7
          %v969 = vsub.s32 0, %v968
          %v970 = vrot.slane %v943, %v969
          %v972 = vadd.f32 %v965, %v970
          %v973 = vpack.c.bf16 %v972, %v972
          %v974 = vld [vmem:[%s8] sm:$0xf]
          %v975 = vld [vmem:[%s8 + $0x4] sm:$0xf]
          %v976 = vld [vmem:[%s8 + $0x8] sm:$0xf]
          %v977 = vld [vmem:[%s8 + $0xc] sm:$0xf]
          %v978 = vld [vmem:[%s9] sm:$0x1]
          %v980 = vlaneseq
          %v981 = vshrl.u32 %v980, 7
          %v982 = vsub.s32 0, %v981
          %v983 = vrot.slane %v978, %v982
          %v989 = vunpack.c.l.b16 %v974
          %v990 = vunpack.c.l.b16 %v975
          %v991 = vunpack.c.l.b16 %v976
          %v992 = vunpack.c.l.b16 %v977
          %v993 = vpack.c.b16 %v990, %v989
          %v994 = vpack.c.b16 %v992, %v991
          %v998 = vsel %vm944, %v973, 0
          %1000 = vmatprep.subr.bf16.mxu0 0
          %1001 = vmatpush1.bf16.msra.mxu0 0
          %1002 = vmatprep.subr.bf16.mxu0 0
          %1003 = vmatpush1.bf16.msra.mxu0 0
          %1004 = vmatprep.subr.bf16.mxu0 0
          %1005 = vmatpush1.bf16.msra.mxu0 0
          %1006 = vmatprep.subr.bf16.mxu0 0
          %1007 = vmatpush1.bf16.msra.mxu0 0
          %1008 = vmatprep.subr.bf16.mxu0 0
          %1009 = vmatpush1.bf16.msra.mxu0 0
          %1010 = vmatprep.subr.bf16.mxu0 0
          %1011 = vmatpush1.bf16.msra.mxu0 0
          %1012 = vmatprep.subr.bf16.mxu0 0
          %1013 = vmatpush1.bf16.msra.mxu0 %v994
          %1014 = vmatprep.subr.bf16.mxu0 0
          %1015 = vmatpush1.bf16.msra.mxu0 %v993
          %1016 = vmatprep.subr.bf16.mxu0 0
          %1017 = vmatpush2.bf16.msra.mxu0 0
          %1018 = vmatprep.subr.bf16.mxu0 0
          %1019 = vmatpush2.bf16.msra.mxu0 0
          %1020 = vmatprep.subr.bf16.mxu0 0
          %1021 = vmatpush2.bf16.msra.mxu0 0
          %1022 = vmatprep.subr.bf16.mxu0 0
          %1023 = vmatpush2.bf16.msra.mxu0 0
          %1024 = vmatprep.subr.bf16.mxu0 0
          %1025 = vmatpush2.bf16.msra.mxu0 0
          %1026 = vmatprep.subr.bf16.mxu0 0
          %1027 = vmatpush2.bf16.msra.mxu0 0
          %1028 = vmatprep.subr.bf16.mxu0 0
          %1029 = vmatpush2.bf16.msra.mxu0 0
          %1030 = vmatprep.subr.bf16.mxu0 0
          %1031 = vmatpush2.bf16.msra.mxu0 0
          %1032 = vmatprep.mubr.bf16.mxu0 0
          %1033 = vmatmul.mubr.bf16.gmra.mxu0 %v998
          %v1034 = vpop.f32.mrf.mxu0
          %v1035 = vadd.f32 %v983, %v1034
          %v1036 = vpop.f32.mrf.mxu0
          %v1037 = vpop.f32.mrf.mxu0
          %v1038 = vpop.f32.mrf.mxu0
          %1039 = vdwg.mxu0
          %v1040 = vmul.f32 %v1035, 1.702
          %v1041 = vxor.u32 %v1040, 2147483648
          %v1042 = vmul.f32 %v1041, 1.442695
          %v1043 = vpow.pop %v1042
          %v1044 = vadd.f32 %v1043, 1.0
          %v1045 = vrcp.pop %v1044
          %v1046 = vmul.f32 1.0, %v1045
          %v1047 = vmul.f32 %v1035, %v1046
          %v1048 = vpack.c.bf16 %v1047, %v1047
          %v1049 = vld [vmem:[%s10] sm:$0xf]
          %v1050 = vld [vmem:[%s10 + $0x4] sm:$0xf]
          %v1051 = vld [vmem:[%s10 + $0x8] sm:$0xf]
          %v1052 = vld [vmem:[%s10 + $0xc] sm:$0xf]
          %v1053 = vld [vmem:[%s11] sm:$0x1]
          %v1055 = vlaneseq
          %v1056 = vshrl.u32 %v1055, 7
          %v1057 = vsub.s32 0, %v1056
          %v1058 = vrot.slane %v1053, %v1057
          %v1064 = vunpack.c.l.b16 %v1049
          %v1065 = vunpack.c.l.b16 %v1050
          %v1066 = vunpack.c.l.b16 %v1051
          %v1067 = vunpack.c.l.b16 %v1052
          %v1068 = vpack.c.b16 %v1065, %v1064
          %v1069 = vpack.c.b16 %v1067, %v1066
          %v1073 = vsel %vm944, %v1048, 0
          %1075 = vmatprep.subr.bf16.mxu0 0
          %1076 = vmatpush1.bf16.msra.mxu0 0
          %1077 = vmatprep.subr.bf16.mxu0 0
          %1078 = vmatpush1.bf16.msra.mxu0 0
          %1079 = vmatprep.subr.bf16.mxu0 0
          %1080 = vmatpush1.bf16.msra.mxu0 0
          %1081 = vmatprep.subr.bf16.mxu0 0
          %1082 = vmatpush1.bf16.msra.mxu0 0
          %1083 = vmatprep.subr.bf16.mxu0 0
          %1084 = vmatpush1.bf16.msra.mxu0 0
          %1085 = vmatprep.subr.bf16.mxu0 0
          %1086 = vmatpush1.bf16.msra.mxu0 0
          %1087 = vmatprep.subr.bf16.mxu0 0
          %1088 = vmatpush1.bf16.msra.mxu0 %v1069
          %1089 = vmatprep.subr.bf16.mxu0 0
          %1090 = vmatpush1.bf16.msra.mxu0 %v1068
          %1091 = vmatprep.subr.bf16.mxu0 0
          %1092 = vmatpush2.bf16.msra.mxu0 0
          %1093 = vmatprep.subr.bf16.mxu0 0
          %1094 = vmatpush2.bf16.msra.mxu0 0
          %1095 = vmatprep.subr.bf16.mxu0 0
          %1096 = vmatpush2.bf16.msra.mxu0 0
          %1097 = vmatprep.subr.bf16.mxu0 0
          %1098 = vmatpush2.bf16.msra.mxu0 0
          %1099 = vmatprep.subr.bf16.mxu0 0
          %1100 = vmatpush2.bf16.msra.mxu0 0
          %1101 = vmatprep.subr.bf16.mxu0 0
          %1102 = vmatpush2.bf16.msra.mxu0 0
          %1103 = vmatprep.subr.bf16.mxu0 0
          %1104 = vmatpush2.bf16.msra.mxu0 0
          %1105 = vmatprep.subr.bf16.mxu0 0
          %1106 = vmatpush2.bf16.msra.mxu0 0
          %1107 = vmatprep.mubr.bf16.mxu0 0
          %1108 = vmatmul.mubr.bf16.gmra.mxu0 %v1073
          %v1109 = vpop.f32.mrf.mxu0
          %v1110 = vadd.f32 %v1058, %v1109
          %v1111 = vpop.f32.mrf.mxu0
          %v1112 = vpop.f32.mrf.mxu0
          %v1113 = vpop.f32.mrf.mxu0
          %1114 = vdwg.mxu0
          %v1115 = vadd.f32 %v941, %v1110
          %1116 = vst.msk [vmem:[%s502] sm:$0xff] %vm944, %v1115
        $region76: #{transformer_forward.7} parent=67 // pred_fallthru
          _
        %s1117 = sand.u32 %s335, 1
        %s1118 = scalar_lea.sflag [#allocation6], %s1117
        %s1119 = sand.u32 %s335, 1
        %s1120 = smul.addr %s1119, 8
        %s1121 = scalar_lea.vmem [#allocation5], %s1120
        // Predicated region
        $region77: #{transformer_forward.7} parent=67 // pred_check
          %p1122 = pneg %p345
        $region78: #{transformer_forward.7} parent=67 // pred_check_branch
          %1124 = sbr.rel (%p1122) target = $region80
        $region79: #{transformer_forward.7} parent=67 // pred_region
          %s1126 = ssub.s32 128, 128
          %1127 = vsyncadd %s1118, %s1126
          %s1128 = sadd.s32 %s32, %s31
          %s1129 = smul.addr %s1128, 128
          %s1130 = scalar_lea.hbm %s12, %s1129
          %s1132 = sshll.u32 %s1121, 4
          %s1133 = int_to_ptr.vmem [resolvable:$true] %s1132
          %1135 = dma.vmem_to_hbm [thread:$0]  %s1133, 128, %s1130, %s1118
        $region80: #{transformer_forward.7} parent=67 // pred_fallthru
          _
      $region68: #{transformer_forward.7} parent=5 // pred_fallthru
        _
      %p1136 = scmp.le.s32.totalorder 2, %s21
      // Predicated region
      $region81: #{transformer_forward.7} parent=5 // pred_check
        %p1137 = pneg %p1136
      $region82: #{transformer_forward.7} parent=5 // pred_check_branch
        %1139 = sbr.rel (%p1137) target = $region84
      $region83: #{transformer_forward.7} parent=5 // pred_region
        %s1140 = ssub.s32 %s21, 2
        // Predicated region
        $region85: #{transformer_forward.7} parent=83 // pred_check
          %p1141 = pneg %p351
        $region86: #{transformer_forward.7} parent=83 // pred_check_branch
          %1143 = sbr.rel (%p1141) target = $region88
        $region87: #{transformer_forward.7} parent=83 // pred_region
          %s1144 = sand.u32 %s336, 1
          %s1145 = scalar_lea.sflag [#allocation6], %s1144
          %s1146 = sand.u32 %s336, 1
          %s1147 = smul.addr %s1146, 8
          %s1148 = scalar_lea.vmem [#allocation5], %s1147
          %1149 = dma.done %s1145, 128
        $region88: #{transformer_forward.7} parent=83 // pred_fallthru
          _
      $region84: #{transformer_forward.7} parent=5 // pred_fallthru
        _
    $region6: #{transformer_forward.7} parent=1 // loop_footer
      %s25 = sadd.s32 1, %s21
    $region7: #{transformer_forward.7} parent=1 // loop_footer_branch
      %20 = sbr.rel target = $region3
    $region8: #{transformer_forward.7} parent=1 // loop_exit
      _
    %1150 = vsyncpa [#allocation6], 1
    %s1151 = scalar_lea.sflag [#allocation6], 1
    %1152 = vsyncpa %s1151, 1

// kernel: transformer_forward.5
$region0: #{transformer_forward.5}
  #allocation0 [shape = 'u32[]', space=smem, size = 0x4, offset = 0x4, fixed_abs, tag = 'smem constant byte address 0x4 - core index']
  #allocation1 [shape = 'u32[144,128]{1,0:T(1,128)}', space=vmem, size = 0x12000, scoped, tag = 'internal scratch']
  #allocation2 [shape = 'f32[2,8,1]{2,1,0:T(8,128)}', space=vmem, size = 0x2000, scoped, tag = 'scratch operand']
  #allocation3 [shape = 'f32[2,8,1]{2,1,0:T(8,128)}', space=vmem, size = 0x2000, scoped, tag = 'scratch operand']
  #allocation4 [shape = 'f32[2,8,4]{2,1,0:T(8,128)}', space=vmem, size = 0x2000, scoped, tag = 'scratch operand']
  %s0 = inlined_call_operand.vmem [shape: f32[2,8,32], index: 0, kind: input, shape index: {}]
  %s1 = inlined_call_operand.vmem [shape: bf16[2,2,8,4], index: 1, kind: input, shape index: {}]
  %s2 = inlined_call_operand.vmem [shape: bf16[2,2,8,4], index: 2, kind: input, shape index: {}]
  %s3 = inlined_call_operand.vmem [shape: bf16[2,2,8,4], index: 3, kind: input, shape index: {}]
  %s4 = inlined_call_operand.vmem [shape: bf16[2,4,32], index: 4, kind: input, shape index: {}]
  %s5 = inlined_call_operand.vmem [shape: f32[1,32], index: 5, kind: input, shape index: {}]
  %s6 = inlined_call_operand.vmem [shape: f32[1,32], index: 6, kind: input, shape index: {}]
  %s7 = inlined_call_operand.vmem [shape: f32[1,32], index: 7, kind: input, shape index: {}]
  %s8 = inlined_call_operand.vmem [shape: bf16[32,32], index: 8, kind: input, shape index: {}]
  %s9 = inlined_call_operand.vmem [shape: f32[1,32], index: 9, kind: input, shape index: {}]
  %s10 = inlined_call_operand.vmem [shape: bf16[32,32], index: 10, kind: input, shape index: {}]
  %s11 = inlined_call_operand.vmem [shape: f32[1,32], index: 11, kind: input, shape index: {}]
  %s12 = inlined_call_operand.vmem [shape: f32[2,8,32], index: 12, kind: output, shape index: {}]
  %s13 = sld [smem:[#allocation0]]
  $region89: #{transformer_forward.5} parent=0
    _
  %s15 = ssub.s32 1, %s13
  %s16 = scalar_select 0, %s15, %s13
  loop: start=0, step=1, limit=4
  $region2: #{transformer_forward.5} parent=0 // loop_pre_header
    _
  $region3: #{transformer_forward.5} parent=0 // loop_header
    %s18 = sphi 0, %s22
    %p19 = scmp.ge.s32.totalorder %s18, 4
    %s25 = sphi 0, %s44
    %s26 = sphi 0, %s40
    %s27 = sphi 0, %s36
    %s28 = sphi 0, %s25
    %s29 = sphi 0, %s26
    %s30 = sphi 0, %s27
    %s31 = sphi 0, %s28
    %s32 = sphi 0, %s29
    %s33 = sphi 0, %s30
    %s49 = sphi 0, %s51
    %s52 = sphi 0, %s49
    %s53 = sphi 0, %s52
    %s69 = sphi 0, %s53
    %s77 = sphi 0, %s79
    %s80 = sphi 0, %s77
    %s81 = sphi 0, %s80
    %s97 = sphi 0, %s81
    %s105 = sphi 0, %s107
    %s108 = sphi 0, %s105
    %s109 = sphi 0, %s108
    %s125 = sphi 0, %s109
    %s133 = sphi 0, %s135
    %s136 = sphi 0, %s133
    %s137 = sphi 0, %s136
    %s153 = sphi 0, %s137
    %s157 = sphi 0, %s157
    %s159 = sphi 0, %s157
    %s160 = sphi 0, %s159
    %s174 = sphi 0, %s160
    %s178 = sphi 0, %s178
    %s180 = sphi 0, %s178
    %s181 = sphi 0, %s180
    %s195 = sphi 0, %s181
    %s199 = sphi 0, %s199
    %s201 = sphi 0, %s199
    %s202 = sphi 0, %s201
    %s216 = sphi 0, %s202
    %s220 = sphi 0, %s220
    %s222 = sphi 0, %s220
    %s223 = sphi 0, %s222
    %s237 = sphi 0, %s223
    %s241 = sphi 0, %s241
    %s243 = sphi 0, %s241
    %s244 = sphi 0, %s243
    %s258 = sphi 0, %s244
    %s262 = sphi 0, %s262
    %s264 = sphi 0, %s262
    %s265 = sphi 0, %s264
    %s279 = sphi 0, %s265
    %s283 = sphi 0, %s283
    %s285 = sphi 0, %s283
    %s286 = sphi 0, %s285
    %s300 = sphi 0, %s286
    %s304 = sphi 0, %s304
    %s306 = sphi 0, %s304
    %s307 = sphi 0, %s306
    %s321 = sphi 0, %s307
    %s329 = sphi 0, %s331
    %s332 = sphi 0, %s329
    %s333 = sphi 0, %s332
    %s349 = sphi 0, %s333
  $region4: #{transformer_forward.5} parent=0 // loop_header_branch
    %21 = sbr.rel (%p19) target = $region8
  $region5: #{transformer_forward.5} parent=0 // loop_body
    %s23 = ssub.s32 %s18, 1
    %s24 = ssub.s32 %s18, 2
    %s34 = sadd.s32 1, %s27
    %p35 = scmp.ge.s32.totalorder %s34, 1
    %s36 = scalar_select %p35, 0, %s34
    %s37 = sadd.s32 1, %s26
    %s38 = scalar_select %p35, %s37, %s26
    %p39 = scmp.ge.s32.totalorder %s38, 1
    %s40 = scalar_select %p39, 0, %s38
    %s41 = sadd.s32 1, %s25
    %s42 = scalar_select %p39, %s41, %s25
    %p43 = scmp.ge.s32.totalorder %s42, 2
    %s44 = scalar_select %p43, 0, %s42
    %s45 = ssub.s32 %s25, %s44
    %s46 = ssub.s32 %s26, %s40
    %s47 = sor.u32 %s45, %s46
    %p48 = scmp.eq.s32.totalorder %s47, 0
    %s50 = sadd.s32 %s49, 1
    %s51 = scalar_select %p48, %s49, %s50
    %p54 = pneg %p48
    %p55 = scmp.eq.s32.totalorder %s18, 1
    %p56 = por %p54, %p55
    %p57 = scmp.ne.s32.totalorder %s49, %s52
    %p58 = scmp.eq.s32.totalorder %s18, 0
    %p59 = por %p57, %p58
    %p60 = scmp.ne.s32.totalorder %s49, %s52
    %p61 = scmp.eq.s32.totalorder %s23, 1
    %p62 = por %p60, %p61
    %p63 = scmp.ne.s32.totalorder %s52, %s53
    %p64 = scmp.eq.s32.totalorder %s23, 0
    %p65 = por %p63, %p64
    %p66 = scmp.ne.s32.totalorder %s52, %s53
    %p67 = scmp.eq.s32.totalorder %s24, 1
    %p68 = por %p66, %p67
    %p70 = scmp.ne.s32.totalorder %s53, %s69
    %p71 = scmp.eq.s32.totalorder %s24, 0
    %p72 = por %p70, %p71
    %s73 = ssub.s32 %s25, %s44
    %s74 = ssub.s32 %s26, %s40
    %s75 = sor.u32 %s73, %s74
    %p76 = scmp.eq.s32.totalorder %s75, 0
    %s78 = sadd.s32 %s77, 1
    %s79 = scalar_select %p76, %s77, %s78
    %p82 = pneg %p76
    %p83 = scmp.eq.s32.totalorder %s18, 1
    %p84 = por %p82, %p83
    %p85 = scmp.ne.s32.totalorder %s77, %s80
    %p86 = scmp.eq.s32.totalorder %s18, 0
    %p87 = por %p85, %p86
    %p88 = scmp.ne.s32.totalorder %s77, %s80
    %p89 = scmp.eq.s32.totalorder %s23, 1
    %p90 = por %p88, %p89
    %p91 = scmp.ne.s32.totalorder %s80, %s81
    %p92 = scmp.eq.s32.totalorder %s23, 0
    %p93 = por %p91, %p92
    %p94 = scmp.ne.s32.totalorder %s80, %s81
    %p95 = scmp.eq.s32.totalorder %s24, 1
    %p96 = por %p94, %p95
    %p98 = scmp.ne.s32.totalorder %s81, %s97
    %p99 = scmp.eq.s32.totalorder %s24, 0
    %p100 = por %p98, %p99
    %s101 = ssub.s32 %s25, %s44
    %s102 = ssub.s32 %s27, %s36
    %s103 = sor.u32 %s101, %s102
    %p104 = scmp.eq.s32.totalorder %s103, 0
    %s106 = sadd.s32 %s105, 1
    %s107 = scalar_select %p104, %s105, %s106
    %p110 = pneg %p104
    %p111 = scmp.eq.s32.totalorder %s18, 1
    %p112 = por %p110, %p111
    %p113 = scmp.ne.s32.totalorder %s105, %s108
    %p114 = scmp.eq.s32.totalorder %s18, 0
    %p115 = por %p113, %p114
    %p116 = scmp.ne.s32.totalorder %s105, %s108
    %p117 = scmp.eq.s32.totalorder %s23, 1
    %p118 = por %p116, %p117
    %p119 = scmp.ne.s32.totalorder %s108, %s109
    %p120 = scmp.eq.s32.totalorder %s23, 0
    %p121 = por %p119, %p120
    %p122 = scmp.ne.s32.totalorder %s108, %s109
    %p123 = scmp.eq.s32.totalorder %s24, 1
    %p124 = por %p122, %p123
    %p126 = scmp.ne.s32.totalorder %s109, %s125
    %p127 = scmp.eq.s32.totalorder %s24, 0
    %p128 = por %p126, %p127
    %s129 = ssub.s32 %s25, %s44
    %s130 = ssub.s32 %s27, %s36
    %s131 = sor.u32 %s129, %s130
    %p132 = scmp.eq.s32.totalorder %s131, 0
    %s134 = sadd.s32 %s133, 1
    %s135 = scalar_select %p132, %s133, %s134
    %p138 = pneg %p132
    %p139 = scmp.eq.s32.totalorder %s18, 1
    %p140 = por %p138, %p139
    %p141 = scmp.ne.s32.totalorder %s133, %s136
    %p142 = scmp.eq.s32.totalorder %s18, 0
    %p143 = por %p141, %p142
    %p144 = scmp.ne.s32.totalorder %s133, %s136
    %p145 = scmp.eq.s32.totalorder %s23, 1
    %p146 = por %p144, %p145
    %p147 = scmp.ne.s32.totalorder %s136, %s137
    %p148 = scmp.eq.s32.totalorder %s23, 0
    %p149 = por %p147, %p148
    %p150 = scmp.ne.s32.totalorder %s136, %s137
    %p151 = scmp.eq.s32.totalorder %s24, 1
    %p152 = por %p150, %p151
    %p154 = scmp.ne.s32.totalorder %s137, %s153
    %p155 = scmp.eq.s32.totalorder %s24, 0
    %p156 = por %p154, %p155
    %s158 = sadd.s32 %s157, 1
    %p161 = scmp.eq.s32.totalorder %s18, 1
    %p162 = scmp.ne.s32.totalorder %s157, %s159
    %p163 = scmp.eq.s32.totalorder %s18, 0
    %p164 = por %p162, %p163
    %p165 = scmp.ne.s32.totalorder %s157, %s159
    %p166 = scmp.eq.s32.totalorder %s23, 1
    %p167 = por %p165, %p166
    %p168 = scmp.ne.s32.totalorder %s159, %s160
    %p169 = scmp.eq.s32.totalorder %s23, 0
    %p170 = por %p168, %p169
    %p171 = scmp.ne.s32.totalorder %s159, %s160
    %p172 = scmp.eq.s32.totalorder %s24, 1
    %p173 = por %p171, %p172
    %p175 = scmp.ne.s32.totalorder %s160, %s174
    %p176 = scmp.eq.s32.totalorder %s24, 0
    %p177 = por %p175, %p176
    %s179 = sadd.s32 %s178, 1
    %p182 = scmp.eq.s32.totalorder %s18, 1
    %p183 = scmp.ne.s32.totalorder %s178, %s180
    %p184 = scmp.eq.s32.totalorder %s18, 0
    %p185 = por %p183, %p184
    %p186 = scmp.ne.s32.totalorder %s178, %s180
    %p187 = scmp.eq.s32.totalorder %s23, 1
    %p188 = por %p186, %p187
    %p189 = scmp.ne.s32.totalorder %s180, %s181
    %p190 = scmp.eq.s32.totalorder %s23, 0
    %p191 = por %p189, %p190
    %p192 = scmp.ne.s32.totalorder %s180, %s181
    %p193 = scmp.eq.s32.totalorder %s24, 1
    %p194 = por %p192, %p193
    %p196 = scmp.ne.s32.totalorder %s181, %s195
    %p197 = scmp.eq.s32.totalorder %s24, 0
    %p198 = por %p196, %p197
    %s200 = sadd.s32 %s199, 1
    %p203 = scmp.eq.s32.totalorder %s18, 1
    %p204 = scmp.ne.s32.totalorder %s199, %s201
    %p205 = scmp.eq.s32.totalorder %s18, 0
    %p206 = por %p204, %p205
    %p207 = scmp.ne.s32.totalorder %s199, %s201
    %p208 = scmp.eq.s32.totalorder %s23, 1
    %p209 = por %p207, %p208
    %p210 = scmp.ne.s32.totalorder %s201, %s202
    %p211 = scmp.eq.s32.totalorder %s23, 0
    %p212 = por %p210, %p211
    %p213 = scmp.ne.s32.totalorder %s201, %s202
    %p214 = scmp.eq.s32.totalorder %s24, 1
    %p215 = por %p213, %p214
    %p217 = scmp.ne.s32.totalorder %s202, %s216
    %p218 = scmp.eq.s32.totalorder %s24, 0
    %p219 = por %p217, %p218
    %s221 = sadd.s32 %s220, 1
    %p224 = scmp.eq.s32.totalorder %s18, 1
    %p225 = scmp.ne.s32.totalorder %s220, %s222
    %p226 = scmp.eq.s32.totalorder %s18, 0
    %p227 = por %p225, %p226
    %p228 = scmp.ne.s32.totalorder %s220, %s222
    %p229 = scmp.eq.s32.totalorder %s23, 1
    %p230 = por %p228, %p229
    %p231 = scmp.ne.s32.totalorder %s222, %s223
    %p232 = scmp.eq.s32.totalorder %s23, 0
    %p233 = por %p231, %p232
    %p234 = scmp.ne.s32.totalorder %s222, %s223
    %p235 = scmp.eq.s32.totalorder %s24, 1
    %p236 = por %p234, %p235
    %p238 = scmp.ne.s32.totalorder %s223, %s237
    %p239 = scmp.eq.s32.totalorder %s24, 0
    %p240 = por %p238, %p239
    %s242 = sadd.s32 %s241, 1
    %p245 = scmp.eq.s32.totalorder %s18, 1
    %p246 = scmp.ne.s32.totalorder %s241, %s243
    %p247 = scmp.eq.s32.totalorder %s18, 0
    %p248 = por %p246, %p247
    %p249 = scmp.ne.s32.totalorder %s241, %s243
    %p250 = scmp.eq.s32.totalorder %s23, 1
    %p251 = por %p249, %p250
    %p252 = scmp.ne.s32.totalorder %s243, %s244
    %p253 = scmp.eq.s32.totalorder %s23, 0
    %p254 = por %p252, %p253
    %p255 = scmp.ne.s32.totalorder %s243, %s244
    %p256 = scmp.eq.s32.totalorder %s24, 1
    %p257 = por %p255, %p256
    %p259 = scmp.ne.s32.totalorder %s244, %s258
    %p260 = scmp.eq.s32.totalorder %s24, 0
    %p261 = por %p259, %p260
    %s263 = sadd.s32 %s262, 1
    %p266 = scmp.eq.s32.totalorder %s18, 1
    %p267 = scmp.ne.s32.totalorder %s262, %s264
    %p268 = scmp.eq.s32.totalorder %s18, 0
    %p269 = por %p267, %p268
    %p270 = scmp.ne.s32.totalorder %s262, %s264
    %p271 = scmp.eq.s32.totalorder %s23, 1
    %p272 = por %p270, %p271
    %p273 = scmp.ne.s32.totalorder %s264, %s265
    %p274 = scmp.eq.s32.totalorder %s23, 0
    %p275 = por %p273, %p274
    %p276 = scmp.ne.s32.totalorder %s264, %s265
    %p277 = scmp.eq.s32.totalorder %s24, 1
    %p278 = por %p276, %p277
    %p280 = scmp.ne.s32.totalorder %s265, %s279
    %p281 = scmp.eq.s32.totalorder %s24, 0
    %p282 = por %p280, %p281
    %s284 = sadd.s32 %s283, 1
    %p287 = scmp.eq.s32.totalorder %s18, 1
    %p288 = scmp.ne.s32.totalorder %s283, %s285
    %p289 = scmp.eq.s32.totalorder %s18, 0
    %p290 = por %p288, %p289
    %p291 = scmp.ne.s32.totalorder %s283, %s285
    %p292 = scmp.eq.s32.totalorder %s23, 1
    %p293 = por %p291, %p292
    %p294 = scmp.ne.s32.totalorder %s285, %s286
    %p295 = scmp.eq.s32.totalorder %s23, 0
    %p296 = por %p294, %p295
    %p297 = scmp.ne.s32.totalorder %s285, %s286
    %p298 = scmp.eq.s32.totalorder %s24, 1
    %p299 = por %p297, %p298
    %p301 = scmp.ne.s32.totalorder %s286, %s300
    %p302 = scmp.eq.s32.totalorder %s24, 0
    %p303 = por %p301, %p302
    %s305 = sadd.s32 %s304, 1
    %p308 = scmp.eq.s32.totalorder %s18, 1
    %p309 = scmp.ne.s32.totalorder %s304, %s306
    %p310 = scmp.eq.s32.totalorder %s18, 0
    %p311 = por %p309, %p310
    %p312 = scmp.ne.s32.totalorder %s304, %s306
    %p313 = scmp.eq.s32.totalorder %s23, 1
    %p314 = por %p312, %p313
    %p315 = scmp.ne.s32.totalorder %s306, %s307
    %p316 = scmp.eq.s32.totalorder %s23, 0
    %p317 = por %p315, %p316
    %p318 = scmp.ne.s32.totalorder %s306, %s307
    %p319 = scmp.eq.s32.totalorder %s24, 1
    %p320 = por %p318, %p319
    %p322 = scmp.ne.s32.totalorder %s307, %s321
    %p323 = scmp.eq.s32.totalorder %s24, 0
    %p324 = por %p322, %p323
    %s325 = ssub.s32 %s25, %s44
    %s326 = ssub.s32 %s26, %s40
    %s327 = sor.u32 %s325, %s326
    %p328 = scmp.eq.s32.totalorder %s327, 0
    %s330 = sadd.s32 %s329, 1
    %s331 = scalar_select %p328, %s329, %s330
    %p334 = pneg %p328
    %p335 = scmp.eq.s32.totalorder %s18, 1
    %p336 = por %p334, %p335
    %p337 = scmp.ne.s32.totalorder %s329, %s332
    %p338 = scmp.eq.s32.totalorder %s18, 0
    %p339 = por %p337, %p338
    %p340 = scmp.ne.s32.totalorder %s329, %s332
    %p341 = scmp.eq.s32.totalorder %s23, 1
    %p342 = por %p340, %p341
    %p343 = scmp.ne.s32.totalorder %s332, %s333
    %p344 = scmp.eq.s32.totalorder %s23, 0
    %p345 = por %p343, %p344
    %p346 = scmp.ne.s32.totalorder %s332, %s333
    %p347 = scmp.eq.s32.totalorder %s24, 1
    %p348 = por %p346, %p347
    %p350 = scmp.ne.s32.totalorder %s333, %s349
    %p351 = scmp.eq.s32.totalorder %s24, 0
    %p352 = por %p350, %p351
    %p353 = scmp.le.s32.totalorder 1, %s18
    %p354 = scmp.lt.s32.totalorder %s18, 3
    %p355 = pnand %p353, %p354
    %p356 = pneg %p355
    // Predicated region
    $region9: #{transformer_forward.5} parent=5 // pred_check
      _
    $region10: #{transformer_forward.5} parent=5 // pred_check_branch
      %358 = sbr.rel (%p355) target = $region12
    $region11: #{transformer_forward.5} parent=5 // pred_region
      %s359 = ssub.s32 %s18, 1
      // Predicated region
      $region13: #{transformer_forward.5} parent=11 // pred_check
        %p360 = pneg %p170
      $region14: #{transformer_forward.5} parent=11 // pred_check_branch
        %362 = sbr.rel (%p360) target = $region16
      $region15: #{transformer_forward.5} parent=11 // pred_region
        _
      $region16: #{transformer_forward.5} parent=11 // pred_fallthru
        _
      // Predicated region
      $region17: #{transformer_forward.5} parent=11 // pred_check
        %p363 = pneg %p191
      $region18: #{transformer_forward.5} parent=11 // pred_check_branch
        %365 = sbr.rel (%p363) target = $region20
      $region19: #{transformer_forward.5} parent=11 // pred_region
        _
      $region20: #{transformer_forward.5} parent=11 // pred_fallthru
        _
      // Predicated region
      $region21: #{transformer_forward.5} parent=11 // pred_check
        %p366 = pneg %p212
      $region22: #{transformer_forward.5} parent=11 // pred_check_branch
        %368 = sbr.rel (%p366) target = $region24
      $region23: #{transformer_forward.5} parent=11 // pred_region
        _
      $region24: #{transformer_forward.5} parent=11 // pred_fallthru
        _
      // Predicated region
      $region25: #{transformer_forward.5} parent=11 // pred_check
        %p369 = pneg %p233
      $region26: #{transformer_forward.5} parent=11 // pred_check_branch
        %371 = sbr.rel (%p369) target = $region28
      $region27: #{transformer_forward.5} parent=11 // pred_region
        _
      $region28: #{transformer_forward.5} parent=11 // pred_fallthru
        _
      // Predicated region
      $region29: #{transformer_forward.5} parent=11 // pred_check
        %p372 = pneg %p254
      $region30: #{transformer_forward.5} parent=11 // pred_check_branch
        %374 = sbr.rel (%p372) target = $region32
      $region31: #{transformer_forward.5} parent=11 // pred_region
        _
      $region32: #{transformer_forward.5} parent=11 // pred_fallthru
        _
      // Predicated region
      $region33: #{transformer_forward.5} parent=11 // pred_check
        %p375 = pneg %p275
      $region34: #{transformer_forward.5} parent=11 // pred_check_branch
        %377 = sbr.rel (%p375) target = $region36
      $region35: #{transformer_forward.5} parent=11 // pred_region
        _
      $region36: #{transformer_forward.5} parent=11 // pred_fallthru
        _
      // Predicated region
      $region37: #{transformer_forward.5} parent=11 // pred_check
        %p378 = pneg %p296
      $region38: #{transformer_forward.5} parent=11 // pred_check_branch
        %380 = sbr.rel (%p378) target = $region40
      $region39: #{transformer_forward.5} parent=11 // pred_region
        _
      $region40: #{transformer_forward.5} parent=11 // pred_fallthru
        _
      // Predicated region
      $region41: #{transformer_forward.5} parent=11 // pred_check
        %p381 = pneg %p317
      $region42: #{transformer_forward.5} parent=11 // pred_check_branch
        %383 = sbr.rel (%p381) target = $region44
      $region43: #{transformer_forward.5} parent=11 // pred_region
        _
      $region44: #{transformer_forward.5} parent=11 // pred_fallthru
        _
    $region12: #{transformer_forward.5} parent=5 // pred_fallthru
      _
    %p384 = scmp.lt.s32.totalorder %s18, 2
    // Predicated region
    $region45: #{transformer_forward.5} parent=5 // pred_check
      %p385 = pneg %p384
    $region46: #{transformer_forward.5} parent=5 // pred_check_branch
      %387 = sbr.rel (%p385) target = $region48
    $region47: #{transformer_forward.5} parent=5 // pred_region
      // Predicated region
      $region49: #{transformer_forward.5} parent=47 // pred_check
        %p388 = pneg %p59
      $region50: #{transformer_forward.5} parent=47 // pred_check_branch
        %390 = sbr.rel (%p388) target = $region52
      $region51: #{transformer_forward.5} parent=47 // pred_region
        %p391 = scmp.lt.s32.totalorder %s25, 1
        %s392 = scalar_select %p391, %s25, 1
        %p393 = scmp.lt.s32.totalorder %s26, 0
        %s394 = scalar_select %p393, %s26, 0
        %s395 = sadd.s32 %s394, %s392
        %s396 = smul.addr %s395, 8
        %s397 = scalar_lea.vmem %s0, %s396
      $region52: #{transformer_forward.5} parent=47 // pred_fallthru
        _
      // Predicated region
      $region53: #{transformer_forward.5} parent=47 // pred_check
        %p398 = pneg %p87
      $region54: #{transformer_forward.5} parent=47 // pred_check_branch
        %400 = sbr.rel (%p398) target = $region56
      $region55: #{transformer_forward.5} parent=47 // pred_region
        %p401 = scmp.lt.s32.totalorder %s25, 1
        %s402 = scalar_select %p401, %s25, 1
        %p403 = scmp.lt.s32.totalorder %s26, 0
        %s404 = scalar_select %p403, %s26, 0
        %s405 = smul.addr %s402, 2
        %s406 = sadd.s32 %s404, %s405
        %s407 = smul.addr %s406, 4
        %s408 = scalar_lea.vmem %s1, %s407
      $region56: #{transformer_forward.5} parent=47 // pred_fallthru
        _
      // Predicated region
      $region57: #{transformer_forward.5} parent=47 // pred_check
        %p409 = pneg %p115
      $region58: #{transformer_forward.5} parent=47 // pred_check_branch
        %411 = sbr.rel (%p409) target = $region60
      $region59: #{transformer_forward.5} parent=47 // pred_region
        %p412 = scmp.lt.s32.totalorder %s25, 1
        %s413 = scalar_select %p412, %s25, 1
        %p414 = scmp.lt.s32.totalorder %s27, 0
        %s415 = scalar_select %p414, %s27, 0
        %s416 = smul.addr %s413, 2
        %s417 = sadd.s32 %s415, %s416
        %s418 = smul.addr %s417, 4
        %s419 = scalar_lea.vmem %s2, %s418
      $region60: #{transformer_forward.5} parent=47 // pred_fallthru
        _
      // Predicated region
      $region61: #{transformer_forward.5} parent=47 // pred_check
        %p420 = pneg %p143
      $region62: #{transformer_forward.5} parent=47 // pred_check_branch
        %422 = sbr.rel (%p420) target = $region64
      $region63: #{transformer_forward.5} parent=47 // pred_region
        %p423 = scmp.lt.s32.totalorder %s25, 1
        %s424 = scalar_select %p423, %s25, 1
        %p425 = scmp.lt.s32.totalorder %s27, 0
        %s426 = scalar_select %p425, %s27, 0
        %s427 = smul.addr %s424, 2
        %s428 = sadd.s32 %s426, %s427
        %s429 = smul.addr %s428, 4
        %s430 = scalar_lea.vmem %s3, %s429
      $region64: #{transformer_forward.5} parent=47 // pred_fallthru
        _
    $region48: #{transformer_forward.5} parent=5 // pred_fallthru
      _
    %p431 = scmp.le.s32.totalorder 1, %s18
    %p432 = scmp.lt.s32.totalorder %s18, 3
    %p433 = pnand %p431, %p432
    %p434 = pneg %p433
    // Predicated region
    $region65: #{transformer_forward.5} parent=5 // pred_check
      _
    $region66: #{transformer_forward.5} parent=5 // pred_check_branch
      %436 = sbr.rel (%p433) target = $region68
    $region67: #{transformer_forward.5} parent=5 // pred_region
      %s437 = ssub.s32 %s18, 1
      %p438 = scmp.lt.s32.totalorder %s28, 1
      %s439 = scalar_select %p438, %s28, 1
      %p440 = scmp.lt.s32.totalorder %s29, 0
      %s441 = scalar_select %p440, %s29, 0
      %s442 = sadd.s32 %s441, %s439
      %s443 = smul.addr %s442, 8
      %s444 = scalar_lea.vmem %s0, %s443
      %p445 = pneg %p65
      %p446 = pneg %p62
      %p447 = scmp.lt.s32.totalorder %s28, 1
      %s448 = scalar_select %p447, %s28, 1
      %p449 = scmp.lt.s32.totalorder %s29, 0
      %s450 = scalar_select %p449, %s29, 0
      %s451 = smul.addr %s448, 2
      %s452 = sadd.s32 %s450, %s451
      %s453 = smul.addr %s452, 4
      %s454 = scalar_lea.vmem %s1, %s453
      %p455 = pneg %p93
      %p456 = pneg %p90
      %p457 = scmp.lt.s32.totalorder %s28, 1
      %s458 = scalar_select %p457, %s28, 1
      %p459 = scmp.lt.s32.totalorder %s30, 0
      %s460 = scalar_select %p459, %s30, 0
      %s461 = smul.addr %s458, 2
      %s462 = sadd.s32 %s460, %s461
      %s463 = smul.addr %s462, 4
      %s464 = scalar_lea.vmem %s2, %s463
      %p465 = pneg %p121
      %p466 = pneg %p118
      %p467 = scmp.lt.s32.totalorder %s28, 1
      %s468 = scalar_select %p467, %s28, 1
      %p469 = scmp.lt.s32.totalorder %s30, 0
      %s470 = scalar_select %p469, %s30, 0
      %s471 = smul.addr %s468, 2
      %s472 = sadd.s32 %s470, %s471
      %s473 = smul.addr %s472, 4
      %s474 = scalar_lea.vmem %s3, %s473
      %p475 = pneg %p149
      %p476 = pneg %p146
      %p477 = pneg %p170
      %p478 = pneg %p167
      %p479 = pneg %p191
      %p480 = pneg %p188
      %p481 = pneg %p212
      %p482 = pneg %p209
      %p483 = pneg %p233
      %p484 = pneg %p230
      %p485 = pneg %p254
      %p486 = pneg %p251
      %p487 = pneg %p275
      %p488 = pneg %p272
      %p489 = pneg %p296
      %p490 = pneg %p293
      %p491 = pneg %p317
      %p492 = pneg %p314
      %p493 = pneg %p345
      %p494 = pneg %p342
      %p495 = scmp.lt.s32.totalorder %s28, 1
      %s496 = scalar_select %p495, %s28, 1
      %p497 = scmp.lt.s32.totalorder %s29, 0
      %s498 = scalar_select %p497, %s29, 0
      %s499 = sadd.s32 %s498, %s496
      %s500 = smul.addr %s499, 8
      %s501 = scalar_lea.vmem %s12, %s500
      %p502 = scmp.lt.s32.totalorder %s28, 1
      %s503 = scalar_select %p502, %s28, 1
      %p504 = scmp.lt.s32.totalorder %s29, 0
      %s505 = scalar_select %p504, %s29, 0
      %s506 = sadd.s32 %s505, %s503
      %s507 = smul.addr %s506, 8
      %s508 = scalar_lea.vmem %s0, %s507
      %p509 = scmp.lt.s32.totalorder %s28, 1
      %s510 = scalar_select %p509, %s28, 1
      %p511 = scmp.lt.s32.totalorder %s29, 0
      %s512 = scalar_select %p511, %s29, 0
      %s513 = smul.addr %s510, 2
      %s514 = sadd.s32 %s512, %s513
      %s515 = smul.addr %s514, 4
      %s516 = scalar_lea.vmem %s1, %s515
      %p517 = scmp.lt.s32.totalorder %s28, 1
      %s518 = scalar_select %p517, %s28, 1
      %p519 = scmp.lt.s32.totalorder %s30, 0
      %s520 = scalar_select %p519, %s30, 0
      %s521 = smul.addr %s518, 2
      %s522 = sadd.s32 %s520, %s521
      %s523 = smul.addr %s522, 4
      %s524 = scalar_lea.vmem %s2, %s523
      %p525 = scmp.lt.s32.totalorder %s28, 1
      %s526 = scalar_select %p525, %s28, 1
      %p527 = scmp.lt.s32.totalorder %s30, 0
      %s528 = scalar_select %p527, %s30, 0
      %s529 = smul.addr %s526, 2
      %s530 = sadd.s32 %s528, %s529
      %s531 = smul.addr %s530, 4
      %s532 = scalar_lea.vmem %s3, %s531
      %p533 = scmp.lt.s32.totalorder %s28, 1
      %s534 = scalar_select %p533, %s28, 1
      %p535 = scmp.lt.s32.totalorder %s29, 0
      %s536 = scalar_select %p535, %s29, 0
      %s537 = sadd.s32 %s536, %s534
      %s538 = smul.addr %s537, 8
      %s539 = scalar_lea.vmem %s12, %s538
      %p541 = scmp.eq.s32.totalorder %s30, 0
      // Predicated region
      $region69: #{transformer_forward.5} parent=67 // pred_check
        %p542 = pneg %p541
      $region70: #{transformer_forward.5} parent=67 // pred_check_branch
        %544 = sbr.rel (%p542) target = $region72
      $region71: #{transformer_forward.5} parent=67 // pred_region
        %vm545 = vcmask 7168
        %546 = vst.msk [vmem:[#allocation2] sm:$0xff] %vm545, -inf
        %547 = vst.msk [vmem:[#allocation2 + $0x8] sm:$0xff] %vm545, -inf
        %548 = vst.msk [vmem:[#allocation3] sm:$0xff] %vm545, 0.0
        %549 = vst.msk [vmem:[#allocation3 + $0x8] sm:$0xff] %vm545, 0.0
        %vm550 = vcmask 31744
        %551 = vst.msk [vmem:[#allocation4] sm:$0xff] %vm550, 0.0
        %552 = vst.msk [vmem:[#allocation4 + $0x8] sm:$0xff] %vm550, 0.0
      $region72: #{transformer_forward.5} parent=67 // pred_fallthru
        _
      %v553 = vld [vmem:[%s516] sm:$0xf]
      %v554 = vld [vmem:[%s516 + $0x4] sm:$0xf]
      %v555 = vld [vmem:[%s524] sm:$0xf]
      %v556 = vld [vmem:[%s524 + $0x4] sm:$0xf]
      %v557 = vld [vmem:[%s532] sm:$0xf]
      %v558 = vld [vmem:[%s532 + $0x4] sm:$0xf]
      %vm559 = vcmask 31744
      %v561 = vsel %vm559, %v553, 0
      %v564 = vsel %vm559, %v555, 0
      %566 = vmatprep.subr.bf16.mxu0 0
      %567 = vmatpush1.bf16.xpose.msra.mxu0 0
      %568 = vmatprep.subr.bf16.mxu0 0
      %569 = vmatpush1.bf16.xpose.msra.mxu0 0
      %570 = vmatprep.subr.bf16.mxu0 0
      %571 = vmatpush1.bf16.xpose.msra.mxu0 0
      %572 = vmatprep.subr.bf16.mxu0 0
      %573 = vmatpush1.bf16.xpose.msra.mxu0 0
      %574 = vmatprep.subr.bf16.mxu0 0
      %575 = vmatpush1.bf16.xpose.msra.mxu0 0
      %576 = vmatprep.subr.bf16.mxu0 0
      %577 = vmatpush1.bf16.xpose.msra.mxu0 0
      %578 = vmatprep.subr.bf16.mxu0 0
      %579 = vmatpush1.bf16.xpose.msra.mxu0 0
      %580 = vmatprep.subr.bf16.mxu0 0
      %581 = vmatpush1.bf16.xpose.msra.mxu0 %v564
      %582 = vmatprep.subr.bf16.mxu0 0
      %583 = vmatpush2.bf16.xpose.msra.mxu0 0
      %584 = vmatprep.subr.bf16.mxu0 0
      %585 = vmatpush2.bf16.xpose.msra.mxu0 0
      %586 = vmatprep.subr.bf16.mxu0 0
      %587 = vmatpush2.bf16.xpose.msra.mxu0 0
      %588 = vmatprep.subr.bf16.mxu0 0
      %589 = vmatpush2.bf16.xpose.msra.mxu0 0
      %590 = vmatprep.subr.bf16.mxu0 0
      %591 = vmatpush2.bf16.xpose.msra.mxu0 0
      %592 = vmatprep.subr.bf16.mxu0 0
      %593 = vmatpush2.bf16.xpose.msra.mxu0 0
      %594 = vmatprep.subr.bf16.mxu0 0
      %595 = vmatpush2.bf16.xpose.msra.mxu0 0
      %596 = vmatprep.subr.bf16.mxu0 0
      %597 = vmatpush2.bf16.xpose.msra.mxu0 0
      %598 = vmatprep.mubr.bf16.mxu0 0
      %599 = vmatmul.mubr.bf16.gmra.mxu0 %v561
      %v600 = vpop.f32.mrf.mxu0
      %v601 = vadd.f32 0.0, %v600
      %v602 = vpop.f32.mrf.mxu0
      %v603 = vpop.f32.mrf.mxu0
      %v604 = vpop.f32.mrf.mxu0
      %605 = vdwg.mxu0
      %v607 = vsel %vm559, %v554, 0
      %v610 = vsel %vm559, %v556, 0
      %612 = vmatprep.subr.bf16.mxu0 0
      %613 = vmatpush1.bf16.xpose.msra.mxu0 0
      %614 = vmatprep.subr.bf16.mxu0 0
      %615 = vmatpush1.bf16.xpose.msra.mxu0 0
      %616 = vmatprep.subr.bf16.mxu0 0
      %617 = vmatpush1.bf16.xpose.msra.mxu0 0
      %618 = vmatprep.subr.bf16.mxu0 0
      %619 = vmatpush1.bf16.xpose.msra.mxu0 0
      %620 = vmatprep.subr.bf16.mxu0 0
      %621 = vmatpush1.bf16.xpose.msra.mxu0 0
      %622 = vmatprep.subr.bf16.mxu0 0
      %623 = vmatpush1.bf16.xpose.msra.mxu0 0
      %624 = vmatprep.subr.bf16.mxu0 0
      %625 = vmatpush1.bf16.xpose.msra.mxu0 0
      %626 = vmatprep.subr.bf16.mxu0 0
      %627 = vmatpush1.bf16.xpose.msra.mxu0 %v610
      %628 = vmatprep.subr.bf16.mxu0 0
      %629 = vmatpush2.bf16.xpose.msra.mxu0 0
      %630 = vmatprep.subr.bf16.mxu0 0
      %631 = vmatpush2.bf16.xpose.msra.mxu0 0
      %632 = vmatprep.subr.bf16.mxu0 0
      %633 = vmatpush2.bf16.xpose.msra.mxu0 0
      %634 = vmatprep.subr.bf16.mxu0 0
      %635 = vmatpush2.bf16.xpose.msra.mxu0 0
      %636 = vmatprep.subr.bf16.mxu0 0
      %637 = vmatpush2.bf16.xpose.msra.mxu0 0
      %638 = vmatprep.subr.bf16.mxu0 0
      %639 = vmatpush2.bf16.xpose.msra.mxu0 0
      %640 = vmatprep.subr.bf16.mxu0 0
      %641 = vmatpush2.bf16.xpose.msra.mxu0 0
      %642 = vmatprep.subr.bf16.mxu0 0
      %643 = vmatpush2.bf16.xpose.msra.mxu0 0
      %644 = vmatprep.mubr.bf16.mxu0 0
      %645 = vmatmul.mubr.bf16.gmra.mxu0 %v607
      %v646 = vpop.f32.mrf.mxu0
      %v647 = vadd.f32 0.0, %v646
      %v648 = vpop.f32.mrf.mxu0
      %v649 = vpop.f32.mrf.mxu0
      %v650 = vpop.f32.mrf.mxu0
      %651 = vdwg.mxu0
      %v652 = vld [vmem:[#allocation2] sm:$0xff]
      %v653 = vld [vmem:[#allocation2 + $0x8] sm:$0xff]
      %vm654 = vcmask 64512
      %v655 = vsel %vm654, %v601, -inf
      %656 = vmax.xlane.f32.xlu0 %v655
      %v657 = vpop.xlane.xlu0 %656
      %v658 = vsel %vm654, %v647, -inf
      %659 = vmax.xlane.f32.xlu0 %v658
      %v660 = vpop.xlane.xlu0 %659
      %v661 = vmax.f32 %v652, %v657
      %v662 = vmax.f32 %v653, %v660
      %v663 = vsub.f32 %v652, %v661
      %v664 = vsub.f32 %v653, %v662
      %v665 = vmul.f32 %v663, 1.442695
      %v666 = vpow.pop %v665
      %v667 = vmul.f32 %v664, 1.442695
      %v668 = vpow.pop %v667
      %670 = vset.pattern.permute.xlu0 0
      %671 = vperm.xlu0 %670, %v661
      %v672 = vpop.permute.xlu0 %671
      %675 = vset.pattern.permute.xlu0 0
      %676 = vperm.xlu0 %675, %v662
      %v677 = vpop.permute.xlu0 %676
      %v679 = vsub.f32 %v601, %v672
      %v680 = vsub.f32 %v647, %v677
      %v681 = vpack.c.bf16 %v679, %v679
      %v682 = vpack.c.bf16 %v680, %v680
      %v684 = vmul.bf16 %v681, 1069105081
      %v685 = vpow.bf16.pop %v684
      %v687 = vmul.bf16 %v682, 1069105081
      %v688 = vpow.bf16.pop %v687
      %v689 = vld [vmem:[#allocation3] sm:$0xff]
      %v690 = vld [vmem:[#allocation3 + $0x8] sm:$0xff]
      %v691 = vmul.f32 %v666, %v689
      %v692 = vmul.f32 %v668, %v690
      %v693 = vunpack.c.l.bf16 %v685
      %v694 = vunpack.c.l.bf16 %v688
      %v695 = vsel %vm654, %v693, 0.0
      %696 = vadd.xlane.f32.xlu0 %v695
      %v697 = vpop.xlane.xlu0 %696
      %v698 = vsel %vm654, %v694, 0.0
      %699 = vadd.xlane.f32.xlu0 %v698
      %v700 = vpop.xlane.xlu0 %699
      %v701 = vadd.f32 %v691, %v697
      %v702 = vadd.f32 %v692, %v700
      %vm703 = vcmask 7168
      %704 = vst.msk [vmem:[#allocation3] sm:$0xff] %vm703, %v701
      %705 = vst.msk [vmem:[#allocation3 + $0x8] sm:$0xff] %vm703, %v702
      %v706 = vld [vmem:[#allocation4] sm:$0xff]
      %v707 = vld [vmem:[#allocation4 + $0x8] sm:$0xff]
      %709 = vset.pattern.permute.xlu0 0
      %710 = vperm.xlu0 %709, %v666
      %v711 = vpop.permute.xlu0 %710
      %714 = vset.pattern.permute.xlu0 0
      %715 = vperm.xlu0 %714, %v668
      %v716 = vpop.permute.xlu0 %715
      %v718 = vmul.f32 %v711, %v706
      %v719 = vmul.f32 %v716, %v707
      %v721 = vsel %vm654, %v685, 0
      %vm723 = vcmask 1043456
      %v725 = vsel %vm723, %v557, 0
      %727 = vmatprep.subr.bf16.mxu0 0
      %728 = vmatpush1.bf16.msra.mxu0 0
      %729 = vmatprep.subr.bf16.mxu0 0
      %730 = vmatpush1.bf16.msra.mxu0 0
      %731 = vmatprep.subr.bf16.mxu0 0
      %732 = vmatpush1.bf16.msra.mxu0 0
      %733 = vmatprep.subr.bf16.mxu0 0
      %734 = vmatpush1.bf16.msra.mxu0 0
      %735 = vmatprep.subr.bf16.mxu0 0
      %736 = vmatpush1.bf16.msra.mxu0 0
      %737 = vmatprep.subr.bf16.mxu0 0
      %738 = vmatpush1.bf16.msra.mxu0 0
      %739 = vmatprep.subr.bf16.mxu0 0
      %740 = vmatpush1.bf16.msra.mxu0 0
      %741 = vmatprep.subr.bf16.mxu0 0
      %742 = vmatpush1.bf16.msra.mxu0 %v725
      %743 = vmatprep.subr.bf16.mxu0 0
      %744 = vmatpush2.bf16.msra.mxu0 0
      %745 = vmatprep.subr.bf16.mxu0 0
      %746 = vmatpush2.bf16.msra.mxu0 0
      %747 = vmatprep.subr.bf16.mxu0 0
      %748 = vmatpush2.bf16.msra.mxu0 0
      %749 = vmatprep.subr.bf16.mxu0 0
      %750 = vmatpush2.bf16.msra.mxu0 0
      %751 = vmatprep.subr.bf16.mxu0 0
      %752 = vmatpush2.bf16.msra.mxu0 0
      %753 = vmatprep.subr.bf16.mxu0 0
      %754 = vmatpush2.bf16.msra.mxu0 0
      %755 = vmatprep.subr.bf16.mxu0 0
      %756 = vmatpush2.bf16.msra.mxu0 0
      %757 = vmatprep.subr.bf16.mxu0 0
      %758 = vmatpush2.bf16.msra.mxu0 0
      %759 = vmatprep.mubr.bf16.mxu0 0
      %760 = vmatmul.mubr.bf16.gmra.mxu0 %v721
      %v761 = vpop.f32.mrf.mxu0
      %v762 = vadd.f32 0.0, %v761
      %v763 = vpop.f32.mrf.mxu0
      %v764 = vpop.f32.mrf.mxu0
      %v765 = vpop.f32.mrf.mxu0
      %766 = vdwg.mxu0
      %v768 = vsel %vm654, %v688, 0
      %v771 = vsel %vm723, %v558, 0
      %773 = vmatprep.subr.bf16.mxu0 0
      %774 = vmatpush1.bf16.msra.mxu0 0
      %775 = vmatprep.subr.bf16.mxu0 0
      %776 = vmatpush1.bf16.msra.mxu0 0
      %777 = vmatprep.subr.bf16.mxu0 0
      %778 = vmatpush1.bf16.msra.mxu0 0
      %779 = vmatprep.subr.bf16.mxu0 0
      %780 = vmatpush1.bf16.msra.mxu0 0
      %781 = vmatprep.subr.bf16.mxu0 0
      %782 = vmatpush1.bf16.msra.mxu0 0
      %783 = vmatprep.subr.bf16.mxu0 0
      %784 = vmatpush1.bf16.msra.mxu0 0
      %785 = vmatprep.subr.bf16.mxu0 0
      %786 = vmatpush1.bf16.msra.mxu0 0
      %787 = vmatprep.subr.bf16.mxu0 0
      %788 = vmatpush1.bf16.msra.mxu0 %v771
      %789 = vmatprep.subr.bf16.mxu0 0
      %790 = vmatpush2.bf16.msra.mxu0 0
      %791 = vmatprep.subr.bf16.mxu0 0
      %792 = vmatpush2.bf16.msra.mxu0 0
      %793 = vmatprep.subr.bf16.mxu0 0
      %794 = vmatpush2.bf16.msra.mxu0 0
      %795 = vmatprep.subr.bf16.mxu0 0
      %796 = vmatpush2.bf16.msra.mxu0 0
      %797 = vmatprep.subr.bf16.mxu0 0
      %798 = vmatpush2.bf16.msra.mxu0 0
      %799 = vmatprep.subr.bf16.mxu0 0
      %800 = vmatpush2.bf16.msra.mxu0 0
      %801 = vmatprep.subr.bf16.mxu0 0
      %802 = vmatpush2.bf16.msra.mxu0 0
      %803 = vmatprep.subr.bf16.mxu0 0
      %804 = vmatpush2.bf16.msra.mxu0 0
      %805 = vmatprep.mubr.bf16.mxu0 0
      %806 = vmatmul.mubr.bf16.gmra.mxu0 %v768
      %v807 = vpop.f32.mrf.mxu0
      %v808 = vadd.f32 0.0, %v807
      %v809 = vpop.f32.mrf.mxu0
      %v810 = vpop.f32.mrf.mxu0
      %v811 = vpop.f32.mrf.mxu0
      %812 = vdwg.mxu0
      %v813 = vadd.f32 %v718, %v762
      %v814 = vadd.f32 %v719, %v808
      %815 = vst.msk [vmem:[#allocation4] sm:$0xff] %vm559, %v813
      %816 = vst.msk [vmem:[#allocation4 + $0x8] sm:$0xff] %vm559, %v814
      %817 = vst.msk [vmem:[#allocation2] sm:$0xff] %vm703, %v661
      %818 = vst.msk [vmem:[#allocation2 + $0x8] sm:$0xff] %vm703, %v662
      // Predicated region
      $region73: #{transformer_forward.5} parent=67 // pred_check
        %p819 = pneg %p541
      $region74: #{transformer_forward.5} parent=67 // pred_check_branch
        %821 = sbr.rel (%p819) target = $region76
      $region75: #{transformer_forward.5} parent=67 // pred_region
        %v822 = vld [vmem:[#allocation4] sm:$0xff]
        %v823 = vld [vmem:[#allocation4 + $0x8] sm:$0xff]
        %v824 = vld [vmem:[#allocation3] sm:$0xff]
        %v825 = vld [vmem:[#allocation3 + $0x8] sm:$0xff]
        %v826 = vrcp.pop %v824
        %v827 = vrcp.pop %v825
        %829 = vset.pattern.permute.xlu0 0
        %830 = vperm.xlu0 %829, %v826
        %v831 = vpop.permute.xlu0 %830
        %834 = vset.pattern.permute.xlu0 0
        %835 = vperm.xlu0 %834, %v827
        %v836 = vpop.permute.xlu0 %835
        %v838 = vmul.f32 %v822, %v831
        %v839 = vmul.f32 %v823, %v836
        %v840 = vpack.c.bf16 %v838, %v838
        %v841 = vpack.c.bf16 %v839, %v839
        %v842 = vld [vmem:[%s4] sm:$0x3]
        %s843 = scalar_lea.vmem %s4, 2
        %v844 = vld [vmem:[%s843] sm:$0x3]
        %v846 = vsel %vm559, %v841, 0
        %vm848 = vcmask 1041408
        %v850 = vsel %vm848, %v844, 0
        %852 = vmatprep.subr.bf16.mxu0 0
        %853 = vmatpush1.bf16.msra.mxu0 0
        %854 = vmatprep.subr.bf16.mxu0 0
        %855 = vmatpush1.bf16.msra.mxu0 0
        %856 = vmatprep.subr.bf16.mxu0 0
        %857 = vmatpush1.bf16.msra.mxu0 0
        %858 = vmatprep.subr.bf16.mxu0 0
        %859 = vmatpush1.bf16.msra.mxu0 0
        %860 = vmatprep.subr.bf16.mxu0 0
        %861 = vmatpush1.bf16.msra.mxu0 0
        %862 = vmatprep.subr.bf16.mxu0 0
        %863 = vmatpush1.bf16.msra.mxu0 0
        %864 = vmatprep.subr.bf16.mxu0 0
        %865 = vmatpush1.bf16.msra.mxu0 0
        %866 = vmatprep.subr.bf16.mxu0 0
        %867 = vmatpush1.bf16.msra.mxu0 %v850
        %868 = vmatprep.subr.bf16.mxu0 0
        %869 = vmatpush2.bf16.msra.mxu0 0
        %870 = vmatprep.subr.bf16.mxu0 0
        %871 = vmatpush2.bf16.msra.mxu0 0
        %872 = vmatprep.subr.bf16.mxu0 0
        %873 = vmatpush2.bf16.msra.mxu0 0
        %874 = vmatprep.subr.bf16.mxu0 0
        %875 = vmatpush2.bf16.msra.mxu0 0
        %876 = vmatprep.subr.bf16.mxu0 0
        %877 = vmatpush2.bf16.msra.mxu0 0
        %878 = vmatprep.subr.bf16.mxu0 0
        %879 = vmatpush2.bf16.msra.mxu0 0
        %880 = vmatprep.subr.bf16.mxu0 0
        %881 = vmatpush2.bf16.msra.mxu0 0
        %882 = vmatprep.subr.bf16.mxu0 0
        %883 = vmatpush2.bf16.msra.mxu0 0
        %884 = vmatprep.mubr.bf16.mxu0 0
        %885 = vmatmul.mubr.bf16.gmra.mxu0 %v846
        %v886 = vpop.f32.mrf.mxu0
        %v887 = vadd.f32 0.0, %v886
        %v888 = vpop.f32.mrf.mxu0
        %v889 = vpop.f32.mrf.mxu0
        %v890 = vpop.f32.mrf.mxu0
        %891 = vdwg.mxu0
        %v893 = vsel %vm559, %v840, 0
        %v896 = vsel %vm848, %v842, 0
        %898 = vmatprep.subr.bf16.mxu0 0
        %899 = vmatpush1.bf16.msra.mxu0 0
        %900 = vmatprep.subr.bf16.mxu0 0
        %901 = vmatpush1.bf16.msra.mxu0 0
        %902 = vmatprep.subr.bf16.mxu0 0
        %903 = vmatpush1.bf16.msra.mxu0 0
        %904 = vmatprep.subr.bf16.mxu0 0
        %905 = vmatpush1.bf16.msra.mxu0 0
        %906 = vmatprep.subr.bf16.mxu0 0
        %907 = vmatpush1.bf16.msra.mxu0 0
        %908 = vmatprep.subr.bf16.mxu0 0
        %909 = vmatpush1.bf16.msra.mxu0 0
        %910 = vmatprep.subr.bf16.mxu0 0
        %911 = vmatpush1.bf16.msra.mxu0 0
        %912 = vmatprep.subr.bf16.mxu0 0
        %913 = vmatpush1.bf16.msra.mxu0 %v896
        %914 = vmatprep.subr.bf16.mxu0 0
        %915 = vmatpush2.bf16.msra.mxu0 0
        %916 = vmatprep.subr.bf16.mxu0 0
        %917 = vmatpush2.bf16.msra.mxu0 0
        %918 = vmatprep.subr.bf16.mxu0 0
        %919 = vmatpush2.bf16.msra.mxu0 0
        %920 = vmatprep.subr.bf16.mxu0 0
        %921 = vmatpush2.bf16.msra.mxu0 0
        %922 = vmatprep.subr.bf16.mxu0 0
        %923 = vmatpush2.bf16.msra.mxu0 0
        %924 = vmatprep.subr.bf16.mxu0 0
        %925 = vmatpush2.bf16.msra.mxu0 0
        %926 = vmatprep.subr.bf16.mxu0 0
        %927 = vmatpush2.bf16.msra.mxu0 0
        %928 = vmatprep.subr.bf16.mxu0 0
        %929 = vmatpush2.bf16.msra.mxu0 0
        %930 = vmatprep.mubr.bf16.mxu0 0
        %931 = vmatmul.mubr.bf16.gmra.mxu0 %v893
        %v932 = vpop.f32.mrf.mxu0
        %v933 = vadd.f32 %v887, %v932
        %v934 = vpop.f32.mrf.mxu0
        %v935 = vpop.f32.mrf.mxu0
        %v936 = vpop.f32.mrf.mxu0
        %937 = vdwg.mxu0
        %v938 = vld [vmem:[%s5] sm:$0x1]
        %v940 = vlaneseq
        %v941 = vshrl.u32 %v940, 7
        %v942 = vsub.s32 0, %v941
        %v943 = vrot.slane %v938, %v942
        %v945 = vadd.f32 %v933, %v943
        %v946 = vld [vmem:[%s508] sm:$0xff]
        %v947 = vadd.f32 %v946, %v945
        %v948 = vld [vmem:[%s6] sm:$0x1]
        %v949 = vld [vmem:[%s7] sm:$0x1]
        %vm950 = vcmask 261120
        %v951 = vsel %vm950, %v947, 0.0
        %952 = vadd.xlane.f32.xlu0 %v951
        %v953 = vpop.xlane.xlu0 %952
        %v954 = vrcp.pop 32.0
        %v955 = vmul.f32 %v953, %v954
        %v956 = vsub.f32 %v947, %v955
        %v957 = vmul.f32 %v956, %v956
        %v958 = vsel %vm950, %v957, 0.0
        %959 = vadd.xlane.f32.xlu0 %v958
        %v960 = vpop.xlane.xlu0 %959
        %v961 = vmul.f32 %v960, %v954
        %v962 = vadd.f32 %v961, 1e-05
        %v963 = vrsqrt.pop %v962
        %v964 = vmul.f32 %v956, %v963
        %v966 = vlaneseq
        %v967 = vshrl.u32 %v966, 7
        %v968 = vsub.s32 0, %v967
        %v969 = vrot.slane %v948, %v968
        %v971 = vmul.f32 %v964, %v969
        %v973 = vlaneseq
        %v974 = vshrl.u32 %v973, 7
        %v975 = vsub.s32 0, %v974
        %v976 = vrot.slane %v949, %v975
        %v978 = vadd.f32 %v971, %v976
        %v979 = vpack.c.bf16 %v978, %v978
        %v980 = vld [vmem:[%s8] sm:$0xf]
        %v981 = vld [vmem:[%s8 + $0x4] sm:$0xf]
        %v982 = vld [vmem:[%s8 + $0x8] sm:$0xf]
        %v983 = vld [vmem:[%s8 + $0xc] sm:$0xf]
        %v984 = vld [vmem:[%s9] sm:$0x1]
        %v986 = vlaneseq
        %v987 = vshrl.u32 %v986, 7
        %v988 = vsub.s32 0, %v987
        %v989 = vrot.slane %v984, %v988
        %v995 = vunpack.c.l.b16 %v980
        %v996 = vunpack.c.l.b16 %v981
        %v997 = vunpack.c.l.b16 %v982
        %v998 = vunpack.c.l.b16 %v983
        %v999 = vpack.c.b16 %v996, %v995
        %v1000 = vpack.c.b16 %v998, %v997
        %v1004 = vsel %vm950, %v979, 0
        %1006 = vmatprep.subr.bf16.mxu0 0
        %1007 = vmatpush1.bf16.msra.mxu0 0
        %1008 = vmatprep.subr.bf16.mxu0 0
        %1009 = vmatpush1.bf16.msra.mxu0 0
        %1010 = vmatprep.subr.bf16.mxu0 0
        %1011 = vmatpush1.bf16.msra.mxu0 0
        %1012 = vmatprep.subr.bf16.mxu0 0
        %1013 = vmatpush1.bf16.msra.mxu0 0
        %1014 = vmatprep.subr.bf16.mxu0 0
        %1015 = vmatpush1.bf16.msra.mxu0 0
        %1016 = vmatprep.subr.bf16.mxu0 0
        %1017 = vmatpush1.bf16.msra.mxu0 0
        %1018 = vmatprep.subr.bf16.mxu0 0
        %1019 = vmatpush1.bf16.msra.mxu0 %v1000
        %1020 = vmatprep.subr.bf16.mxu0 0
        %1021 = vmatpush1.bf16.msra.mxu0 %v999
        %1022 = vmatprep.subr.bf16.mxu0 0
        %1023 = vmatpush2.bf16.msra.mxu0 0
        %1024 = vmatprep.subr.bf16.mxu0 0
        %1025 = vmatpush2.bf16.msra.mxu0 0
        %1026 = vmatprep.subr.bf16.mxu0 0
        %1027 = vmatpush2.bf16.msra.mxu0 0
        %1028 = vmatprep.subr.bf16.mxu0 0
        %1029 = vmatpush2.bf16.msra.mxu0 0
        %1030 = vmatprep.subr.bf16.mxu0 0
        %1031 = vmatpush2.bf16.msra.mxu0 0
        %1032 = vmatprep.subr.bf16.mxu0 0
        %1033 = vmatpush2.bf16.msra.mxu0 0
        %1034 = vmatprep.subr.bf16.mxu0 0
        %1035 = vmatpush2.bf16.msra.mxu0 0
        %1036 = vmatprep.subr.bf16.mxu0 0
        %1037 = vmatpush2.bf16.msra.mxu0 0
        %1038 = vmatprep.mubr.bf16.mxu0 0
        %1039 = vmatmul.mubr.bf16.gmra.mxu0 %v1004
        %v1040 = vpop.f32.mrf.mxu0
        %v1041 = vadd.f32 %v989, %v1040
        %v1042 = vpop.f32.mrf.mxu0
        %v1043 = vpop.f32.mrf.mxu0
        %v1044 = vpop.f32.mrf.mxu0
        %1045 = vdwg.mxu0
        %v1046 = vmul.f32 %v1041, 1.702
        %v1047 = vxor.u32 %v1046, 2147483648
        %v1048 = vmul.f32 %v1047, 1.442695
        %v1049 = vpow.pop %v1048
        %v1050 = vadd.f32 %v1049, 1.0
        %v1051 = vrcp.pop %v1050
        %v1052 = vmul.f32 1.0, %v1051
        %v1053 = vmul.f32 %v1041, %v1052
        %v1054 = vpack.c.bf16 %v1053, %v1053
        %v1055 = vld [vmem:[%s10] sm:$0xf]
        %v1056 = vld [vmem:[%s10 + $0x4] sm:$0xf]
        %v1057 = vld [vmem:[%s10 + $0x8] sm:$0xf]
        %v1058 = vld [vmem:[%s10 + $0xc] sm:$0xf]
        %v1059 = vld [vmem:[%s11] sm:$0x1]
        %v1061 = vlaneseq
        %v1062 = vshrl.u32 %v1061, 7
        %v1063 = vsub.s32 0, %v1062
        %v1064 = vrot.slane %v1059, %v1063
        %v1070 = vunpack.c.l.b16 %v1055
        %v1071 = vunpack.c.l.b16 %v1056
        %v1072 = vunpack.c.l.b16 %v1057
        %v1073 = vunpack.c.l.b16 %v1058
        %v1074 = vpack.c.b16 %v1071, %v1070
        %v1075 = vpack.c.b16 %v1073, %v1072
        %v1079 = vsel %vm950, %v1054, 0
        %1081 = vmatprep.subr.bf16.mxu0 0
        %1082 = vmatpush1.bf16.msra.mxu0 0
        %1083 = vmatprep.subr.bf16.mxu0 0
        %1084 = vmatpush1.bf16.msra.mxu0 0
        %1085 = vmatprep.subr.bf16.mxu0 0
        %1086 = vmatpush1.bf16.msra.mxu0 0
        %1087 = vmatprep.subr.bf16.mxu0 0
        %1088 = vmatpush1.bf16.msra.mxu0 0
        %1089 = vmatprep.subr.bf16.mxu0 0
        %1090 = vmatpush1.bf16.msra.mxu0 0
        %1091 = vmatprep.subr.bf16.mxu0 0
        %1092 = vmatpush1.bf16.msra.mxu0 0
        %1093 = vmatprep.subr.bf16.mxu0 0
        %1094 = vmatpush1.bf16.msra.mxu0 %v1075
        %1095 = vmatprep.subr.bf16.mxu0 0
        %1096 = vmatpush1.bf16.msra.mxu0 %v1074
        %1097 = vmatprep.subr.bf16.mxu0 0
        %1098 = vmatpush2.bf16.msra.mxu0 0
        %1099 = vmatprep.subr.bf16.mxu0 0
        %1100 = vmatpush2.bf16.msra.mxu0 0
        %1101 = vmatprep.subr.bf16.mxu0 0
        %1102 = vmatpush2.bf16.msra.mxu0 0
        %1103 = vmatprep.subr.bf16.mxu0 0
        %1104 = vmatpush2.bf16.msra.mxu0 0
        %1105 = vmatprep.subr.bf16.mxu0 0
        %1106 = vmatpush2.bf16.msra.mxu0 0
        %1107 = vmatprep.subr.bf16.mxu0 0
        %1108 = vmatpush2.bf16.msra.mxu0 0
        %1109 = vmatprep.subr.bf16.mxu0 0
        %1110 = vmatpush2.bf16.msra.mxu0 0
        %1111 = vmatprep.subr.bf16.mxu0 0
        %1112 = vmatpush2.bf16.msra.mxu0 0
        %1113 = vmatprep.mubr.bf16.mxu0 0
        %1114 = vmatmul.mubr.bf16.gmra.mxu0 %v1079
        %v1115 = vpop.f32.mrf.mxu0
        %v1116 = vadd.f32 %v1064, %v1115
        %v1117 = vpop.f32.mrf.mxu0
        %v1118 = vpop.f32.mrf.mxu0
        %v1119 = vpop.f32.mrf.mxu0
        %1120 = vdwg.mxu0
        %v1121 = vadd.f32 %v947, %v1116
        %1122 = vst.msk [vmem:[%s539] sm:$0xff] %vm950, %v1121
      $region76: #{transformer_forward.5} parent=67 // pred_fallthru
        _
      %p1123 = scmp.lt.s32.totalorder %s28, 1
      %s1124 = scalar_select %p1123, %s28, 1
      %p1125 = scmp.lt.s32.totalorder %s29, 0
      %s1126 = scalar_select %p1125, %s29, 0
      %s1127 = sadd.s32 %s1126, %s1124
      %s1128 = smul.addr %s1127, 8
      %s1129 = scalar_lea.vmem %s12, %s1128
      // Predicated region
      $region77: #{transformer_forward.5} parent=67 // pred_check
        %p1130 = pneg %p342
      $region78: #{transformer_forward.5} parent=67 // pred_check_branch
        %1132 = sbr.rel (%p1130) target = $region80
      $region79: #{transformer_forward.5} parent=67 // pred_region
        _
      $region80: #{transformer_forward.5} parent=67 // pred_fallthru
        _
    $region68: #{transformer_forward.5} parent=5 // pred_fallthru
      _
    %p1133 = scmp.le.s32.totalorder 2, %s18
    // Predicated region
    $region81: #{transformer_forward.5} parent=5 // pred_check
      %p1134 = pneg %p1133
    $region82: #{transformer_forward.5} parent=5 // pred_check_branch
      %1136 = sbr.rel (%p1134) target = $region84
    $region83: #{transformer_forward.5} parent=5 // pred_region
      %s1137 = ssub.s32 %s18, 2
      // Predicated region
      $region85: #{transformer_forward.5} parent=83 // pred_check
        %p1138 = pneg %p348
      $region86: #{transformer_forward.5} parent=83 // pred_check_branch
        %1140 = sbr.rel (%p1138) target = $region88
      $region87: #{transformer_forward.5} parent=83 // pred_region
        %p1141 = scmp.lt.s32.totalorder %s31, 1
        %s1142 = scalar_select %p1141, %s31, 1
        %p1143 = scmp.lt.s32.totalorder %s32, 0
        %s1144 = scalar_select %p1143, %s32, 0
        %s1145 = sadd.s32 %s1144, %s1142
        %s1146 = smul.addr %s1145, 8
        %s1147 = scalar_lea.vmem %s12, %s1146
      $region88: #{transformer_forward.5} parent=83 // pred_fallthru
        _
    $region84: #{transformer_forward.5} parent=5 // pred_fallthru
      _
  $region6: #{transformer_forward.5} parent=0 // loop_footer
    %s22 = sadd.s32 1, %s18
  $region7: #{transformer_forward.5} parent=0 // loop_footer_branch
    %17 = sbr.rel target = $region3
  $region8: #{transformer_forward.5} parent=0 // loop_exit
    _

</llo_original>
